<compile_context>
chip_gen: v7x
topology: tpu7x:2x2x1
jax: 0.10.0
libtpu: 0.0.40
codegen_flags: <defaults>
</compile_context>

<pallas_src>
import functools
import math

import jax
import jax.numpy as jnp
from jax import lax
from jax.experimental import pallas as pl
from jax.experimental.pallas import tpu as pltpu

EPS = 1e-5          # nn.LayerNorm default
_KV_CHUNK = 512     # online-softmax KV chunk (used when L > _KV_CHUNK)


def _layer_norm(x, gamma, beta):
    mu = jnp.mean(x, axis=-1, keepdims=True)
    var = jnp.mean((x - mu) ** 2, axis=-1, keepdims=True)
    return (x - mu) * jax.lax.rsqrt(var + EPS) * gamma + beta


def _encoder_kernel(x_ref,
                    g1_ref, be1_ref,
                    wqkv_ref, bqkv_ref,
                    wo_ref, bo_ref,
                    g2_ref, be2_ref,
                    w12_ref, b12_ref,
                    w3_ref, b3_ref,
                    o_ref,
                    *, nheads):
    x3 = x_ref[...]                               # (Bt, L, D) f32
    Bt, L, D = x3.shape
    hd = D // nheads
    BH = Bt * nheads
    R = Bt * L
    H = w12_ref.shape[1] // 2

    x = x3.reshape(R, D)

    # ---- LayerNorm 1 (f32) ---------------------------------------------
    xn = _layer_norm(x, g1_ref[...], be1_ref[...])

    # ---- fused QKV projection (bf16 MXU, f32 acc); 1/sqrt(hd) pre-folded --
    qkv = jnp.dot(xn.astype(jnp.bfloat16), wqkv_ref[...],
                  preferred_element_type=jnp.float32) + bqkv_ref[...]   # (R, 3D)
    qkv_b = qkv.astype(jnp.bfloat16)

    # ---- one relayout per block: heads -> leading batch axis -------------
    def split_heads(col0):                         # -> (BH, L, hd) bf16
        return jnp.concatenate(
            [qkv_b[:, col0 + h * hd: col0 + (h + 1) * hd].reshape(Bt, L, hd)
             for h in range(nheads)], axis=0)

    q_bh = split_heads(0)
    k_bh = split_heads(D)
    v_bh = split_heads(2 * D)

    # ---- attention: single batched einsum over all (head, batch) slabs ---
    if L <= _KV_CHUNK or (L % _KV_CHUNK) != 0:
        s = jnp.einsum("bqd,bkd->bqk", q_bh, k_bh,
                       preferred_element_type=jnp.float32)       # (BH, L, L) f32
        m = jnp.max(s, axis=-1, keepdims=True)
        p = jnp.exp(s - m)
        l = jnp.sum(p, axis=-1, keepdims=True)
        o_bh = jnp.einsum("bqk,bkd->bqd", p.astype(jnp.bfloat16), v_bh,
                          preferred_element_type=jnp.float32)
        o_bh = o_bh * pl.reciprocal(l, approx=True)
    else:
        # Online softmax over KV chunks: f32 score temp bounded to
        # (BH, L, _KV_CHUNK) regardless of sequence length.
        def body(i, carry):
            m_i, l_i, acc = carry
            k_c = lax.dynamic_slice_in_dim(k_bh, i * _KV_CHUNK, _KV_CHUNK, 1)
            v_c = lax.dynamic_slice_in_dim(v_bh, i * _KV_CHUNK, _KV_CHUNK, 1)
            s = jnp.einsum("bqd,bkd->bqk", q_bh, k_c,
                           preferred_element_type=jnp.float32)
            m_n = jnp.maximum(m_i, jnp.max(s, axis=-1, keepdims=True))
            a = jnp.exp(m_i - m_n)
            p = jnp.exp(s - m_n)
            l_n = a * l_i + jnp.sum(p, axis=-1, keepdims=True)
            acc = a * acc + jnp.einsum("bqk,bkd->bqd", p.astype(jnp.bfloat16),
                                       v_c, preferred_element_type=jnp.float32)
            return m_n, l_n, acc

        m0 = jnp.full((BH, L, 1), -jnp.inf, jnp.float32)
        l0 = jnp.zeros((BH, L, 1), jnp.float32)
        a0 = jnp.zeros((BH, L, hd), jnp.float32)
        _, l_f, acc = lax.fori_loop(0, L // _KV_CHUNK, body, (m0, l0, a0))
        o_bh = acc * pl.reciprocal(l_f, approx=True)

    # ---- merge heads back onto lanes; ONE full-K output projection -------
    o_cat = jnp.concatenate(
        [o_bh[h * Bt:(h + 1) * Bt].reshape(R, hd) for h in range(nheads)],
        axis=-1).astype(jnp.bfloat16)                            # (R, D)
    attn = jnp.dot(o_cat, wo_ref[...],
                   preferred_element_type=jnp.float32) + bo_ref[...]

    # Residual uses post-norm1 activations: the module reassigns x = norm1(x)
    # before the adds, so x1 = norm1(x0) + attn(norm1(x0)) and
    # out = norm2(x1) + ff(norm2(x1)).
    x1 = xn + attn

    # ---- LayerNorm 2 + SwiGLU feed-forward --------------------------------
    x2 = _layer_norm(x1, g2_ref[...], be2_ref[...])
    h12 = jnp.dot(x2.astype(jnp.bfloat16), w12_ref[...],
                  preferred_element_type=jnp.float32) + b12_ref[...]    # (R, 2H)
    h1, h2 = h12[:, :H], h12[:, H:]
    gated = (h1 * jax.nn.sigmoid(h1) * h2).astype(jnp.bfloat16)
    ff = jnp.dot(gated, w3_ref[...],
                 preferred_element_type=jnp.float32) + b3_ref[...]

    o_ref[...] = (x2 + ff).reshape(Bt, L, D)


# --------------------------- wrapper-side helpers ----------------------------
def pack_params(params, nheads):
    """One-time weight packing (hoisted out of the per-call path)."""
    D = params["wq"].shape[0]
    hd = D // nheads
    scale = 1.0 / math.sqrt(hd)
    return {
        "g1": params["g1"].astype(jnp.float32),
        "be1": params["be1"].astype(jnp.float32),
        "wqkv": jnp.concatenate([params["wq"] * scale, params["wk"],
                                 params["wv"]], axis=1).astype(jnp.bfloat16),
        "bqkv": jnp.concatenate([params["bq"] * scale, params["bk"],
                                 params["bv"]], axis=1).astype(jnp.float32),
        "wo": params["wo"].astype(jnp.bfloat16),
        "bo": params["bo"].astype(jnp.float32),
        "g2": params["g2"].astype(jnp.float32),
        "be2": params["be2"].astype(jnp.float32),
        "w12": jnp.concatenate([params["w1"], params["w2"]],
                               axis=1).astype(jnp.bfloat16),
        "b12": jnp.concatenate([params["b1"], params["b2"]],
                               axis=1).astype(jnp.float32),
        "w3": params["w3"].astype(jnp.bfloat16),
        "b3": params["b3"].astype(jnp.float32),
    }


def _vmem_budget_bytes():
    cap = 64 * 1024 * 1024                 # conservative default: v7x per-TC VMEM
    try:
        cap = int(pltpu.get_tpu_info().vmem_capacity_bytes)
    except Exception:
        pass
    # always leave >= 16 MiB headroom for Mosaic internal scratch
    return max(cap - 16 * 1024 * 1024, 24 * 1024 * 1024)


def _block_vmem_bytes(block_b, L, D, H, nheads):
    """Conservative per-grid-step VMEM footprint estimate (bytes)."""
    R, BH = block_b * L, block_b * nheads
    l_kv = L if (L <= _KV_CHUNK or (L % _KV_CHUNK) != 0) else _KV_CHUNK
    io = 2 * 2 * R * D * 4                                     # x-in + out, double-buffered
    wts = 2 * 2 * (3 * D * D + D * D + 2 * D * H + H * D)      # bf16 weights (2 bufs worst case)
    bias = 2 * 4 * (4 * D + 3 * D + 2 * H + D)                 # f32 biases / LN params
    act = R * (4 * (10 * D + 2 * H) + 2 * (6 * D + H))         # f32 + bf16 row temporaries
    scores = BH * L * l_kv * (4 + 2)                           # f32 scores + bf16 probs
    return io + wts + bias + act + scores


def _pick_block_b(B, L, D, H, nheads, budget):
    """Largest divisor of B fitting the VMEM budget, keeping >= 2 grid steps
    (both v7x TensorCores busy, and input DMA has pipeline depth)."""
    # TODO(synk): on v5e prefer block_b*L a multiple of 128 (128-deep MXU).
    best = 1
    for d in range(1, B + 1):
        if B % d:
            continue
        if B >= 2 and B // d < 2:
            continue
        if _block_vmem_bytes(d, L, D, H, nheads) <= budget:
            best = d
    return best


def transformer_encoder_block(x, packed, nheads, *, mask=None, block_b=None):
    """x: (B, L, D) float32, packed = pack_params(...).  Returns (out, None)."""
    if mask is not None:
        # TODO(synk): build src/tgt masks in JAX and add them to the scores.
        raise NotImplementedError("attn_mask / key_padding_mask not supported")
    B, L, D = x.shape
    H = packed["w3"].shape[0]
    budget = _vmem_budget_bytes()
    if block_b is None:
        block_b = _pick_block_b(B, L, D, H, nheads, budget)
    assert B % block_b == 0

    consts = [packed[k] for k in ("g1", "be1", "wqkv", "bqkv", "wo", "bo",
                                  "g2", "be2", "w12", "b12", "w3", "b3")]

    def const_spec(a, single_buffer):
        nd = a.ndim
        idx = lambda b, _nd=nd: (0,) * _nd
        if single_buffer:
            # Constant-index weight blocks: one VMEM buffer is enough
            # (halves the weight footprint; matters on 64 MiB v7x VMEM).
            return pl.BlockSpec(a.shape, idx, pipeline_mode=pl.Buffered(1))
        return pl.BlockSpec(a.shape, idx)

    def run(single_buffer_weights):
        in_specs = ([pl.BlockSpec((block_b, L, D), lambda b: (b, 0, 0))]
                    + [const_spec(a, single_buffer_weights) for a in consts])
        out = pl.pallas_call(
            functools.partial(_encoder_kernel, nheads=nheads),
            out_shape=jax.ShapeDtypeStruct((B, L, D), jnp.float32),
            grid_spec=pltpu.PrefetchScalarGridSpec(
                num_scalar_prefetch=0,
                grid=(B // block_b,),
                in_specs=in_specs,
                out_specs=pl.BlockSpec((block_b, L, D), lambda b: (b, 0, 0)),
            ),
            compiler_params=pltpu.CompilerParams(
                dimension_semantics=("parallel",),
                vmem_limit_bytes=int(budget)),
        )(x, *consts)
        return jax.block_until_ready(out)

    try:
        out = run(True)        # single-buffered constant weights
    except Exception:          # pl.Buffered(1) unsupported on this build -> default
        out = run(False)
    return out, None           # need_weights=False -> attn_w is None


# --------------------------- pure-JAX f32 reference ---------------------------
def _reference(x, p, nheads):
    def ln(y, g, b):
        mu = y.mean(-1, keepdims=True)
        var = ((y - mu) ** 2).mean(-1, keepdims=True)
        return (y - mu) / jnp.sqrt(var + EPS) * g + b

    B, L, D = x.shape
    hd = D // nheads
    xn = ln(x, p["g1"], p["be1"])
    q = xn @ p["wq"] + p["bq"]
    k = xn @ p["wk"] + p["bk"]
    v = xn @ p["wv"] + p["bv"]
    q = q.reshape(B, L, nheads, hd).transpose(0, 2, 1, 3) / math.sqrt(hd)
    k = k.reshape(B, L, nheads, hd).transpose(0, 2, 1, 3)
    v = v.reshape(B, L, nheads, hd).transpose(0, 2, 1, 3)
    s = jnp.einsum("bhqd,bhkd->bhqk", q, k)
    a = jax.nn.softmax(s, axis=-1)
    o = jnp.einsum("bhqk,bhkd->bhqd", a, v).transpose(0, 2, 1, 3).reshape(B, L, D)
    o = o @ p["wo"] + p["bo"]
    x1 = xn + o
    x2 = ln(x1, p["g2"], p["be2"])
    h1 = x2 @ p["w1"] + p["b1"]
    h2 = x2 @ p["w2"] + p["b2"]
    ff = (h1 * jax.nn.sigmoid(h1) * h2) @ p["w3"] + p["b3"]
    return x2 + ff


# ------------------------------------ main ------------------------------------
if __name__ == "__main__":
    B, L, D, nheads = 2, 8, 32, 4
    H = 2 * D   # SwiGLU hidden size (assumed)

    key = jax.random.PRNGKey(0)
    ks = jax.random.split(key, 16)
    s = 0.1  # small init scale

    params = {
        "g1": jnp.ones((1, D), jnp.float32),
        "be1": jnp.zeros((1, D), jnp.float32),
        "wq": s * jax.random.normal(ks[0], (D, D), jnp.float32),
        "bq": s * jax.random.normal(ks[1], (1, D), jnp.float32),
        "wk": s * jax.random.normal(ks[2], (D, D), jnp.float32),
        "bk": s * jax.random.normal(ks[3], (1, D), jnp.float32),
        "wv": s * jax.random.normal(ks[4], (D, D), jnp.float32),
        "bv": s * jax.random.normal(ks[5], (1, D), jnp.float32),
        "wo": s * jax.random.normal(ks[6], (D, D), jnp.float32),
        "bo": s * jax.random.normal(ks[7], (1, D), jnp.float32),
        "g2": jnp.ones((1, D), jnp.float32),
        "be2": jnp.zeros((1, D), jnp.float32),
        "w1": s * jax.random.normal(ks[8], (D, H), jnp.float32),
        "b1": s * jax.random.normal(ks[9], (1, H), jnp.float32),
        "w2": s * jax.random.normal(ks[10], (D, H), jnp.float32),
        "b2": s * jax.random.normal(ks[11], (1, H), jnp.float32),
        "w3": s * jax.random.normal(ks[12], (H, D), jnp.float32),
        "b3": s * jax.random.normal(ks[13], (1, D), jnp.float32),
    }

    x = jax.random.normal(ks[14], (B, L, D), jnp.float32)

    packed = pack_params(params, nheads)          # one-time packing
    out, attn_w = transformer_encoder_block(x, packed, nheads)
    out = jax.block_until_ready(out)

    ref = _reference(x, params, nheads)
    assert out.shape == (B, L, D)
    err = float(jnp.max(jnp.abs(out - ref)))
    # bf16 MXU operands with f32 accumulation vs. a pure-f32 reference ->
    # relaxed tolerance appropriate for the bf16 matmul path.
    assert jnp.allclose(out, ref, atol=5e-2, rtol=5e-2), f"max err {err}"

    print("KERNEL_OK")
</pallas_src>

<mosaic_0001>
module attributes {stable_mosaic.version = 11 : i64} {
  func.func @_encoder_kernel(%arg0: i32, %arg1: memref<1x8x32xf32, #tpu.memory_space<vmem>>, %arg2: memref<1x32xf32, #tpu.memory_space<vmem>>, %arg3: memref<1x32xf32, #tpu.memory_space<vmem>>, %arg4: memref<32x96xbf16, #tpu.memory_space<vmem>>, %arg5: memref<1x96xf32, #tpu.memory_space<vmem>>, %arg6: memref<32x32xbf16, #tpu.memory_space<vmem>>, %arg7: memref<1x32xf32, #tpu.memory_space<vmem>>, %arg8: memref<1x32xf32, #tpu.memory_space<vmem>>, %arg9: memref<1x32xf32, #tpu.memory_space<vmem>>, %arg10: memref<32x128xbf16, #tpu.memory_space<vmem>>, %arg11: memref<1x128xf32, #tpu.memory_space<vmem>>, %arg12: memref<64x32xbf16, #tpu.memory_space<vmem>>, %arg13: memref<1x32xf32, #tpu.memory_space<vmem>>, %arg14: memref<1x8x32xf32, #tpu.memory_space<vmem>>) attributes {dimension_semantics = [#tpu.dimension_semantics<parallel>], iteration_bounds = array<i64: 2>, scalar_prefetch = 0 : i64, scratch_operands = 0 : i64, tpu.core_type = #tpu.core_type<tc>, window_params = [{transform_indices = @transform_0, window_bounds = array<i64: 1, 8, 32>}, {pipeline_mode = #tpu.pipeline_mode<synchronous>, transform_indices = @transform_1, window_bounds = array<i64: 1, 32>}, {pipeline_mode = #tpu.pipeline_mode<synchronous>, transform_indices = @transform_2, window_bounds = array<i64: 1, 32>}, {pipeline_mode = #tpu.pipeline_mode<synchronous>, transform_indices = @transform_3, window_bounds = array<i64: 32, 96>}, {pipeline_mode = #tpu.pipeline_mode<synchronous>, transform_indices = @transform_4, window_bounds = array<i64: 1, 96>}, {pipeline_mode = #tpu.pipeline_mode<synchronous>, transform_indices = @transform_5, window_bounds = array<i64: 32, 32>}, {pipeline_mode = #tpu.pipeline_mode<synchronous>, transform_indices = @transform_6, window_bounds = array<i64: 1, 32>}, {pipeline_mode = #tpu.pipeline_mode<synchronous>, transform_indices = @transform_7, window_bounds = array<i64: 1, 32>}, {pipeline_mode = #tpu.pipeline_mode<synchronous>, transform_indices = @transform_8, window_bounds = array<i64: 1, 32>}, {pipeline_mode = #tpu.pipeline_mode<synchronous>, transform_indices = @transform_9, window_bounds = array<i64: 32, 128>}, {pipeline_mode = #tpu.pipeline_mode<synchronous>, transform_indices = @transform_10, window_bounds = array<i64: 1, 128>}, {pipeline_mode = #tpu.pipeline_mode<synchronous>, transform_indices = @transform_11, window_bounds = array<i64: 64, 32>}, {pipeline_mode = #tpu.pipeline_mode<synchronous>, transform_indices = @transform_12, window_bounds = array<i64: 1, 32>}, {transform_indices = @transform_13, window_bounds = array<i64: 1, 8, 32>}]} {
    %c0 = arith.constant 0 : index
    %c0_0 = arith.constant 0 : index
    %c0_1 = arith.constant 0 : index
    %0 = vector.load %arg1[%c0, %c0_0, %c0_1] : memref<1x8x32xf32, #tpu.memory_space<vmem>>, vector<1x8x32xf32>
    %1 = vector.shape_cast %0 : vector<1x8x32xf32> to vector<8x32xf32>
    %c0_2 = arith.constant 0 : index
    %c0_3 = arith.constant 0 : index
    %2 = vector.load %arg2[%c0_2, %c0_3] : memref<1x32xf32, #tpu.memory_space<vmem>>, vector<1x32xf32>
    %c0_4 = arith.constant 0 : index
    %c0_5 = arith.constant 0 : index
    %3 = vector.load %arg3[%c0_4, %c0_5] : memref<1x32xf32, #tpu.memory_space<vmem>>, vector<1x32xf32>
    %cst = arith.constant dense<0.000000e+00> : vector<8xf32>
    %4 = vector.multi_reduction <add>, %1, %cst [1] : vector<8x32xf32> to vector<8xf32>
    %5 = vector.shape_cast %4 : vector<8xf32> to vector<8x1xf32>
    %cst_6 = arith.constant 3.200000e+01 : f32
    %6 = vector.broadcast %cst_6 : f32 to vector<8x1xf32>
    %7 = arith.divf %5, %6 : vector<8x1xf32>
    %8 = vector.broadcast %7 : vector<8x1xf32> to vector<8x32xf32>
    %9 = arith.subf %1, %8 : vector<8x32xf32>
    %10 = arith.mulf %9, %9 : vector<8x32xf32>
    %cst_7 = arith.constant dense<0.000000e+00> : vector<8xf32>
    %11 = vector.multi_reduction <add>, %10, %cst_7 [1] : vector<8x32xf32> to vector<8xf32>
    %12 = vector.shape_cast %11 : vector<8xf32> to vector<8x1xf32>
    %cst_8 = arith.constant 3.200000e+01 : f32
    %13 = vector.broadcast %cst_8 : f32 to vector<8x1xf32>
    %14 = arith.divf %12, %13 : vector<8x1xf32>
    %15 = vector.broadcast %7 : vector<8x1xf32> to vector<8x32xf32>
    %16 = arith.subf %1, %15 : vector<8x32xf32>
    %cst_9 = arith.constant 9.99999974E-6 : f32
    %17 = vector.broadcast %cst_9 : f32 to vector<8x1xf32>
    %18 = arith.addf %14, %17 : vector<8x1xf32>
    %19 = math.rsqrt %18 : vector<8x1xf32>
    %20 = vector.broadcast %19 : vector<8x1xf32> to vector<8x32xf32>
    %21 = arith.mulf %16, %20 : vector<8x32xf32>
    %22 = vector.broadcast %2 : vector<1x32xf32> to vector<8x32xf32>
    %23 = arith.mulf %21, %22 : vector<8x32xf32>
    %24 = vector.broadcast %3 : vector<1x32xf32> to vector<8x32xf32>
    %25 = arith.addf %23, %24 : vector<8x32xf32>
    %26 = arith.truncf %25 : vector<8x32xf32> to vector<8x32xbf16>
    %c0_10 = arith.constant 0 : index
    %c0_11 = arith.constant 0 : index
    %27 = vector.load %arg4[%c0_10, %c0_11] : memref<32x96xbf16, #tpu.memory_space<vmem>>, vector<32x96xbf16>
    %cst_12 = arith.constant dense<0.000000e+00> : vector<8x96xf32>
    %28 = tpu.matmul %26, %27, %cst_12 {dimension_numbers = #tpu.dot_dimension_numbers<[1], [0], [0], [1], [0, 0, 1, 1], [], []>} : vector<8x32xbf16>, vector<32x96xbf16>, vector<8x96xf32> -> vector<8x96xf32>
    %c0_13 = arith.constant 0 : index
    %c0_14 = arith.constant 0 : index
    %29 = vector.load %arg5[%c0_13, %c0_14] : memref<1x96xf32, #tpu.memory_space<vmem>>, vector<1x96xf32>
    %30 = vector.broadcast %29 : vector<1x96xf32> to vector<8x96xf32>
    %31 = arith.addf %28, %30 : vector<8x96xf32>
    %32 = arith.truncf %31 : vector<8x96xf32> to vector<8x96xbf16>
    %33 = vector.extract_strided_slice %32 {offsets = [0, 0], sizes = [8, 8], strides = [1, 1]} : vector<8x96xbf16> to vector<8x8xbf16>
    %34 = vector.shape_cast %33 : vector<8x8xbf16> to vector<1x8x8xbf16>
    %35 = vector.extract_strided_slice %32 {offsets = [0, 8], sizes = [8, 8], strides = [1, 1]} : vector<8x96xbf16> to vector<8x8xbf16>
    %36 = vector.shape_cast %35 : vector<8x8xbf16> to vector<1x8x8xbf16>
    %37 = vector.extract_strided_slice %32 {offsets = [0, 16], sizes = [8, 8], strides = [1, 1]} : vector<8x96xbf16> to vector<8x8xbf16>
    %38 = vector.shape_cast %37 : vector<8x8xbf16> to vector<1x8x8xbf16>
    %39 = vector.extract_strided_slice %32 {offsets = [0, 24], sizes = [8, 8], strides = [1, 1]} : vector<8x96xbf16> to vector<8x8xbf16>
    %40 = vector.shape_cast %39 : vector<8x8xbf16> to vector<1x8x8xbf16>
    %41 = tpu.concatenate %34, %36, %38, %40 in 0 : vector<1x8x8xbf16>, vector<1x8x8xbf16>, vector<1x8x8xbf16>, vector<1x8x8xbf16> -> vector<4x8x8xbf16>
    %42 = vector.extract_strided_slice %32 {offsets = [0, 32], sizes = [8, 8], strides = [1, 1]} : vector<8x96xbf16> to vector<8x8xbf16>
    %43 = vector.shape_cast %42 : vector<8x8xbf16> to vector<1x8x8xbf16>
    %44 = vector.extract_strided_slice %32 {offsets = [0, 40], sizes = [8, 8], strides = [1, 1]} : vector<8x96xbf16> to vector<8x8xbf16>
    %45 = vector.shape_cast %44 : vector<8x8xbf16> to vector<1x8x8xbf16>
    %46 = vector.extract_strided_slice %32 {offsets = [0, 48], sizes = [8, 8], strides = [1, 1]} : vector<8x96xbf16> to vector<8x8xbf16>
    %47 = vector.shape_cast %46 : vector<8x8xbf16> to vector<1x8x8xbf16>
    %48 = vector.extract_strided_slice %32 {offsets = [0, 56], sizes = [8, 8], strides = [1, 1]} : vector<8x96xbf16> to vector<8x8xbf16>
    %49 = vector.shape_cast %48 : vector<8x8xbf16> to vector<1x8x8xbf16>
    %50 = tpu.concatenate %43, %45, %47, %49 in 0 : vector<1x8x8xbf16>, vector<1x8x8xbf16>, vector<1x8x8xbf16>, vector<1x8x8xbf16> -> vector<4x8x8xbf16>
    %51 = vector.extract_strided_slice %32 {offsets = [0, 64], sizes = [8, 8], strides = [1, 1]} : vector<8x96xbf16> to vector<8x8xbf16>
    %52 = vector.shape_cast %51 : vector<8x8xbf16> to vector<1x8x8xbf16>
    %53 = vector.extract_strided_slice %32 {offsets = [0, 72], sizes = [8, 8], strides = [1, 1]} : vector<8x96xbf16> to vector<8x8xbf16>
    %54 = vector.shape_cast %53 : vector<8x8xbf16> to vector<1x8x8xbf16>
    %55 = vector.extract_strided_slice %32 {offsets = [0, 80], sizes = [8, 8], strides = [1, 1]} : vector<8x96xbf16> to vector<8x8xbf16>
    %56 = vector.shape_cast %55 : vector<8x8xbf16> to vector<1x8x8xbf16>
    %57 = vector.extract_strided_slice %32 {offsets = [0, 88], sizes = [8, 8], strides = [1, 1]} : vector<8x96xbf16> to vector<8x8xbf16>
    %58 = vector.shape_cast %57 : vector<8x8xbf16> to vector<1x8x8xbf16>
    %59 = tpu.concatenate %52, %54, %56, %58 in 0 : vector<1x8x8xbf16>, vector<1x8x8xbf16>, vector<1x8x8xbf16>, vector<1x8x8xbf16> -> vector<4x8x8xbf16>
    "tpu.trace_start"() <{level = 10 : i32, message = "bqd,bkd->bqk"}> : () -> ()
    %cst_15 = arith.constant dense<0.000000e+00> : vector<4x8x8xf32>
    %60 = tpu.matmul %41, %50, %cst_15 {dimension_numbers = #tpu.dot_dimension_numbers<[2], [2], [1], [1], [0, 0, 0, 1, 1, 1], [0], [0]>} : vector<4x8x8xbf16>, vector<4x8x8xbf16>, vector<4x8x8xf32> -> vector<4x8x8xf32>
    "tpu.trace_stop"() : () -> ()
    %cst_16 = arith.constant dense<0xFF800000> : vector<4x8xf32>
    %61 = vector.multi_reduction <maximumf>, %60, %cst_16 [2] : vector<4x8x8xf32> to vector<4x8xf32>
    %62 = vector.shape_cast %61 : vector<4x8xf32> to vector<4x8x1xf32>
    %63 = vector.broadcast %62 : vector<4x8x1xf32> to vector<4x8x8xf32>
    %64 = arith.subf %60, %63 : vector<4x8x8xf32>
    %65 = math.exp %64 : vector<4x8x8xf32>
    %cst_17 = arith.constant dense<0.000000e+00> : vector<4x8xf32>
    %66 = vector.multi_reduction <add>, %65, %cst_17 [2] : vector<4x8x8xf32> to vector<4x8xf32>
    %67 = vector.shape_cast %66 : vector<4x8xf32> to vector<4x8x1xf32>
    %68 = arith.truncf %65 : vector<4x8x8xf32> to vector<4x8x8xbf16>
    "tpu.trace_start"() <{level = 10 : i32, message = "bqk,bkd->bqd"}> : () -> ()
    %cst_18 = arith.constant dense<0.000000e+00> : vector<4x8x8xf32>
    %69 = tpu.matmul %68, %59, %cst_18 {dimension_numbers = #tpu.dot_dimension_numbers<[2], [1], [1], [2], [0, 0, 0, 1, 1, 2], [0], [0]>} : vector<4x8x8xbf16>, vector<4x8x8xbf16>, vector<4x8x8xf32> -> vector<4x8x8xf32>
    "tpu.trace_stop"() : () -> ()
    %70 = tpu.reciprocal %67 {approx = true} : vector<4x8x1xf32> -> vector<4x8x1xf32>
    %71 = vector.broadcast %70 : vector<4x8x1xf32> to vector<4x8x8xf32>
    %72 = arith.mulf %69, %71 : vector<4x8x8xf32>
    %73 = vector.extract_strided_slice %72 {offsets = [0, 0, 0], sizes = [1, 8, 8], strides = [1, 1, 1]} : vector<4x8x8xf32> to vector<1x8x8xf32>
    %74 = vector.shape_cast %73 : vector<1x8x8xf32> to vector<8x8xf32>
    %75 = vector.extract_strided_slice %72 {offsets = [1, 0, 0], sizes = [1, 8, 8], strides = [1, 1, 1]} : vector<4x8x8xf32> to vector<1x8x8xf32>
    %76 = vector.shape_cast %75 : vector<1x8x8xf32> to vector<8x8xf32>
    %77 = vector.extract_strided_slice %72 {offsets = [2, 0, 0], sizes = [1, 8, 8], strides = [1, 1, 1]} : vector<4x8x8xf32> to vector<1x8x8xf32>
    %78 = vector.shape_cast %77 : vector<1x8x8xf32> to vector<8x8xf32>
    %79 = vector.extract_strided_slice %72 {offsets = [3, 0, 0], sizes = [1, 8, 8], strides = [1, 1, 1]} : vector<4x8x8xf32> to vector<1x8x8xf32>
    %80 = vector.shape_cast %79 : vector<1x8x8xf32> to vector<8x8xf32>
    %81 = tpu.concatenate %74, %76, %78, %80 in 1 : vector<8x8xf32>, vector<8x8xf32>, vector<8x8xf32>, vector<8x8xf32> -> vector<8x32xf32>
    %82 = arith.truncf %81 : vector<8x32xf32> to vector<8x32xbf16>
    %c0_19 = arith.constant 0 : index
    %c0_20 = arith.constant 0 : index
    %83 = vector.load %arg6[%c0_19, %c0_20] : memref<32x32xbf16, #tpu.memory_space<vmem>>, vector<32x32xbf16>
    %cst_21 = arith.constant dense<0.000000e+00> : vector<8x32xf32>
    %84 = tpu.matmul %82, %83, %cst_21 {dimension_numbers = #tpu.dot_dimension_numbers<[1], [0], [0], [1], [0, 0, 1, 1], [], []>} : vector<8x32xbf16>, vector<32x32xbf16>, vector<8x32xf32> -> vector<8x32xf32>
    %c0_22 = arith.constant 0 : index
    %c0_23 = arith.constant 0 : index
    %85 = vector.load %arg7[%c0_22, %c0_23] : memref<1x32xf32, #tpu.memory_space<vmem>>, vector<1x32xf32>
    %86 = vector.broadcast %85 : vector<1x32xf32> to vector<8x32xf32>
    %87 = arith.addf %84, %86 : vector<8x32xf32>
    %88 = arith.addf %25, %87 : vector<8x32xf32>
    %c0_24 = arith.constant 0 : index
    %c0_25 = arith.constant 0 : index
    %89 = vector.load %arg8[%c0_24, %c0_25] : memref<1x32xf32, #tpu.memory_space<vmem>>, vector<1x32xf32>
    %c0_26 = arith.constant 0 : index
    %c0_27 = arith.constant 0 : index
    %90 = vector.load %arg9[%c0_26, %c0_27] : memref<1x32xf32, #tpu.memory_space<vmem>>, vector<1x32xf32>
    %cst_28 = arith.constant dense<0.000000e+00> : vector<8xf32>
    %91 = vector.multi_reduction <add>, %88, %cst_28 [1] : vector<8x32xf32> to vector<8xf32>
    %92 = vector.shape_cast %91 : vector<8xf32> to vector<8x1xf32>
    %cst_29 = arith.constant 3.200000e+01 : f32
    %93 = vector.broadcast %cst_29 : f32 to vector<8x1xf32>
    %94 = arith.divf %92, %93 : vector<8x1xf32>
    %95 = vector.broadcast %94 : vector<8x1xf32> to vector<8x32xf32>
    %96 = arith.subf %88, %95 : vector<8x32xf32>
    %97 = arith.mulf %96, %96 : vector<8x32xf32>
    %cst_30 = arith.constant dense<0.000000e+00> : vector<8xf32>
    %98 = vector.multi_reduction <add>, %97, %cst_30 [1] : vector<8x32xf32> to vector<8xf32>
    %99 = vector.shape_cast %98 : vector<8xf32> to vector<8x1xf32>
    %cst_31 = arith.constant 3.200000e+01 : f32
    %100 = vector.broadcast %cst_31 : f32 to vector<8x1xf32>
    %101 = arith.divf %99, %100 : vector<8x1xf32>
    %102 = vector.broadcast %94 : vector<8x1xf32> to vector<8x32xf32>
    %103 = arith.subf %88, %102 : vector<8x32xf32>
    %cst_32 = arith.constant 9.99999974E-6 : f32
    %104 = vector.broadcast %cst_32 : f32 to vector<8x1xf32>
    %105 = arith.addf %101, %104 : vector<8x1xf32>
    %106 = math.rsqrt %105 : vector<8x1xf32>
    %107 = vector.broadcast %106 : vector<8x1xf32> to vector<8x32xf32>
    %108 = arith.mulf %103, %107 : vector<8x32xf32>
    %109 = vector.broadcast %89 : vector<1x32xf32> to vector<8x32xf32>
    %110 = arith.mulf %108, %109 : vector<8x32xf32>
    %111 = vector.broadcast %90 : vector<1x32xf32> to vector<8x32xf32>
    %112 = arith.addf %110, %111 : vector<8x32xf32>
    %113 = arith.truncf %112 : vector<8x32xf32> to vector<8x32xbf16>
    %c0_33 = arith.constant 0 : index
    %c0_34 = arith.constant 0 : index
    %114 = vector.load %arg10[%c0_33, %c0_34] : memref<32x128xbf16, #tpu.memory_space<vmem>>, vector<32x128xbf16>
    %cst_35 = arith.constant dense<0.000000e+00> : vector<8x128xf32>
    %115 = tpu.matmul %113, %114, %cst_35 {dimension_numbers = #tpu.dot_dimension_numbers<[1], [0], [0], [1], [0, 0, 1, 1], [], []>} : vector<8x32xbf16>, vector<32x128xbf16>, vector<8x128xf32> -> vector<8x128xf32>
    %c0_36 = arith.constant 0 : index
    %c0_37 = arith.constant 0 : index
    %116 = vector.load %arg11[%c0_36, %c0_37] : memref<1x128xf32, #tpu.memory_space<vmem>>, vector<1x128xf32>
    %117 = vector.broadcast %116 : vector<1x128xf32> to vector<8x128xf32>
    %118 = arith.addf %115, %117 : vector<8x128xf32>
    %119 = vector.extract_strided_slice %118 {offsets = [0, 0], sizes = [8, 64], strides = [1, 1]} : vector<8x128xf32> to vector<8x64xf32>
    %120 = vector.extract_strided_slice %118 {offsets = [0, 64], sizes = [8, 64], strides = [1, 1]} : vector<8x128xf32> to vector<8x64xf32>
    %121 = arith.negf %119 : vector<8x64xf32>
    %122 = math.exp %121 : vector<8x64xf32>
    %cst_38 = arith.constant 1.000000e+00 : f32
    %123 = vector.broadcast %cst_38 : f32 to vector<8x64xf32>
    %124 = arith.addf %123, %122 : vector<8x64xf32>
    %125 = arith.divf %123, %124 : vector<8x64xf32>
    %126 = arith.mulf %119, %125 : vector<8x64xf32>
    %127 = arith.mulf %126, %120 : vector<8x64xf32>
    %128 = arith.truncf %127 : vector<8x64xf32> to vector<8x64xbf16>
    %c0_39 = arith.constant 0 : index
    %c0_40 = arith.constant 0 : index
    %129 = vector.load %arg12[%c0_39, %c0_40] : memref<64x32xbf16, #tpu.memory_space<vmem>>, vector<64x32xbf16>
    %cst_41 = arith.constant dense<0.000000e+00> : vector<8x32xf32>
    %130 = tpu.matmul %128, %129, %cst_41 {dimension_numbers = #tpu.dot_dimension_numbers<[1], [0], [0], [1], [0, 0, 1, 1], [], []>} : vector<8x64xbf16>, vector<64x32xbf16>, vector<8x32xf32> -> vector<8x32xf32>
    %c0_42 = arith.constant 0 : index
    %c0_43 = arith.constant 0 : index
    %131 = vector.load %arg13[%c0_42, %c0_43] : memref<1x32xf32, #tpu.memory_space<vmem>>, vector<1x32xf32>
    %132 = vector.broadcast %131 : vector<1x32xf32> to vector<8x32xf32>
    %133 = arith.addf %130, %132 : vector<8x32xf32>
    %134 = arith.addf %112, %133 : vector<8x32xf32>
    %135 = vector.shape_cast %134 : vector<8x32xf32> to vector<1x8x32xf32>
    %c0_44 = arith.constant 0 : index
    %c0_45 = arith.constant 0 : index
    %c0_46 = arith.constant 0 : index
    %136 = vector.load %arg14[%c0_44, %c0_45, %c0_46] : memref<1x8x32xf32, #tpu.memory_space<vmem>>, vector<1x8x32xf32>
    tpu.vector_store %arg14[%c0_44, %c0_45, %c0_46], %135 {strides = array<i32>} : memref<1x8x32xf32, #tpu.memory_space<vmem>>, vector<1x8x32xf32>,
    return
  }
  func.func @transform_0(%arg0: i32) -> (i32, i32, i32) {
    %c0_i32 = arith.constant 0 : i32
    %c0_i32_0 = arith.constant 0 : i32
    %c0_i32_1 = arith.constant 0 : i32
    return %arg0, %c0_i32, %c0_i32_0 : i32, i32, i32
  }
  func.func @transform_1(%arg0: i32) -> (i32, i32) {
    %c0_i32 = arith.constant 0 : i32
    %c0_i32_0 = arith.constant 0 : i32
    %c0_i32_1 = arith.constant 0 : i32
    return %c0_i32, %c0_i32_0 : i32, i32
  }
  func.func @transform_2(%arg0: i32) -> (i32, i32) {
    %c0_i32 = arith.constant 0 : i32
    %c0_i32_0 = arith.constant 0 : i32
    %c0_i32_1 = arith.constant 0 : i32
    return %c0_i32, %c0_i32_0 : i32, i32
  }
  func.func @transform_3(%arg0: i32) -> (i32, i32) {
    %c0_i32 = arith.constant 0 : i32
    %c0_i32_0 = arith.constant 0 : i32
    %c0_i32_1 = arith.constant 0 : i32
    return %c0_i32, %c0_i32_0 : i32, i32
  }
  func.func @transform_4(%arg0: i32) -> (i32, i32) {
    %c0_i32 = arith.constant 0 : i32
    %c0_i32_0 = arith.constant 0 : i32
    %c0_i32_1 = arith.constant 0 : i32
    return %c0_i32, %c0_i32_0 : i32, i32
  }
  func.func @transform_5(%arg0: i32) -> (i32, i32) {
    %c0_i32 = arith.constant 0 : i32
    %c0_i32_0 = arith.constant 0 : i32
    %c0_i32_1 = arith.constant 0 : i32
    return %c0_i32, %c0_i32_0 : i32, i32
  }
  func.func @transform_6(%arg0: i32) -> (i32, i32) {
    %c0_i32 = arith.constant 0 : i32
    %c0_i32_0 = arith.constant 0 : i32
    %c0_i32_1 = arith.constant 0 : i32
    return %c0_i32, %c0_i32_0 : i32, i32
  }
  func.func @transform_7(%arg0: i32) -> (i32, i32) {
    %c0_i32 = arith.constant 0 : i32
    %c0_i32_0 = arith.constant 0 : i32
    %c0_i32_1 = arith.constant 0 : i32
    return %c0_i32, %c0_i32_0 : i32, i32
  }
  func.func @transform_8(%arg0: i32) -> (i32, i32) {
    %c0_i32 = arith.constant 0 : i32
    %c0_i32_0 = arith.constant 0 : i32
    %c0_i32_1 = arith.constant 0 : i32
    return %c0_i32, %c0_i32_0 : i32, i32
  }
  func.func @transform_9(%arg0: i32) -> (i32, i32) {
    %c0_i32 = arith.constant 0 : i32
    %c0_i32_0 = arith.constant 0 : i32
    %c0_i32_1 = arith.constant 0 : i32
    return %c0_i32, %c0_i32_0 : i32, i32
  }
  func.func @transform_10(%arg0: i32) -> (i32, i32) {
    %c0_i32 = arith.constant 0 : i32
    %c0_i32_0 = arith.constant 0 : i32
    %c0_i32_1 = arith.constant 0 : i32
    return %c0_i32, %c0_i32_0 : i32, i32
  }
  func.func @transform_11(%arg0: i32) -> (i32, i32) {
    %c0_i32 = arith.constant 0 : i32
    %c0_i32_0 = arith.constant 0 : i32
    %c0_i32_1 = arith.constant 0 : i32
    return %c0_i32, %c0_i32_0 : i32, i32
  }
  func.func @transform_12(%arg0: i32) -> (i32, i32) {
    %c0_i32 = arith.constant 0 : i32
    %c0_i32_0 = arith.constant 0 : i32
    %c0_i32_1 = arith.constant 0 : i32
    return %c0_i32, %c0_i32_0 : i32, i32
  }
  func.func @transform_13(%arg0: i32) -> (i32, i32, i32) {
    %c0_i32 = arith.constant 0 : i32
    %c0_i32_0 = arith.constant 0 : i32
    %c0_i32_1 = arith.constant 0 : i32
    return %arg0, %c0_i32, %c0_i32_0 : i32, i32, i32
  }
}

module attributes {stable_mosaic.version = 11 : i64} {
  func.func @_encoder_kernel(%arg0: i32, %arg1: memref<1x8x32xf32, #tpu.memory_space<vmem>>, %arg2: memref<1x32xf32, #tpu.memory_space<vmem>>, %arg3: memref<1x32xf32, #tpu.memory_space<vmem>>, %arg4: memref<32x96xbf16, #tpu.memory_space<vmem>>, %arg5: memref<1x96xf32, #tpu.memory_space<vmem>>, %arg6: memref<32x32xbf16, #tpu.memory_space<vmem>>, %arg7: memref<1x32xf32, #tpu.memory_space<vmem>>, %arg8: memref<1x32xf32, #tpu.memory_space<vmem>>, %arg9: memref<1x32xf32, #tpu.memory_space<vmem>>, %arg10: memref<32x128xbf16, #tpu.memory_space<vmem>>, %arg11: memref<1x128xf32, #tpu.memory_space<vmem>>, %arg12: memref<64x32xbf16, #tpu.memory_space<vmem>>, %arg13: memref<1x32xf32, #tpu.memory_space<vmem>>, %arg14: memref<1x8x32xf32, #tpu.memory_space<vmem>>) attributes {dimension_semantics = [#tpu.dimension_semantics<parallel>], iteration_bounds = array<i64: 2>, scalar_prefetch = 0 : i64, scratch_operands = 0 : i64, tpu.core_type = #tpu.core_type<tc>, window_params = [{transform_indices = @transform_0, window_bounds = array<i64: 1, 8, 32>}, {pipeline_mode = #tpu.pipeline_mode<synchronous>, transform_indices = @transform_1, window_bounds = array<i64: 1, 32>}, {pipeline_mode = #tpu.pipeline_mode<synchronous>, transform_indices = @transform_2, window_bounds = array<i64: 1, 32>}, {pipeline_mode = #tpu.pipeline_mode<synchronous>, transform_indices = @transform_3, window_bounds = array<i64: 32, 96>}, {pipeline_mode = #tpu.pipeline_mode<synchronous>, transform_indices = @transform_4, window_bounds = array<i64: 1, 96>}, {pipeline_mode = #tpu.pipeline_mode<synchronous>, transform_indices = @transform_5, window_bounds = array<i64: 32, 32>}, {pipeline_mode = #tpu.pipeline_mode<synchronous>, transform_indices = @transform_6, window_bounds = array<i64: 1, 32>}, {pipeline_mode = #tpu.pipeline_mode<synchronous>, transform_indices = @transform_7, window_bounds = array<i64: 1, 32>}, {pipeline_mode = #tpu.pipeline_mode<synchronous>, transform_indices = @transform_8, window_bounds = array<i64: 1, 32>}, {pipeline_mode = #tpu.pipeline_mode<synchronous>, transform_indices = @transform_9, window_bounds = array<i64: 32, 128>}, {pipeline_mode = #tpu.pipeline_mode<synchronous>, transform_indices = @transform_10, window_bounds = array<i64: 1, 128>}, {pipeline_mode = #tpu.pipeline_mode<synchronous>, transform_indices = @transform_11, window_bounds = array<i64: 64, 32>}, {pipeline_mode = #tpu.pipeline_mode<synchronous>, transform_indices = @transform_12, window_bounds = array<i64: 1, 32>}, {transform_indices = @transform_13, window_bounds = array<i64: 1, 8, 32>}]} {
    %c0 = arith.constant 0 : index
    %c0_0 = arith.constant 0 : index
    %c0_1 = arith.constant 0 : index
    %0 = vector.load %arg1[%c0, %c0_0, %c0_1] : memref<1x8x32xf32, #tpu.memory_space<vmem>>, vector<1x8x32xf32>
    %1 = vector.shape_cast %0 : vector<1x8x32xf32> to vector<8x32xf32>
    %c0_2 = arith.constant 0 : index
    %c0_3 = arith.constant 0 : index
    %2 = vector.load %arg2[%c0_2, %c0_3] : memref<1x32xf32, #tpu.memory_space<vmem>>, vector<1x32xf32>
    %c0_4 = arith.constant 0 : index
    %c0_5 = arith.constant 0 : index
    %3 = vector.load %arg3[%c0_4, %c0_5] : memref<1x32xf32, #tpu.memory_space<vmem>>, vector<1x32xf32>
    %cst = arith.constant dense<0.000000e+00> : vector<8xf32>
    %4 = vector.multi_reduction <add>, %1, %cst [1] : vector<8x32xf32> to vector<8xf32>
    %5 = vector.shape_cast %4 : vector<8xf32> to vector<8x1xf32>
    %cst_6 = arith.constant 3.200000e+01 : f32
    %6 = vector.broadcast %cst_6 : f32 to vector<8x1xf32>
    %7 = arith.divf %5, %6 : vector<8x1xf32>
    %8 = vector.broadcast %7 : vector<8x1xf32> to vector<8x32xf32>
    %9 = arith.subf %1, %8 : vector<8x32xf32>
    %10 = arith.mulf %9, %9 : vector<8x32xf32>
    %cst_7 = arith.constant dense<0.000000e+00> : vector<8xf32>
    %11 = vector.multi_reduction <add>, %10, %cst_7 [1] : vector<8x32xf32> to vector<8xf32>
    %12 = vector.shape_cast %11 : vector<8xf32> to vector<8x1xf32>
    %cst_8 = arith.constant 3.200000e+01 : f32
    %13 = vector.broadcast %cst_8 : f32 to vector<8x1xf32>
    %14 = arith.divf %12, %13 : vector<8x1xf32>
    %15 = vector.broadcast %7 : vector<8x1xf32> to vector<8x32xf32>
    %16 = arith.subf %1, %15 : vector<8x32xf32>
    %cst_9 = arith.constant 9.99999974E-6 : f32
    %17 = vector.broadcast %cst_9 : f32 to vector<8x1xf32>
    %18 = arith.addf %14, %17 : vector<8x1xf32>
    %19 = math.rsqrt %18 : vector<8x1xf32>
    %20 = vector.broadcast %19 : vector<8x1xf32> to vector<8x32xf32>
    %21 = arith.mulf %16, %20 : vector<8x32xf32>
    %22 = vector.broadcast %2 : vector<1x32xf32> to vector<8x32xf32>
    %23 = arith.mulf %21, %22 : vector<8x32xf32>
    %24 = vector.broadcast %3 : vector<1x32xf32> to vector<8x32xf32>
    %25 = arith.addf %23, %24 : vector<8x32xf32>
    %26 = arith.truncf %25 : vector<8x32xf32> to vector<8x32xbf16>
    %c0_10 = arith.constant 0 : index
    %c0_11 = arith.constant 0 : index
    %27 = vector.load %arg4[%c0_10, %c0_11] : memref<32x96xbf16, #tpu.memory_space<vmem>>, vector<32x96xbf16>
    %cst_12 = arith.constant dense<0.000000e+00> : vector<8x96xf32>
    %28 = tpu.matmul %26, %27, %cst_12 {dimension_numbers = #tpu.dot_dimension_numbers<[1], [0], [0], [1], [0, 0, 1, 1], [], []>} : vector<8x32xbf16>, vector<32x96xbf16>, vector<8x96xf32> -> vector<8x96xf32>
    %c0_13 = arith.constant 0 : index
    %c0_14 = arith.constant 0 : index
    %29 = vector.load %arg5[%c0_13, %c0_14] : memref<1x96xf32, #tpu.memory_space<vmem>>, vector<1x96xf32>
    %30 = vector.broadcast %29 : vector<1x96xf32> to vector<8x96xf32>
    %31 = arith.addf %28, %30 : vector<8x96xf32>
    %32 = arith.truncf %31 : vector<8x96xf32> to vector<8x96xbf16>
    %33 = vector.extract_strided_slice %32 {offsets = [0, 0], sizes = [8, 8], strides = [1, 1]} : vector<8x96xbf16> to vector<8x8xbf16>
    %34 = vector.shape_cast %33 : vector<8x8xbf16> to vector<1x8x8xbf16>
    %35 = vector.extract_strided_slice %32 {offsets = [0, 8], sizes = [8, 8], strides = [1, 1]} : vector<8x96xbf16> to vector<8x8xbf16>
    %36 = vector.shape_cast %35 : vector<8x8xbf16> to vector<1x8x8xbf16>
    %37 = vector.extract_strided_slice %32 {offsets = [0, 16], sizes = [8, 8], strides = [1, 1]} : vector<8x96xbf16> to vector<8x8xbf16>
    %38 = vector.shape_cast %37 : vector<8x8xbf16> to vector<1x8x8xbf16>
    %39 = vector.extract_strided_slice %32 {offsets = [0, 24], sizes = [8, 8], strides = [1, 1]} : vector<8x96xbf16> to vector<8x8xbf16>
    %40 = vector.shape_cast %39 : vector<8x8xbf16> to vector<1x8x8xbf16>
    %41 = tpu.concatenate %34, %36, %38, %40 in 0 : vector<1x8x8xbf16>, vector<1x8x8xbf16>, vector<1x8x8xbf16>, vector<1x8x8xbf16> -> vector<4x8x8xbf16>
    %42 = vector.extract_strided_slice %32 {offsets = [0, 32], sizes = [8, 8], strides = [1, 1]} : vector<8x96xbf16> to vector<8x8xbf16>
    %43 = vector.shape_cast %42 : vector<8x8xbf16> to vector<1x8x8xbf16>
    %44 = vector.extract_strided_slice %32 {offsets = [0, 40], sizes = [8, 8], strides = [1, 1]} : vector<8x96xbf16> to vector<8x8xbf16>
    %45 = vector.shape_cast %44 : vector<8x8xbf16> to vector<1x8x8xbf16>
    %46 = vector.extract_strided_slice %32 {offsets = [0, 48], sizes = [8, 8], strides = [1, 1]} : vector<8x96xbf16> to vector<8x8xbf16>
    %47 = vector.shape_cast %46 : vector<8x8xbf16> to vector<1x8x8xbf16>
    %48 = vector.extract_strided_slice %32 {offsets = [0, 56], sizes = [8, 8], strides = [1, 1]} : vector<8x96xbf16> to vector<8x8xbf16>
    %49 = vector.shape_cast %48 : vector<8x8xbf16> to vector<1x8x8xbf16>
    %50 = tpu.concatenate %43, %45, %47, %49 in 0 : vector<1x8x8xbf16>, vector<1x8x8xbf16>, vector<1x8x8xbf16>, vector<1x8x8xbf16> -> vector<4x8x8xbf16>
    %51 = vector.extract_strided_slice %32 {offsets = [0, 64], sizes = [8, 8], strides = [1, 1]} : vector<8x96xbf16> to vector<8x8xbf16>
    %52 = vector.shape_cast %51 : vector<8x8xbf16> to vector<1x8x8xbf16>
    %53 = vector.extract_strided_slice %32 {offsets = [0, 72], sizes = [8, 8], strides = [1, 1]} : vector<8x96xbf16> to vector<8x8xbf16>
    %54 = vector.shape_cast %53 : vector<8x8xbf16> to vector<1x8x8xbf16>
    %55 = vector.extract_strided_slice %32 {offsets = [0, 80], sizes = [8, 8], strides = [1, 1]} : vector<8x96xbf16> to vector<8x8xbf16>
    %56 = vector.shape_cast %55 : vector<8x8xbf16> to vector<1x8x8xbf16>
    %57 = vector.extract_strided_slice %32 {offsets = [0, 88], sizes = [8, 8], strides = [1, 1]} : vector<8x96xbf16> to vector<8x8xbf16>
    %58 = vector.shape_cast %57 : vector<8x8xbf16> to vector<1x8x8xbf16>
    %59 = tpu.concatenate %52, %54, %56, %58 in 0 : vector<1x8x8xbf16>, vector<1x8x8xbf16>, vector<1x8x8xbf16>, vector<1x8x8xbf16> -> vector<4x8x8xbf16>
    "tpu.trace_start"() <{level = 10 : i32, message = "bqd,bkd->bqk"}> : () -> ()
    %cst_15 = arith.constant dense<0.000000e+00> : vector<4x8x8xf32>
    %60 = tpu.matmul %41, %50, %cst_15 {dimension_numbers = #tpu.dot_dimension_numbers<[2], [2], [1], [1], [0, 0, 0, 1, 1, 1], [0], [0]>} : vector<4x8x8xbf16>, vector<4x8x8xbf16>, vector<4x8x8xf32> -> vector<4x8x8xf32>
    "tpu.trace_stop"() : () -> ()
    %cst_16 = arith.constant dense<0xFF800000> : vector<4x8xf32>
    %61 = vector.multi_reduction <maximumf>, %60, %cst_16 [2] : vector<4x8x8xf32> to vector<4x8xf32>
    %62 = vector.shape_cast %61 : vector<4x8xf32> to vector<4x8x1xf32>
    %63 = vector.broadcast %62 : vector<4x8x1xf32> to vector<4x8x8xf32>
    %64 = arith.subf %60, %63 : vector<4x8x8xf32>
    %65 = math.exp %64 : vector<4x8x8xf32>
    %cst_17 = arith.constant dense<0.000000e+00> : vector<4x8xf32>
    %66 = vector.multi_reduction <add>, %65, %cst_17 [2] : vector<4x8x8xf32> to vector<4x8xf32>
    %67 = vector.shape_cast %66 : vector<4x8xf32> to vector<4x8x1xf32>
    %68 = arith.truncf %65 : vector<4x8x8xf32> to vector<4x8x8xbf16>
    "tpu.trace_start"() <{level = 10 : i32, message = "bqk,bkd->bqd"}> : () -> ()
    %cst_18 = arith.constant dense<0.000000e+00> : vector<4x8x8xf32>
    %69 = tpu.matmul %68, %59, %cst_18 {dimension_numbers = #tpu.dot_dimension_numbers<[2], [1], [1], [2], [0, 0, 0, 1, 1, 2], [0], [0]>} : vector<4x8x8xbf16>, vector<4x8x8xbf16>, vector<4x8x8xf32> -> vector<4x8x8xf32>
    "tpu.trace_stop"() : () -> ()
    %70 = tpu.reciprocal %67 {approx = true} : vector<4x8x1xf32> -> vector<4x8x1xf32>
    %71 = vector.broadcast %70 : vector<4x8x1xf32> to vector<4x8x8xf32>
    %72 = arith.mulf %69, %71 : vector<4x8x8xf32>
    %73 = vector.extract_strided_slice %72 {offsets = [0, 0, 0], sizes = [1, 8, 8], strides = [1, 1, 1]} : vector<4x8x8xf32> to vector<1x8x8xf32>
    %74 = vector.shape_cast %73 : vector<1x8x8xf32> to vector<8x8xf32>
    %75 = vector.extract_strided_slice %72 {offsets = [1, 0, 0], sizes = [1, 8, 8], strides = [1, 1, 1]} : vector<4x8x8xf32> to vector<1x8x8xf32>
    %76 = vector.shape_cast %75 : vector<1x8x8xf32> to vector<8x8xf32>
    %77 = vector.extract_strided_slice %72 {offsets = [2, 0, 0], sizes = [1, 8, 8], strides = [1, 1, 1]} : vector<4x8x8xf32> to vector<1x8x8xf32>
    %78 = vector.shape_cast %77 : vector<1x8x8xf32> to vector<8x8xf32>
    %79 = vector.extract_strided_slice %72 {offsets = [3, 0, 0], sizes = [1, 8, 8], strides = [1, 1, 1]} : vector<4x8x8xf32> to vector<1x8x8xf32>
    %80 = vector.shape_cast %79 : vector<1x8x8xf32> to vector<8x8xf32>
    %81 = tpu.concatenate %74, %76, %78, %80 in 1 : vector<8x8xf32>, vector<8x8xf32>, vector<8x8xf32>, vector<8x8xf32> -> vector<8x32xf32>
    %82 = arith.truncf %81 : vector<8x32xf32> to vector<8x32xbf16>
    %c0_19 = arith.constant 0 : index
    %c0_20 = arith.constant 0 : index
    %83 = vector.load %arg6[%c0_19, %c0_20] : memref<32x32xbf16, #tpu.memory_space<vmem>>, vector<32x32xbf16>
    %cst_21 = arith.constant dense<0.000000e+00> : vector<8x32xf32>
    %84 = tpu.matmul %82, %83, %cst_21 {dimension_numbers = #tpu.dot_dimension_numbers<[1], [0], [0], [1], [0, 0, 1, 1], [], []>} : vector<8x32xbf16>, vector<32x32xbf16>, vector<8x32xf32> -> vector<8x32xf32>
    %c0_22 = arith.constant 0 : index
    %c0_23 = arith.constant 0 : index
    %85 = vector.load %arg7[%c0_22, %c0_23] : memref<1x32xf32, #tpu.memory_space<vmem>>, vector<1x32xf32>
    %86 = vector.broadcast %85 : vector<1x32xf32> to vector<8x32xf32>
    %87 = arith.addf %84, %86 : vector<8x32xf32>
    %88 = arith.addf %25, %87 : vector<8x32xf32>
    %c0_24 = arith.constant 0 : index
    %c0_25 = arith.constant 0 : index
    %89 = vector.load %arg8[%c0_24, %c0_25] : memref<1x32xf32, #tpu.memory_space<vmem>>, vector<1x32xf32>
    %c0_26 = arith.constant 0 : index
    %c0_27 = arith.constant 0 : index
    %90 = vector.load %arg9[%c0_26, %c0_27] : memref<1x32xf32, #tpu.memory_space<vmem>>, vector<1x32xf32>
    %cst_28 = arith.constant dense<0.000000e+00> : vector<8xf32>
    %91 = vector.multi_reduction <add>, %88, %cst_28 [1] : vector<8x32xf32> to vector<8xf32>
    %92 = vector.shape_cast %91 : vector<8xf32> to vector<8x1xf32>
    %cst_29 = arith.constant 3.200000e+01 : f32
    %93 = vector.broadcast %cst_29 : f32 to vector<8x1xf32>
    %94 = arith.divf %92, %93 : vector<8x1xf32>
    %95 = vector.broadcast %94 : vector<8x1xf32> to vector<8x32xf32>
    %96 = arith.subf %88, %95 : vector<8x32xf32>
    %97 = arith.mulf %96, %96 : vector<8x32xf32>
    %cst_30 = arith.constant dense<0.000000e+00> : vector<8xf32>
    %98 = vector.multi_reduction <add>, %97, %cst_30 [1] : vector<8x32xf32> to vector<8xf32>
    %99 = vector.shape_cast %98 : vector<8xf32> to vector<8x1xf32>
    %cst_31 = arith.constant 3.200000e+01 : f32
    %100 = vector.broadcast %cst_31 : f32 to vector<8x1xf32>
    %101 = arith.divf %99, %100 : vector<8x1xf32>
    %102 = vector.broadcast %94 : vector<8x1xf32> to vector<8x32xf32>
    %103 = arith.subf %88, %102 : vector<8x32xf32>
    %cst_32 = arith.constant 9.99999974E-6 : f32
    %104 = vector.broadcast %cst_32 : f32 to vector<8x1xf32>
    %105 = arith.addf %101, %104 : vector<8x1xf32>
    %106 = math.rsqrt %105 : vector<8x1xf32>
    %107 = vector.broadcast %106 : vector<8x1xf32> to vector<8x32xf32>
    %108 = arith.mulf %103, %107 : vector<8x32xf32>
    %109 = vector.broadcast %89 : vector<1x32xf32> to vector<8x32xf32>
    %110 = arith.mulf %108, %109 : vector<8x32xf32>
    %111 = vector.broadcast %90 : vector<1x32xf32> to vector<8x32xf32>
    %112 = arith.addf %110, %111 : vector<8x32xf32>
    %113 = arith.truncf %112 : vector<8x32xf32> to vector<8x32xbf16>
    %c0_33 = arith.constant 0 : index
    %c0_34 = arith.constant 0 : index
    %114 = vector.load %arg10[%c0_33, %c0_34] : memref<32x128xbf16, #tpu.memory_space<vmem>>, vector<32x128xbf16>
    %cst_35 = arith.constant dense<0.000000e+00> : vector<8x128xf32>
    %115 = tpu.matmul %113, %114, %cst_35 {dimension_numbers = #tpu.dot_dimension_numbers<[1], [0], [0], [1], [0, 0, 1, 1], [], []>} : vector<8x32xbf16>, vector<32x128xbf16>, vector<8x128xf32> -> vector<8x128xf32>
    %c0_36 = arith.constant 0 : index
    %c0_37 = arith.constant 0 : index
    %116 = vector.load %arg11[%c0_36, %c0_37] : memref<1x128xf32, #tpu.memory_space<vmem>>, vector<1x128xf32>
    %117 = vector.broadcast %116 : vector<1x128xf32> to vector<8x128xf32>
    %118 = arith.addf %115, %117 : vector<8x128xf32>
    %119 = vector.extract_strided_slice %118 {offsets = [0, 0], sizes = [8, 64], strides = [1, 1]} : vector<8x128xf32> to vector<8x64xf32>
    %120 = vector.extract_strided_slice %118 {offsets = [0, 64], sizes = [8, 64], strides = [1, 1]} : vector<8x128xf32> to vector<8x64xf32>
    %121 = arith.negf %119 : vector<8x64xf32>
    %122 = math.exp %121 : vector<8x64xf32>
    %cst_38 = arith.constant 1.000000e+00 : f32
    %123 = vector.broadcast %cst_38 : f32 to vector<8x64xf32>
    %124 = arith.addf %123, %122 : vector<8x64xf32>
    %125 = arith.divf %123, %124 : vector<8x64xf32>
    %126 = arith.mulf %119, %125 : vector<8x64xf32>
    %127 = arith.mulf %126, %120 : vector<8x64xf32>
    %128 = arith.truncf %127 : vector<8x64xf32> to vector<8x64xbf16>
    %c0_39 = arith.constant 0 : index
    %c0_40 = arith.constant 0 : index
    %129 = vector.load %arg12[%c0_39, %c0_40] : memref<64x32xbf16, #tpu.memory_space<vmem>>, vector<64x32xbf16>
    %cst_41 = arith.constant dense<0.000000e+00> : vector<8x32xf32>
    %130 = tpu.matmul %128, %129, %cst_41 {dimension_numbers = #tpu.dot_dimension_numbers<[1], [0], [0], [1], [0, 0, 1, 1], [], []>} : vector<8x64xbf16>, vector<64x32xbf16>, vector<8x32xf32> -> vector<8x32xf32>
    %c0_42 = arith.constant 0 : index
    %c0_43 = arith.constant 0 : index
    %131 = vector.load %arg13[%c0_42, %c0_43] : memref<1x32xf32, #tpu.memory_space<vmem>>, vector<1x32xf32>
    %132 = vector.broadcast %131 : vector<1x32xf32> to vector<8x32xf32>
    %133 = arith.addf %130, %132 : vector<8x32xf32>
    %134 = arith.addf %112, %133 : vector<8x32xf32>
    %135 = vector.shape_cast %134 : vector<8x32xf32> to vector<1x8x32xf32>
    %c0_44 = arith.constant 0 : index
    %c0_45 = arith.constant 0 : index
    %c0_46 = arith.constant 0 : index
    %136 = vector.load %arg14[%c0_44, %c0_45, %c0_46] : memref<1x8x32xf32, #tpu.memory_space<vmem>>, vector<1x8x32xf32>
    tpu.vector_store %arg14[%c0_44, %c0_45, %c0_46], %135 {strides = array<i32>} : memref<1x8x32xf32, #tpu.memory_space<vmem>>, vector<1x8x32xf32>,
    return
  }
  func.func @transform_0(%arg0: i32) -> (i32, i32, i32) {
    %c0_i32 = arith.constant 0 : i32
    %c0_i32_0 = arith.constant 0 : i32
    %c0_i32_1 = arith.constant 0 : i32
    return %arg0, %c0_i32, %c0_i32_0 : i32, i32, i32
  }
  func.func @transform_1(%arg0: i32) -> (i32, i32) {
    %c0_i32 = arith.constant 0 : i32
    %c0_i32_0 = arith.constant 0 : i32
    %c0_i32_1 = arith.constant 0 : i32
    return %c0_i32, %c0_i32_0 : i32, i32
  }
  func.func @transform_2(%arg0: i32) -> (i32, i32) {
    %c0_i32 = arith.constant 0 : i32
    %c0_i32_0 = arith.constant 0 : i32
    %c0_i32_1 = arith.constant 0 : i32
    return %c0_i32, %c0_i32_0 : i32, i32
  }
  func.func @transform_3(%arg0: i32) -> (i32, i32) {
    %c0_i32 = arith.constant 0 : i32
    %c0_i32_0 = arith.constant 0 : i32
    %c0_i32_1 = arith.constant 0 : i32
    return %c0_i32, %c0_i32_0 : i32, i32
  }
  func.func @transform_4(%arg0: i32) -> (i32, i32) {
    %c0_i32 = arith.constant 0 : i32
    %c0_i32_0 = arith.constant 0 : i32
    %c0_i32_1 = arith.constant 0 : i32
    return %c0_i32, %c0_i32_0 : i32, i32
  }
  func.func @transform_5(%arg0: i32) -> (i32, i32) {
    %c0_i32 = arith.constant 0 : i32
    %c0_i32_0 = arith.constant 0 : i32
    %c0_i32_1 = arith.constant 0 : i32
    return %c0_i32, %c0_i32_0 : i32, i32
  }
  func.func @transform_6(%arg0: i32) -> (i32, i32) {
    %c0_i32 = arith.constant 0 : i32
    %c0_i32_0 = arith.constant 0 : i32
    %c0_i32_1 = arith.constant 0 : i32
    return %c0_i32, %c0_i32_0 : i32, i32
  }
  func.func @transform_7(%arg0: i32) -> (i32, i32) {
    %c0_i32 = arith.constant 0 : i32
    %c0_i32_0 = arith.constant 0 : i32
    %c0_i32_1 = arith.constant 0 : i32
    return %c0_i32, %c0_i32_0 : i32, i32
  }
  func.func @transform_8(%arg0: i32) -> (i32, i32) {
    %c0_i32 = arith.constant 0 : i32
    %c0_i32_0 = arith.constant 0 : i32
    %c0_i32_1 = arith.constant 0 : i32
    return %c0_i32, %c0_i32_0 : i32, i32
  }
  func.func @transform_9(%arg0: i32) -> (i32, i32) {
    %c0_i32 = arith.constant 0 : i32
    %c0_i32_0 = arith.constant 0 : i32
    %c0_i32_1 = arith.constant 0 : i32
    return %c0_i32, %c0_i32_0 : i32, i32
  }
  func.func @transform_10(%arg0: i32) -> (i32, i32) {
    %c0_i32 = arith.constant 0 : i32
    %c0_i32_0 = arith.constant 0 : i32
    %c0_i32_1 = arith.constant 0 : i32
    return %c0_i32, %c0_i32_0 : i32, i32
  }
  func.func @transform_11(%arg0: i32) -> (i32, i32) {
    %c0_i32 = arith.constant 0 : i32
    %c0_i32_0 = arith.constant 0 : i32
    %c0_i32_1 = arith.constant 0 : i32
    return %c0_i32, %c0_i32_0 : i32, i32
  }
  func.func @transform_12(%arg0: i32) -> (i32, i32) {
    %c0_i32 = arith.constant 0 : i32
    %c0_i32_0 = arith.constant 0 : i32
    %c0_i32_1 = arith.constant 0 : i32
    return %c0_i32, %c0_i32_0 : i32, i32
  }
  func.func @transform_13(%arg0: i32) -> (i32, i32, i32) {
    %c0_i32 = arith.constant 0 : i32
    %c0_i32_0 = arith.constant 0 : i32
    %c0_i32_1 = arith.constant 0 : i32
    return %arg0, %c0_i32, %c0_i32_0 : i32, i32, i32
  }
}

</mosaic_0001>

<llo_original>
// kernel: tpu_custom_call.1
$region0: #{tpu_custom_call.1}
  #allocation0 [shape = 'u32[]', space=smem, size = 0x4, offset = 0x4, fixed_abs, tag = 'smem constant byte address 0x4 - core index']
  #allocation1 [shape = 'u32[144,128]{1,0:T(1,128)}', space=vmem, size = 0x12000, scoped, tag = 'internal scratch']
  %s0 = inlined_call_operand.vmem [shape: f32[2,8,32], index: 0, kind: input, shape index: {}]
  %s1 = inlined_call_operand.vmem [shape: f32[1,32], index: 1, kind: input, shape index: {}]
  %s2 = inlined_call_operand.vmem [shape: f32[1,32], index: 2, kind: input, shape index: {}]
  %s3 = inlined_call_operand.vmem [shape: bf16[32,96], index: 3, kind: input, shape index: {}]
  %s4 = inlined_call_operand.hbm [shape: f32[1,96], index: 4, kind: input, shape index: {}]
  %s5 = inlined_call_operand.vmem [shape: bf16[32,32], index: 5, kind: input, shape index: {}]
  %s6 = inlined_call_operand.hbm [shape: f32[1,32], index: 6, kind: input, shape index: {}]
  %s7 = inlined_call_operand.hbm [shape: f32[1,32], index: 7, kind: input, shape index: {}]
  %s8 = inlined_call_operand.hbm [shape: f32[1,32], index: 8, kind: input, shape index: {}]
  %s9 = inlined_call_operand.vmem [shape: bf16[32,128], index: 9, kind: input, shape index: {}]
  %s10 = inlined_call_operand.vmem [shape: f32[1,128], index: 10, kind: input, shape index: {}]
  %s11 = inlined_call_operand.vmem [shape: bf16[64,32], index: 11, kind: input, shape index: {}]
  %s12 = inlined_call_operand.vmem [shape: f32[1,32], index: 12, kind: input, shape index: {}]
  %s13 = inlined_call_operand.hbm [shape: f32[2,8,32], index: 13, kind: output, shape index: {}]
  %s14 = sld [smem:[#allocation0]]
  $region101: #{tpu_custom_call.1} parent=0
    _
  %s16 = ssub.s32 1, %s14
  %s17 = scalar_select 0, %s16, %s14
  $region1: #{tpu_custom_call.1} parent=0
    #allocation2 [shape = 'u8[512]{0}', space=vmem, size = 0x400, scoped, tag = 'input window, operand 4, single buffered']
    #allocation3 [shape = 's32[2]{0}', space=sflag, size = 0x8, scoped, tag = 'scoped memory for tpu_custom_call.1']
    #allocation4 [shape = 's32[2]{0}', space=sflag, size = 0x8, scoped, tag = 'scoped memory for tpu_custom_call.1']
    #allocation5 [shape = 'u8[512]{0}', space=vmem, size = 0x400, scoped, tag = 'input window, operand 6, single buffered']
    #allocation6 [shape = 's32[1]{0}', space=sflag, size = 0x4, scoped, tag = 'scoped memory for tpu_custom_call.1']
    #allocation7 [shape = 'u8[512]{0}', space=vmem, size = 0x400, scoped, tag = 'input window, operand 7, single buffered']
    #allocation8 [shape = 'u8[512]{0}', space=vmem, size = 0x400, scoped, tag = 'input window, operand 8, single buffered']
    #allocation9 [shape = 's32[1]{0}', space=sflag, size = 0x4, scoped, tag = 'scoped memory for tpu_custom_call.1']
    #allocation10 [shape = 'u8[8192]{0}', space=vmem, size = 0x2000, scoped, tag = 'output window, operand 0']
    %18 = vsyncpa [#allocation3], 0
    %19 = vsyncpa [#allocation6], 0
    %20 = vsyncpa [#allocation9], 0
    %21 = vsyncpa [#allocation4], 0
    %s22 = scalar_lea.sflag [#allocation4], 1
    %23 = vsyncpa %s22, 0
    loop: start=0, step=1, limit=4
    $region2: #{tpu_custom_call.1} parent=1 // loop_pre_header
      _
    $region3: #{tpu_custom_call.1} parent=1 // loop_header
      %s25 = sphi 0, %s29
      %p26 = scmp.ge.s32.totalorder %s25, 4
      %s35 = sphi 0, %s37
      %s38 = sphi 0, %s35
      %s39 = sphi 0, %s38
      %s55 = sphi 0, %s39
      %s59 = sphi 0, %s59
      %s61 = sphi 0, %s59
      %s62 = sphi 0, %s61
      %s76 = sphi 0, %s62
      %s80 = sphi 0, %s80
      %s82 = sphi 0, %s80
      %s83 = sphi 0, %s82
      %s97 = sphi 0, %s83
      %s101 = sphi 0, %s101
      %s103 = sphi 0, %s101
      %s104 = sphi 0, %s103
      %s118 = sphi 0, %s104
      %s122 = sphi 0, %s122
      %s124 = sphi 0, %s122
      %s125 = sphi 0, %s124
      %s139 = sphi 0, %s125
      %s143 = sphi 0, %s143
      %s145 = sphi 0, %s143
      %s146 = sphi 0, %s145
      %s160 = sphi 0, %s146
      %s164 = sphi 0, %s164
      %s166 = sphi 0, %s164
      %s167 = sphi 0, %s166
      %s181 = sphi 0, %s167
      %s185 = sphi 0, %s185
      %s187 = sphi 0, %s185
      %s188 = sphi 0, %s187
      %s202 = sphi 0, %s188
      %s206 = sphi 0, %s206
      %s208 = sphi 0, %s206
      %s209 = sphi 0, %s208
      %s223 = sphi 0, %s209
      %s227 = sphi 0, %s227
      %s229 = sphi 0, %s227
      %s230 = sphi 0, %s229
      %s244 = sphi 0, %s230
      %s248 = sphi 0, %s248
      %s250 = sphi 0, %s248
      %s251 = sphi 0, %s250
      %s265 = sphi 0, %s251
      %s269 = sphi 0, %s269
      %s271 = sphi 0, %s269
      %s272 = sphi 0, %s271
      %s286 = sphi 0, %s272
      %s290 = sphi 0, %s290
      %s292 = sphi 0, %s290
      %s293 = sphi 0, %s292
      %s307 = sphi 0, %s293
      %s313 = sphi 0, %s315
      %s316 = sphi 0, %s313
      %s317 = sphi 0, %s316
      %s333 = sphi 0, %s317
    $region4: #{tpu_custom_call.1} parent=1 // loop_header_branch
      %28 = sbr.rel (%p26) target = $region8
    $region5: #{tpu_custom_call.1} parent=1 // loop_body
      %s30 = ssub.s32 %s25, 1
      %s31 = ssub.s32 %s25, 2
      %s32 = sadd.s32 %s25, 1
      %s33 = ssub.s32 %s25, %s32
      %p34 = scmp.eq.s32.totalorder %s33, 0
      %s36 = sadd.s32 %s35, 1
      %s37 = scalar_select %p34, %s35, %s36
      %p40 = pneg %p34
      %p41 = scmp.eq.s32.totalorder %s25, 1
      %p42 = por %p40, %p41
      %p43 = scmp.ne.s32.totalorder %s35, %s38
      %p44 = scmp.eq.s32.totalorder %s25, 0
      %p45 = por %p43, %p44
      %p46 = scmp.ne.s32.totalorder %s35, %s38
      %p47 = scmp.eq.s32.totalorder %s30, 1
      %p48 = por %p46, %p47
      %p49 = scmp.ne.s32.totalorder %s38, %s39
      %p50 = scmp.eq.s32.totalorder %s30, 0
      %p51 = por %p49, %p50
      %p52 = scmp.ne.s32.totalorder %s38, %s39
      %p53 = scmp.eq.s32.totalorder %s31, 1
      %p54 = por %p52, %p53
      %p56 = scmp.ne.s32.totalorder %s39, %s55
      %p57 = scmp.eq.s32.totalorder %s31, 0
      %p58 = por %p56, %p57
      %s60 = sadd.s32 %s59, 1
      %p63 = scmp.eq.s32.totalorder %s25, 1
      %p64 = scmp.ne.s32.totalorder %s59, %s61
      %p65 = scmp.eq.s32.totalorder %s25, 0
      %p66 = por %p64, %p65
      %p67 = scmp.ne.s32.totalorder %s59, %s61
      %p68 = scmp.eq.s32.totalorder %s30, 1
      %p69 = por %p67, %p68
      %p70 = scmp.ne.s32.totalorder %s61, %s62
      %p71 = scmp.eq.s32.totalorder %s30, 0
      %p72 = por %p70, %p71
      %p73 = scmp.ne.s32.totalorder %s61, %s62
      %p74 = scmp.eq.s32.totalorder %s31, 1
      %p75 = por %p73, %p74
      %p77 = scmp.ne.s32.totalorder %s62, %s76
      %p78 = scmp.eq.s32.totalorder %s31, 0
      %p79 = por %p77, %p78
      %s81 = sadd.s32 %s80, 1
      %p84 = scmp.eq.s32.totalorder %s25, 1
      %p85 = scmp.ne.s32.totalorder %s80, %s82
      %p86 = scmp.eq.s32.totalorder %s25, 0
      %p87 = por %p85, %p86
      %p88 = scmp.ne.s32.totalorder %s80, %s82
      %p89 = scmp.eq.s32.totalorder %s30, 1
      %p90 = por %p88, %p89
      %p91 = scmp.ne.s32.totalorder %s82, %s83
      %p92 = scmp.eq.s32.totalorder %s30, 0
      %p93 = por %p91, %p92
      %p94 = scmp.ne.s32.totalorder %s82, %s83
      %p95 = scmp.eq.s32.totalorder %s31, 1
      %p96 = por %p94, %p95
      %p98 = scmp.ne.s32.totalorder %s83, %s97
      %p99 = scmp.eq.s32.totalorder %s31, 0
      %p100 = por %p98, %p99
      %s102 = sadd.s32 %s101, 1
      %p105 = scmp.eq.s32.totalorder %s25, 1
      %p106 = scmp.ne.s32.totalorder %s101, %s103
      %p107 = scmp.eq.s32.totalorder %s25, 0
      %p108 = por %p106, %p107
      %p109 = scmp.ne.s32.totalorder %s101, %s103
      %p110 = scmp.eq.s32.totalorder %s30, 1
      %p111 = por %p109, %p110
      %p112 = scmp.ne.s32.totalorder %s103, %s104
      %p113 = scmp.eq.s32.totalorder %s30, 0
      %p114 = por %p112, %p113
      %p115 = scmp.ne.s32.totalorder %s103, %s104
      %p116 = scmp.eq.s32.totalorder %s31, 1
      %p117 = por %p115, %p116
      %p119 = scmp.ne.s32.totalorder %s104, %s118
      %p120 = scmp.eq.s32.totalorder %s31, 0
      %p121 = por %p119, %p120
      %s123 = sadd.s32 %s122, 1
      %p126 = scmp.eq.s32.totalorder %s25, 1
      %p127 = scmp.ne.s32.totalorder %s122, %s124
      %p128 = scmp.eq.s32.totalorder %s25, 0
      %p129 = por %p127, %p128
      %p130 = scmp.ne.s32.totalorder %s122, %s124
      %p131 = scmp.eq.s32.totalorder %s30, 1
      %p132 = por %p130, %p131
      %p133 = scmp.ne.s32.totalorder %s124, %s125
      %p134 = scmp.eq.s32.totalorder %s30, 0
      %p135 = por %p133, %p134
      %p136 = scmp.ne.s32.totalorder %s124, %s125
      %p137 = scmp.eq.s32.totalorder %s31, 1
      %p138 = por %p136, %p137
      %p140 = scmp.ne.s32.totalorder %s125, %s139
      %p141 = scmp.eq.s32.totalorder %s31, 0
      %p142 = por %p140, %p141
      %s144 = sadd.s32 %s143, 1
      %p147 = scmp.eq.s32.totalorder %s25, 1
      %p148 = scmp.ne.s32.totalorder %s143, %s145
      %p149 = scmp.eq.s32.totalorder %s25, 0
      %p150 = por %p148, %p149
      %p151 = scmp.ne.s32.totalorder %s143, %s145
      %p152 = scmp.eq.s32.totalorder %s30, 1
      %p153 = por %p151, %p152
      %p154 = scmp.ne.s32.totalorder %s145, %s146
      %p155 = scmp.eq.s32.totalorder %s30, 0
      %p156 = por %p154, %p155
      %p157 = scmp.ne.s32.totalorder %s145, %s146
      %p158 = scmp.eq.s32.totalorder %s31, 1
      %p159 = por %p157, %p158
      %p161 = scmp.ne.s32.totalorder %s146, %s160
      %p162 = scmp.eq.s32.totalorder %s31, 0
      %p163 = por %p161, %p162
      %s165 = sadd.s32 %s164, 1
      %p168 = scmp.eq.s32.totalorder %s25, 1
      %p169 = scmp.ne.s32.totalorder %s164, %s166
      %p170 = scmp.eq.s32.totalorder %s25, 0
      %p171 = por %p169, %p170
      %p172 = scmp.ne.s32.totalorder %s164, %s166
      %p173 = scmp.eq.s32.totalorder %s30, 1
      %p174 = por %p172, %p173
      %p175 = scmp.ne.s32.totalorder %s166, %s167
      %p176 = scmp.eq.s32.totalorder %s30, 0
      %p177 = por %p175, %p176
      %p178 = scmp.ne.s32.totalorder %s166, %s167
      %p179 = scmp.eq.s32.totalorder %s31, 1
      %p180 = por %p178, %p179
      %p182 = scmp.ne.s32.totalorder %s167, %s181
      %p183 = scmp.eq.s32.totalorder %s31, 0
      %p184 = por %p182, %p183
      %s186 = sadd.s32 %s185, 1
      %p189 = scmp.eq.s32.totalorder %s25, 1
      %p190 = scmp.ne.s32.totalorder %s185, %s187
      %p191 = scmp.eq.s32.totalorder %s25, 0
      %p192 = por %p190, %p191
      %p193 = scmp.ne.s32.totalorder %s185, %s187
      %p194 = scmp.eq.s32.totalorder %s30, 1
      %p195 = por %p193, %p194
      %p196 = scmp.ne.s32.totalorder %s187, %s188
      %p197 = scmp.eq.s32.totalorder %s30, 0
      %p198 = por %p196, %p197
      %p199 = scmp.ne.s32.totalorder %s187, %s188
      %p200 = scmp.eq.s32.totalorder %s31, 1
      %p201 = por %p199, %p200
      %p203 = scmp.ne.s32.totalorder %s188, %s202
      %p204 = scmp.eq.s32.totalorder %s31, 0
      %p205 = por %p203, %p204
      %s207 = sadd.s32 %s206, 1
      %p210 = scmp.eq.s32.totalorder %s25, 1
      %p211 = scmp.ne.s32.totalorder %s206, %s208
      %p212 = scmp.eq.s32.totalorder %s25, 0
      %p213 = por %p211, %p212
      %p214 = scmp.ne.s32.totalorder %s206, %s208
      %p215 = scmp.eq.s32.totalorder %s30, 1
      %p216 = por %p214, %p215
      %p217 = scmp.ne.s32.totalorder %s208, %s209
      %p218 = scmp.eq.s32.totalorder %s30, 0
      %p219 = por %p217, %p218
      %p220 = scmp.ne.s32.totalorder %s208, %s209
      %p221 = scmp.eq.s32.totalorder %s31, 1
      %p222 = por %p220, %p221
      %p224 = scmp.ne.s32.totalorder %s209, %s223
      %p225 = scmp.eq.s32.totalorder %s31, 0
      %p226 = por %p224, %p225
      %s228 = sadd.s32 %s227, 1
      %p231 = scmp.eq.s32.totalorder %s25, 1
      %p232 = scmp.ne.s32.totalorder %s227, %s229
      %p233 = scmp.eq.s32.totalorder %s25, 0
      %p234 = por %p232, %p233
      %p235 = scmp.ne.s32.totalorder %s227, %s229
      %p236 = scmp.eq.s32.totalorder %s30, 1
      %p237 = por %p235, %p236
      %p238 = scmp.ne.s32.totalorder %s229, %s230
      %p239 = scmp.eq.s32.totalorder %s30, 0
      %p240 = por %p238, %p239
      %p241 = scmp.ne.s32.totalorder %s229, %s230
      %p242 = scmp.eq.s32.totalorder %s31, 1
      %p243 = por %p241, %p242
      %p245 = scmp.ne.s32.totalorder %s230, %s244
      %p246 = scmp.eq.s32.totalorder %s31, 0
      %p247 = por %p245, %p246
      %s249 = sadd.s32 %s248, 1
      %p252 = scmp.eq.s32.totalorder %s25, 1
      %p253 = scmp.ne.s32.totalorder %s248, %s250
      %p254 = scmp.eq.s32.totalorder %s25, 0
      %p255 = por %p253, %p254
      %p256 = scmp.ne.s32.totalorder %s248, %s250
      %p257 = scmp.eq.s32.totalorder %s30, 1
      %p258 = por %p256, %p257
      %p259 = scmp.ne.s32.totalorder %s250, %s251
      %p260 = scmp.eq.s32.totalorder %s30, 0
      %p261 = por %p259, %p260
      %p262 = scmp.ne.s32.totalorder %s250, %s251
      %p263 = scmp.eq.s32.totalorder %s31, 1
      %p264 = por %p262, %p263
      %p266 = scmp.ne.s32.totalorder %s251, %s265
      %p267 = scmp.eq.s32.totalorder %s31, 0
      %p268 = por %p266, %p267
      %s270 = sadd.s32 %s269, 1
      %p273 = scmp.eq.s32.totalorder %s25, 1
      %p274 = scmp.ne.s32.totalorder %s269, %s271
      %p275 = scmp.eq.s32.totalorder %s25, 0
      %p276 = por %p274, %p275
      %p277 = scmp.ne.s32.totalorder %s269, %s271
      %p278 = scmp.eq.s32.totalorder %s30, 1
      %p279 = por %p277, %p278
      %p280 = scmp.ne.s32.totalorder %s271, %s272
      %p281 = scmp.eq.s32.totalorder %s30, 0
      %p282 = por %p280, %p281
      %p283 = scmp.ne.s32.totalorder %s271, %s272
      %p284 = scmp.eq.s32.totalorder %s31, 1
      %p285 = por %p283, %p284
      %p287 = scmp.ne.s32.totalorder %s272, %s286
      %p288 = scmp.eq.s32.totalorder %s31, 0
      %p289 = por %p287, %p288
      %s291 = sadd.s32 %s290, 1
      %p294 = scmp.eq.s32.totalorder %s25, 1
      %p295 = scmp.ne.s32.totalorder %s290, %s292
      %p296 = scmp.eq.s32.totalorder %s25, 0
      %p297 = por %p295, %p296
      %p298 = scmp.ne.s32.totalorder %s290, %s292
      %p299 = scmp.eq.s32.totalorder %s30, 1
      %p300 = por %p298, %p299
      %p301 = scmp.ne.s32.totalorder %s292, %s293
      %p302 = scmp.eq.s32.totalorder %s30, 0
      %p303 = por %p301, %p302
      %p304 = scmp.ne.s32.totalorder %s292, %s293
      %p305 = scmp.eq.s32.totalorder %s31, 1
      %p306 = por %p304, %p305
      %p308 = scmp.ne.s32.totalorder %s293, %s307
      %p309 = scmp.eq.s32.totalorder %s31, 0
      %p310 = por %p308, %p309
      %s311 = ssub.s32 %s25, %s32
      %p312 = scmp.eq.s32.totalorder %s311, 0
      %s314 = sadd.s32 %s313, 1
      %s315 = scalar_select %p312, %s313, %s314
      %p318 = pneg %p312
      %p319 = scmp.eq.s32.totalorder %s25, 1
      %p320 = por %p318, %p319
      %p321 = scmp.ne.s32.totalorder %s313, %s316
      %p322 = scmp.eq.s32.totalorder %s25, 0
      %p323 = por %p321, %p322
      %p324 = scmp.ne.s32.totalorder %s313, %s316
      %p325 = scmp.eq.s32.totalorder %s30, 1
      %p326 = por %p324, %p325
      %p327 = scmp.ne.s32.totalorder %s316, %s317
      %p328 = scmp.eq.s32.totalorder %s30, 0
      %p329 = por %p327, %p328
      %p330 = scmp.ne.s32.totalorder %s316, %s317
      %p331 = scmp.eq.s32.totalorder %s31, 1
      %p332 = por %p330, %p331
      %p334 = scmp.ne.s32.totalorder %s317, %s333
      %p335 = scmp.eq.s32.totalorder %s31, 0
      %p336 = por %p334, %p335
      %p337 = scmp.le.s32.totalorder 1, %s25
      %p338 = scmp.lt.s32.totalorder %s25, 3
      %p339 = pnand %p337, %p338
      %p340 = pneg %p339
      // Predicated region
      $region9: #{tpu_custom_call.1} parent=5 // pred_check
        _
      $region10: #{tpu_custom_call.1} parent=5 // pred_check_branch
        %342 = sbr.rel (%p339) target = $region12
      $region11: #{tpu_custom_call.1} parent=5 // pred_region
        %s343 = ssub.s32 %s25, 1
        // Predicated region
        $region13: #{tpu_custom_call.1} parent=11 // pred_check
          %p344 = pneg %p72
        $region14: #{tpu_custom_call.1} parent=11 // pred_check_branch
          %346 = sbr.rel (%p344) target = $region16
        $region15: #{tpu_custom_call.1} parent=11 // pred_region
          _
        $region16: #{tpu_custom_call.1} parent=11 // pred_fallthru
          _
        // Predicated region
        $region17: #{tpu_custom_call.1} parent=11 // pred_check
          %p347 = pneg %p93
        $region18: #{tpu_custom_call.1} parent=11 // pred_check_branch
          %349 = sbr.rel (%p347) target = $region20
        $region19: #{tpu_custom_call.1} parent=11 // pred_region
          _
        $region20: #{tpu_custom_call.1} parent=11 // pred_fallthru
          _
        // Predicated region
        $region21: #{tpu_custom_call.1} parent=11 // pred_check
          %p350 = pneg %p114
        $region22: #{tpu_custom_call.1} parent=11 // pred_check_branch
          %352 = sbr.rel (%p350) target = $region24
        $region23: #{tpu_custom_call.1} parent=11 // pred_region
          _
        $region24: #{tpu_custom_call.1} parent=11 // pred_fallthru
          _
        // Predicated region
        $region25: #{tpu_custom_call.1} parent=11 // pred_check
          %p353 = pneg %p135
        $region26: #{tpu_custom_call.1} parent=11 // pred_check_branch
          %355 = sbr.rel (%p353) target = $region28
        $region27: #{tpu_custom_call.1} parent=11 // pred_region
          %s357 = ssub.s32 16, 16
          %358 = vsyncadd [#allocation3], %s357
          %s360 = sshll.u32 [#allocation2], 4
          %s361 = int_to_ptr.vmem [resolvable:$true] %s360
          %363 = dma.hbm_to_vmem [thread:$0]  %s4, 16, %s361, [#allocation3]
        $region28: #{tpu_custom_call.1} parent=11 // pred_fallthru
          _
        // Predicated region
        $region29: #{tpu_custom_call.1} parent=11 // pred_check
          %p364 = pneg %p156
        $region30: #{tpu_custom_call.1} parent=11 // pred_check_branch
          %366 = sbr.rel (%p364) target = $region32
        $region31: #{tpu_custom_call.1} parent=11 // pred_region
          _
        $region32: #{tpu_custom_call.1} parent=11 // pred_fallthru
          _
        // Predicated region
        $region33: #{tpu_custom_call.1} parent=11 // pred_check
          %p367 = pneg %p177
        $region34: #{tpu_custom_call.1} parent=11 // pred_check_branch
          %369 = sbr.rel (%p367) target = $region36
        $region35: #{tpu_custom_call.1} parent=11 // pred_region
          %s371 = ssub.s32 16, 16
          %372 = vsyncadd [#allocation6], %s371
          %s374 = sshll.u32 [#allocation5], 4
          %s375 = int_to_ptr.vmem [resolvable:$true] %s374
          %377 = dma.hbm_to_vmem [thread:$0]  %s6, 16, %s375, [#allocation6]
        $region36: #{tpu_custom_call.1} parent=11 // pred_fallthru
          _
        // Predicated region
        $region37: #{tpu_custom_call.1} parent=11 // pred_check
          %p378 = pneg %p198
        $region38: #{tpu_custom_call.1} parent=11 // pred_check_branch
          %380 = sbr.rel (%p378) target = $region40
        $region39: #{tpu_custom_call.1} parent=11 // pred_region
          %s382 = ssub.s32 16, 16
          %383 = vsyncadd [#allocation6], %s382
          %s385 = sshll.u32 [#allocation7], 4
          %s386 = int_to_ptr.vmem [resolvable:$true] %s385
          %388 = dma.hbm_to_vmem [thread:$0]  %s7, 16, %s386, [#allocation6]
        $region40: #{tpu_custom_call.1} parent=11 // pred_fallthru
          _
        // Predicated region
        $region41: #{tpu_custom_call.1} parent=11 // pred_check
          %p389 = pneg %p219
        $region42: #{tpu_custom_call.1} parent=11 // pred_check_branch
          %391 = sbr.rel (%p389) target = $region44
        $region43: #{tpu_custom_call.1} parent=11 // pred_region
          %s393 = ssub.s32 16, 16
          %394 = vsyncadd [#allocation9], %s393
          %s396 = sshll.u32 [#allocation8], 4
          %s397 = int_to_ptr.vmem [resolvable:$true] %s396
          %399 = dma.hbm_to_vmem [thread:$0]  %s8, 16, %s397, [#allocation9]
        $region44: #{tpu_custom_call.1} parent=11 // pred_fallthru
          _
        // Predicated region
        $region45: #{tpu_custom_call.1} parent=11 // pred_check
          %p400 = pneg %p240
        $region46: #{tpu_custom_call.1} parent=11 // pred_check_branch
          %402 = sbr.rel (%p400) target = $region48
        $region47: #{tpu_custom_call.1} parent=11 // pred_region
          _
        $region48: #{tpu_custom_call.1} parent=11 // pred_fallthru
          _
        // Predicated region
        $region49: #{tpu_custom_call.1} parent=11 // pred_check
          %p403 = pneg %p261
        $region50: #{tpu_custom_call.1} parent=11 // pred_check_branch
          %405 = sbr.rel (%p403) target = $region52
        $region51: #{tpu_custom_call.1} parent=11 // pred_region
          _
        $region52: #{tpu_custom_call.1} parent=11 // pred_fallthru
          _
        // Predicated region
        $region53: #{tpu_custom_call.1} parent=11 // pred_check
          %p406 = pneg %p282
        $region54: #{tpu_custom_call.1} parent=11 // pred_check_branch
          %408 = sbr.rel (%p406) target = $region56
        $region55: #{tpu_custom_call.1} parent=11 // pred_region
          _
        $region56: #{tpu_custom_call.1} parent=11 // pred_fallthru
          _
        // Predicated region
        $region57: #{tpu_custom_call.1} parent=11 // pred_check
          %p409 = pneg %p303
        $region58: #{tpu_custom_call.1} parent=11 // pred_check_branch
          %411 = sbr.rel (%p409) target = $region60
        $region59: #{tpu_custom_call.1} parent=11 // pred_region
          _
        $region60: #{tpu_custom_call.1} parent=11 // pred_fallthru
          _
      $region12: #{tpu_custom_call.1} parent=5 // pred_fallthru
        _
      %p412 = scmp.lt.s32.totalorder %s25, 2
      // Predicated region
      $region61: #{tpu_custom_call.1} parent=5 // pred_check
        %p413 = pneg %p412
      $region62: #{tpu_custom_call.1} parent=5 // pred_check_branch
        %415 = sbr.rel (%p413) target = $region64
      $region63: #{tpu_custom_call.1} parent=5 // pred_region
        // Predicated region
        $region65: #{tpu_custom_call.1} parent=63 // pred_check
          %p416 = pneg %p45
        $region66: #{tpu_custom_call.1} parent=63 // pred_check_branch
          %418 = sbr.rel (%p416) target = $region68
        $region67: #{tpu_custom_call.1} parent=63 // pred_region
          %p419 = scmp.lt.s32.totalorder %s25, 1
          %s420 = scalar_select %p419, %s25, 1
          %s421 = smul.addr %s420, 8
          %s422 = scalar_lea.vmem %s0, %s421
        $region68: #{tpu_custom_call.1} parent=63 // pred_fallthru
          _
      $region64: #{tpu_custom_call.1} parent=5 // pred_fallthru
        _
      %p423 = scmp.le.s32.totalorder 1, %s25
      %p424 = scmp.lt.s32.totalorder %s25, 3
      %p425 = pnand %p423, %p424
      %p426 = pneg %p425
      // Predicated region
      $region69: #{tpu_custom_call.1} parent=5 // pred_check
        _
      $region70: #{tpu_custom_call.1} parent=5 // pred_check_branch
        %428 = sbr.rel (%p425) target = $region72
      $region71: #{tpu_custom_call.1} parent=5 // pred_region
        %s429 = ssub.s32 %s25, 1
        // Predicated region
        $region73: #{tpu_custom_call.1} parent=71 // pred_check
          %p430 = pneg %p135
        $region74: #{tpu_custom_call.1} parent=71 // pred_check_branch
          %432 = sbr.rel (%p430) target = $region76
        $region75: #{tpu_custom_call.1} parent=71 // pred_region
          %433 = dma.done [#allocation3], 16
        $region76: #{tpu_custom_call.1} parent=71 // pred_fallthru
          _
        // Predicated region
        $region77: #{tpu_custom_call.1} parent=71 // pred_check
          %p434 = pneg %p177
        $region78: #{tpu_custom_call.1} parent=71 // pred_check_branch
          %436 = sbr.rel (%p434) target = $region80
        $region79: #{tpu_custom_call.1} parent=71 // pred_region
          %437 = dma.done [#allocation6], 16
        $region80: #{tpu_custom_call.1} parent=71 // pred_fallthru
          _
        // Predicated region
        $region81: #{tpu_custom_call.1} parent=71 // pred_check
          %p438 = pneg %p198
        $region82: #{tpu_custom_call.1} parent=71 // pred_check_branch
          %440 = sbr.rel (%p438) target = $region84
        $region83: #{tpu_custom_call.1} parent=71 // pred_region
          %441 = dma.done [#allocation6], 16
        $region84: #{tpu_custom_call.1} parent=71 // pred_fallthru
          _
        // Predicated region
        $region85: #{tpu_custom_call.1} parent=71 // pred_check
          %p442 = pneg %p219
        $region86: #{tpu_custom_call.1} parent=71 // pred_check_branch
          %444 = sbr.rel (%p442) target = $region88
        $region87: #{tpu_custom_call.1} parent=71 // pred_region
          %445 = dma.done [#allocation9], 16
        $region88: #{tpu_custom_call.1} parent=71 // pred_fallthru
          _
        %p446 = scmp.lt.s32.totalorder %s30, 1
        %s447 = scalar_select %p446, %s30, 1
        %s448 = smul.addr %s447, 8
        %s449 = scalar_lea.vmem %s0, %s448
        %p450 = pneg %p51
        %p451 = pneg %p48
        %p452 = pneg %p72
        %p453 = pneg %p69
        %p454 = pneg %p93
        %p455 = pneg %p90
        %p456 = pneg %p114
        %p457 = pneg %p111
        %p458 = pneg %p135
        %p459 = pneg %p132
        %p460 = pneg %p156
        %p461 = pneg %p153
        %p462 = pneg %p177
        %p463 = pneg %p174
        %p464 = pneg %p198
        %p465 = pneg %p195
        %p466 = pneg %p219
        %p467 = pneg %p216
        %p468 = pneg %p240
        %p469 = pneg %p237
        %p470 = pneg %p261
        %p471 = pneg %p258
        %p472 = pneg %p282
        %p473 = pneg %p279
        %p474 = pneg %p303
        %p475 = pneg %p300
        %p476 = pneg %p329
        %p477 = pneg %p326
        %s478 = sand.u32 %s316, 1
        %s479 = scalar_lea.sflag [#allocation4], %s478
        %s480 = sand.u32 %s316, 1
        %s481 = smul.addr %s480, 8
        %s482 = scalar_lea.vmem [#allocation10], %s481
        %p483 = scmp.lt.s32.totalorder %s30, 1
        %s484 = scalar_select %p483, %s30, 1
        %s485 = smul.addr %s484, 8
        %s486 = scalar_lea.vmem %s0, %s485
        %v488 = vld [vmem:[%s486] sm:$0xff]
        %v489 = vld [vmem:[%s1] sm:$0x1]
        %v490 = vld [vmem:[%s2] sm:$0x1]
        %vm491 = vcmask 261120
        %v492 = vsel %vm491, %v488, 0.0
        %493 = vadd.xlane.f32.xlu0 %v492
        %v494 = vpop.xlane.xlu0 %493
        %v495 = vrcp.pop 32.0
        %v496 = vmul.f32 %v494, %v495
        %v497 = vsub.f32 %v488, %v496
        %v498 = vmul.f32 %v497, %v497
        %v499 = vsel %vm491, %v498, 0.0
        %500 = vadd.xlane.f32.xlu0 %v499
        %v501 = vpop.xlane.xlu0 %500
        %v502 = vmul.f32 %v501, %v495
        %v503 = vadd.f32 %v502, 1e-05
        %v504 = vrsqrt.pop %v503
        %v505 = vmul.f32 %v497, %v504
        %v507 = vlaneseq
        %v508 = vshrl.u32 %v507, 7
        %v509 = vsub.s32 0, %v508
        %v510 = vrot.slane %v489, %v509
        %v512 = vmul.f32 %v505, %v510
        %v514 = vlaneseq
        %v515 = vshrl.u32 %v514, 7
        %v516 = vsub.s32 0, %v515
        %v517 = vrot.slane %v490, %v516
        %v519 = vadd.f32 %v512, %v517
        %v520 = vpack.c.bf16 %v519, %v519
        %v521 = vld [vmem:[%s3] sm:$0xf]
        %v522 = vld [vmem:[%s3 + $0x4] sm:$0xf]
        %v523 = vld [vmem:[%s3 + $0x8] sm:$0xf]
        %v524 = vld [vmem:[%s3 + $0xc] sm:$0xf]
        %v525 = vld [vmem:[#allocation2] sm:$0x1]
        %v527 = vlaneseq
        %v528 = vshrl.u32 %v527, 7
        %v529 = vsub.s32 0, %v528
        %v530 = vrot.slane %v525, %v529
        %v536 = vunpack.c.l.b16 %v521
        %v537 = vunpack.c.l.b16 %v522
        %v538 = vunpack.c.l.b16 %v523
        %v539 = vunpack.c.l.b16 %v524
        %v540 = vpack.c.b16 %v537, %v536
        %v541 = vpack.c.b16 %v539, %v538
        %v545 = vsel %vm491, %v520, 0
        %547 = vmatprep.subr.bf16.mxu0 0
        %548 = vmatpush1.bf16.msra.mxu0 %v540
        %549 = vmatprep.subr.bf16.mxu0 0
        %550 = vmatpush1.bf16.msra.mxu0 %v541
        %551 = vmatprep.subr.bf16.mxu0 0
        %552 = vmatpush1.bf16.msra.mxu0 0
        %553 = vmatprep.subr.bf16.mxu0 0
        %554 = vmatpush1.bf16.msra.mxu0 0
        %555 = vmatprep.subr.bf16.mxu0 0
        %556 = vmatpush1.bf16.msra.mxu0 0
        %557 = vmatprep.subr.bf16.mxu0 0
        %558 = vmatpush1.bf16.msra.mxu0 0
        %559 = vmatprep.subr.bf16.mxu0 0
        %560 = vmatpush1.bf16.msra.mxu0 0
        %561 = vmatprep.subr.bf16.mxu0 0
        %562 = vmatpush1.bf16.msra.mxu0 0
        %563 = vmatprep.subr.bf16.mxu0 0
        %564 = vmatpush1.bf16.msra.mxu0 0
        %565 = vmatprep.subr.bf16.mxu0 0
        %566 = vmatpush1.bf16.msra.mxu0 0
        %567 = vmatprep.subr.bf16.mxu0 0
        %568 = vmatpush1.bf16.msra.mxu0 0
        %569 = vmatprep.subr.bf16.mxu0 0
        %570 = vmatpush1.bf16.msra.mxu0 0
        %571 = vmatprep.subr.bf16.mxu0 0
        %572 = vmatpush1.bf16.msra.mxu0 0
        %573 = vmatprep.subr.bf16.mxu0 0
        %574 = vmatpush1.bf16.msra.mxu0 0
        %575 = vmatprep.subr.bf16.mxu0 0
        %576 = vmatpush1.bf16.msra.mxu0 0
        %577 = vmatprep.subr.bf16.mxu0 0
        %578 = vmatpush1.bf16.msra.mxu0 0
        %579 = vmatprep.mubr.bf16.mxu0 0
        %580 = vmatmul.mubr.bf16.gmra.mrb[0].mxu0 %v545
        %v581 = vpop.f32.mrb[0].mxu0
        %v582 = vadd.f32 %v530, %v581
        %v583 = vpop.f32.mrb[0].mxu0
        %v584 = vpop.f32.mrb[0].mxu0
        %v585 = vpop.f32.mrb[0].mxu0
        %586 = vdwg.mxu0
        %v587 = vpack.c.bf16 %v582, %v582
        %589 = vrot.lane.b32.xlu0 %v587, 120
        %v590 = vpop.permute.xlu0 %589
        %591 = vrot.lane.b32.xlu0 %v587, 112
        %v592 = vpop.permute.xlu0 %591
        %593 = vrot.lane.b32.xlu0 %v587, 104
        %v594 = vpop.permute.xlu0 %593
        %595 = vrot.lane.b32.xlu0 %v587, 96
        %v596 = vpop.permute.xlu0 %595
        %vm597 = vcmask 64512
        %v599 = vsel %vm597, %v587, 0
        %v602 = vsel %vm597, %v596, 0
        %604 = vmatprep.subr.bf16.mxu0 0
        %605 = vmatpush1.bf16.xpose.msra.mxu0 %v602
        %606 = vmatprep.subr.bf16.mxu0 0
        %607 = vmatpush1.bf16.xpose.msra.mxu0 0
        %608 = vmatprep.subr.bf16.mxu0 0
        %609 = vmatpush1.bf16.xpose.msra.mxu0 0
        %610 = vmatprep.subr.bf16.mxu0 0
        %611 = vmatpush1.bf16.xpose.msra.mxu0 0
        %612 = vmatprep.subr.bf16.mxu0 0
        %613 = vmatpush1.bf16.xpose.msra.mxu0 0
        %614 = vmatprep.subr.bf16.mxu0 0
        %615 = vmatpush1.bf16.xpose.msra.mxu0 0
        %616 = vmatprep.subr.bf16.mxu0 0
        %617 = vmatpush1.bf16.xpose.msra.mxu0 0
        %618 = vmatprep.subr.bf16.mxu0 0
        %619 = vmatpush1.bf16.xpose.msra.mxu0 0
        %620 = vmatprep.subr.bf16.mxu0 0
        %621 = vmatpush1.bf16.xpose.msra.mxu0 0
        %622 = vmatprep.subr.bf16.mxu0 0
        %623 = vmatpush1.bf16.xpose.msra.mxu0 0
        %624 = vmatprep.subr.bf16.mxu0 0
        %625 = vmatpush1.bf16.xpose.msra.mxu0 0
        %626 = vmatprep.subr.bf16.mxu0 0
        %627 = vmatpush1.bf16.xpose.msra.mxu0 0
        %628 = vmatprep.subr.bf16.mxu0 0
        %629 = vmatpush1.bf16.xpose.msra.mxu0 0
        %630 = vmatprep.subr.bf16.mxu0 0
        %631 = vmatpush1.bf16.xpose.msra.mxu0 0
        %632 = vmatprep.subr.bf16.mxu0 0
        %633 = vmatpush1.bf16.xpose.msra.mxu0 0
        %634 = vmatprep.subr.bf16.mxu0 0
        %635 = vmatpush1.bf16.xpose.msra.mxu0 0
        %636 = vmatprep.mubr.bf16.mxu0 0
        %637 = vmatmul.mubr.bf16.gmra.mrb[0].mxu0 %v599
        %v638 = vpop.f32.mrb[0].mxu0
        %v639 = vadd.f32 0.0, %v638
        %v640 = vpop.f32.mrb[0].mxu0
        %v641 = vpop.f32.mrb[0].mxu0
        %v642 = vpop.f32.mrb[0].mxu0
        %643 = vdwg.mxu0
        %644 = vrot.lane.b32.xlu0 %v590, 96
        %v645 = vpop.permute.xlu0 %644
        %v647 = vsel %vm597, %v590, 0
        %v650 = vsel %vm597, %v645, 0
        %652 = vmatprep.subr.bf16.mxu0 0
        %653 = vmatpush1.bf16.xpose.msra.mxu0 %v650
        %654 = vmatprep.subr.bf16.mxu0 0
        %655 = vmatpush1.bf16.xpose.msra.mxu0 0
        %656 = vmatprep.subr.bf16.mxu0 0
        %657 = vmatpush1.bf16.xpose.msra.mxu0 0
        %658 = vmatprep.subr.bf16.mxu0 0
        %659 = vmatpush1.bf16.xpose.msra.mxu0 0
        %660 = vmatprep.subr.bf16.mxu0 0
        %661 = vmatpush1.bf16.xpose.msra.mxu0 0
        %662 = vmatprep.subr.bf16.mxu0 0
        %663 = vmatpush1.bf16.xpose.msra.mxu0 0
        %664 = vmatprep.subr.bf16.mxu0 0
        %665 = vmatpush1.bf16.xpose.msra.mxu0 0
        %666 = vmatprep.subr.bf16.mxu0 0
        %667 = vmatpush1.bf16.xpose.msra.mxu0 0
        %668 = vmatprep.subr.bf16.mxu0 0
        %669 = vmatpush1.bf16.xpose.msra.mxu0 0
        %670 = vmatprep.subr.bf16.mxu0 0
        %671 = vmatpush1.bf16.xpose.msra.mxu0 0
        %672 = vmatprep.subr.bf16.mxu0 0
        %673 = vmatpush1.bf16.xpose.msra.mxu0 0
        %674 = vmatprep.subr.bf16.mxu0 0
        %675 = vmatpush1.bf16.xpose.msra.mxu0 0
        %676 = vmatprep.subr.bf16.mxu0 0
        %677 = vmatpush1.bf16.xpose.msra.mxu0 0
        %678 = vmatprep.subr.bf16.mxu0 0
        %679 = vmatpush1.bf16.xpose.msra.mxu0 0
        %680 = vmatprep.subr.bf16.mxu0 0
        %681 = vmatpush1.bf16.xpose.msra.mxu0 0
        %682 = vmatprep.subr.bf16.mxu0 0
        %683 = vmatpush1.bf16.xpose.msra.mxu0 0
        %684 = vmatprep.mubr.bf16.mxu0 0
        %685 = vmatmul.mubr.bf16.gmra.mrb[0].mxu0 %v647
        %v686 = vpop.f32.mrb[0].mxu0
        %v687 = vadd.f32 0.0, %v686
        %v688 = vpop.f32.mrb[0].mxu0
        %v689 = vpop.f32.mrb[0].mxu0
        %v690 = vpop.f32.mrb[0].mxu0
        %691 = vdwg.mxu0
        %692 = vrot.lane.b32.xlu0 %v592, 96
        %v693 = vpop.permute.xlu0 %692
        %v695 = vsel %vm597, %v592, 0
        %v698 = vsel %vm597, %v693, 0
        %700 = vmatprep.subr.bf16.mxu0 0
        %701 = vmatpush1.bf16.xpose.msra.mxu0 %v698
        %702 = vmatprep.subr.bf16.mxu0 0
        %703 = vmatpush1.bf16.xpose.msra.mxu0 0
        %704 = vmatprep.subr.bf16.mxu0 0
        %705 = vmatpush1.bf16.xpose.msra.mxu0 0
        %706 = vmatprep.subr.bf16.mxu0 0
        %707 = vmatpush1.bf16.xpose.msra.mxu0 0
        %708 = vmatprep.subr.bf16.mxu0 0
        %709 = vmatpush1.bf16.xpose.msra.mxu0 0
        %710 = vmatprep.subr.bf16.mxu0 0
        %711 = vmatpush1.bf16.xpose.msra.mxu0 0
        %712 = vmatprep.subr.bf16.mxu0 0
        %713 = vmatpush1.bf16.xpose.msra.mxu0 0
        %714 = vmatprep.subr.bf16.mxu0 0
        %715 = vmatpush1.bf16.xpose.msra.mxu0 0
        %716 = vmatprep.subr.bf16.mxu0 0
        %717 = vmatpush1.bf16.xpose.msra.mxu0 0
        %718 = vmatprep.subr.bf16.mxu0 0
        %719 = vmatpush1.bf16.xpose.msra.mxu0 0
        %720 = vmatprep.subr.bf16.mxu0 0
        %721 = vmatpush1.bf16.xpose.msra.mxu0 0
        %722 = vmatprep.subr.bf16.mxu0 0
        %723 = vmatpush1.bf16.xpose.msra.mxu0 0
        %724 = vmatprep.subr.bf16.mxu0 0
        %725 = vmatpush1.bf16.xpose.msra.mxu0 0
        %726 = vmatprep.subr.bf16.mxu0 0
        %727 = vmatpush1.bf16.xpose.msra.mxu0 0
        %728 = vmatprep.subr.bf16.mxu0 0
        %729 = vmatpush1.bf16.xpose.msra.mxu0 0
        %730 = vmatprep.subr.bf16.mxu0 0
        %731 = vmatpush1.bf16.xpose.msra.mxu0 0
        %732 = vmatprep.mubr.bf16.mxu0 0
        %733 = vmatmul.mubr.bf16.gmra.mrb[0].mxu0 %v695
        %v734 = vpop.f32.mrb[0].mxu0
        %v735 = vadd.f32 0.0, %v734
        %v736 = vpop.f32.mrb[0].mxu0
        %v737 = vpop.f32.mrb[0].mxu0
        %v738 = vpop.f32.mrb[0].mxu0
        %739 = vdwg.mxu0
        %740 = vrot.lane.b32.xlu0 %v594, 96
        %v741 = vpop.permute.xlu0 %740
        %v743 = vsel %vm597, %v594, 0
        %v746 = vsel %vm597, %v741, 0
        %748 = vmatprep.subr.bf16.mxu0 0
        %749 = vmatpush1.bf16.xpose.msra.mxu0 %v746
        %750 = vmatprep.subr.bf16.mxu0 0
        %751 = vmatpush1.bf16.xpose.msra.mxu0 0
        %752 = vmatprep.subr.bf16.mxu0 0
        %753 = vmatpush1.bf16.xpose.msra.mxu0 0
        %754 = vmatprep.subr.bf16.mxu0 0
        %755 = vmatpush1.bf16.xpose.msra.mxu0 0
        %756 = vmatprep.subr.bf16.mxu0 0
        %757 = vmatpush1.bf16.xpose.msra.mxu0 0
        %758 = vmatprep.subr.bf16.mxu0 0
        %759 = vmatpush1.bf16.xpose.msra.mxu0 0
        %760 = vmatprep.subr.bf16.mxu0 0
        %761 = vmatpush1.bf16.xpose.msra.mxu0 0
        %762 = vmatprep.subr.bf16.mxu0 0
        %763 = vmatpush1.bf16.xpose.msra.mxu0 0
        %764 = vmatprep.subr.bf16.mxu0 0
        %765 = vmatpush1.bf16.xpose.msra.mxu0 0
        %766 = vmatprep.subr.bf16.mxu0 0
        %767 = vmatpush1.bf16.xpose.msra.mxu0 0
        %768 = vmatprep.subr.bf16.mxu0 0
        %769 = vmatpush1.bf16.xpose.msra.mxu0 0
        %770 = vmatprep.subr.bf16.mxu0 0
        %771 = vmatpush1.bf16.xpose.msra.mxu0 0
        %772 = vmatprep.subr.bf16.mxu0 0
        %773 = vmatpush1.bf16.xpose.msra.mxu0 0
        %774 = vmatprep.subr.bf16.mxu0 0
        %775 = vmatpush1.bf16.xpose.msra.mxu0 0
        %776 = vmatprep.subr.bf16.mxu0 0
        %777 = vmatpush1.bf16.xpose.msra.mxu0 0
        %778 = vmatprep.subr.bf16.mxu0 0
        %779 = vmatpush1.bf16.xpose.msra.mxu0 0
        %780 = vmatprep.mubr.bf16.mxu0 0
        %781 = vmatmul.mubr.bf16.gmra.mrb[0].mxu0 %v743
        %v782 = vpop.f32.mrb[0].mxu0
        %v783 = vadd.f32 0.0, %v782
        %v784 = vpop.f32.mrb[0].mxu0
        %v785 = vpop.f32.mrb[0].mxu0
        %v786 = vpop.f32.mrb[0].mxu0
        %787 = vdwg.mxu0
        %v788 = vsel %vm597, %v639, -inf
        %789 = vmax.xlane.f32.xlu0 %v788
        %v790 = vpop.xlane.xlu0 %789
        %v791 = vsel %vm597, %v687, -inf
        %792 = vmax.xlane.f32.xlu0 %v791
        %v793 = vpop.xlane.xlu0 %792
        %v794 = vsel %vm597, %v735, -inf
        %795 = vmax.xlane.f32.xlu0 %v794
        %v796 = vpop.xlane.xlu0 %795
        %v797 = vsel %vm597, %v783, -inf
        %798 = vmax.xlane.f32.xlu0 %v797
        %v799 = vpop.xlane.xlu0 %798
        %v800 = vsub.f32 %v639, %v790
        %v801 = vsub.f32 %v687, %v793
        %v802 = vsub.f32 %v735, %v796
        %v803 = vsub.f32 %v783, %v799
        %v804 = vmul.f32 %v800, 1.442695
        %v805 = vpow.pop %v804
        %v806 = vmul.f32 %v801, 1.442695
        %v807 = vpow.pop %v806
        %v808 = vmul.f32 %v802, 1.442695
        %v809 = vpow.pop %v808
        %v810 = vmul.f32 %v803, 1.442695
        %v811 = vpow.pop %v810
        %v812 = vsel %vm597, %v805, 0.0
        %813 = vadd.xlane.f32.xlu0 %v812
        %v814 = vpop.xlane.xlu0 %813
        %v815 = vsel %vm597, %v807, 0.0
        %816 = vadd.xlane.f32.xlu0 %v815
        %v817 = vpop.xlane.xlu0 %816
        %v818 = vsel %vm597, %v809, 0.0
        %819 = vadd.xlane.f32.xlu0 %v818
        %v820 = vpop.xlane.xlu0 %819
        %v821 = vsel %vm597, %v811, 0.0
        %822 = vadd.xlane.f32.xlu0 %v821
        %v823 = vpop.xlane.xlu0 %822
        %v824 = vpack.c.bf16 %v805, %v805
        %v825 = vpack.c.bf16 %v807, %v807
        %v826 = vpack.c.bf16 %v809, %v809
        %v827 = vpack.c.bf16 %v811, %v811
        %828 = vrot.lane.b32.xlu0 %v587, 64
        %v829 = vpop.permute.xlu0 %828
        %v831 = vsel %vm597, %v824, 0
        %vm833 = vcmask 1043456
        %v835 = vsel %vm833, %v829, 0
        %837 = vmatprep.subr.bf16.mxu0 0
        %838 = vmatpush1.bf16.msra.mxu0 %v835
        %839 = vmatprep.subr.bf16.mxu0 0
        %840 = vmatpush1.bf16.msra.mxu0 0
        %841 = vmatprep.subr.bf16.mxu0 0
        %842 = vmatpush1.bf16.msra.mxu0 0
        %843 = vmatprep.subr.bf16.mxu0 0
        %844 = vmatpush1.bf16.msra.mxu0 0
        %845 = vmatprep.subr.bf16.mxu0 0
        %846 = vmatpush1.bf16.msra.mxu0 0
        %847 = vmatprep.subr.bf16.mxu0 0
        %848 = vmatpush1.bf16.msra.mxu0 0
        %849 = vmatprep.subr.bf16.mxu0 0
        %850 = vmatpush1.bf16.msra.mxu0 0
        %851 = vmatprep.subr.bf16.mxu0 0
        %852 = vmatpush1.bf16.msra.mxu0 0
        %853 = vmatprep.subr.bf16.mxu0 0
        %854 = vmatpush1.bf16.msra.mxu0 0
        %855 = vmatprep.subr.bf16.mxu0 0
        %856 = vmatpush1.bf16.msra.mxu0 0
        %857 = vmatprep.subr.bf16.mxu0 0
        %858 = vmatpush1.bf16.msra.mxu0 0
        %859 = vmatprep.subr.bf16.mxu0 0
        %860 = vmatpush1.bf16.msra.mxu0 0
        %861 = vmatprep.subr.bf16.mxu0 0
        %862 = vmatpush1.bf16.msra.mxu0 0
        %863 = vmatprep.subr.bf16.mxu0 0
        %864 = vmatpush1.bf16.msra.mxu0 0
        %865 = vmatprep.subr.bf16.mxu0 0
        %866 = vmatpush1.bf16.msra.mxu0 0
        %867 = vmatprep.subr.bf16.mxu0 0
        %868 = vmatpush1.bf16.msra.mxu0 0
        %869 = vmatprep.mubr.bf16.mxu0 0
        %870 = vmatmul.mubr.bf16.gmra.mrb[0].mxu0 %v831
        %v871 = vpop.f32.mrb[0].mxu0
        %v872 = vadd.f32 0.0, %v871
        %v873 = vpop.f32.mrb[0].mxu0
        %v874 = vpop.f32.mrb[0].mxu0
        %v875 = vpop.f32.mrb[0].mxu0
        %876 = vdwg.mxu0
        %877 = vrot.lane.b32.xlu0 %v590, 64
        %v878 = vpop.permute.xlu0 %877
        %v880 = vsel %vm597, %v825, 0
        %v883 = vsel %vm833, %v878, 0
        %885 = vmatprep.subr.bf16.mxu0 0
        %886 = vmatpush1.bf16.msra.mxu0 %v883
        %887 = vmatprep.subr.bf16.mxu0 0
        %888 = vmatpush1.bf16.msra.mxu0 0
        %889 = vmatprep.subr.bf16.mxu0 0
        %890 = vmatpush1.bf16.msra.mxu0 0
        %891 = vmatprep.subr.bf16.mxu0 0
        %892 = vmatpush1.bf16.msra.mxu0 0
        %893 = vmatprep.subr.bf16.mxu0 0
        %894 = vmatpush1.bf16.msra.mxu0 0
        %895 = vmatprep.subr.bf16.mxu0 0
        %896 = vmatpush1.bf16.msra.mxu0 0
        %897 = vmatprep.subr.bf16.mxu0 0
        %898 = vmatpush1.bf16.msra.mxu0 0
        %899 = vmatprep.subr.bf16.mxu0 0
        %900 = vmatpush1.bf16.msra.mxu0 0
        %901 = vmatprep.subr.bf16.mxu0 0
        %902 = vmatpush1.bf16.msra.mxu0 0
        %903 = vmatprep.subr.bf16.mxu0 0
        %904 = vmatpush1.bf16.msra.mxu0 0
        %905 = vmatprep.subr.bf16.mxu0 0
        %906 = vmatpush1.bf16.msra.mxu0 0
        %907 = vmatprep.subr.bf16.mxu0 0
        %908 = vmatpush1.bf16.msra.mxu0 0
        %909 = vmatprep.subr.bf16.mxu0 0
        %910 = vmatpush1.bf16.msra.mxu0 0
        %911 = vmatprep.subr.bf16.mxu0 0
        %912 = vmatpush1.bf16.msra.mxu0 0
        %913 = vmatprep.subr.bf16.mxu0 0
        %914 = vmatpush1.bf16.msra.mxu0 0
        %915 = vmatprep.subr.bf16.mxu0 0
        %916 = vmatpush1.bf16.msra.mxu0 0
        %917 = vmatprep.mubr.bf16.mxu0 0
        %918 = vmatmul.mubr.bf16.gmra.mrb[0].mxu0 %v880
        %v919 = vpop.f32.mrb[0].mxu0
        %v920 = vadd.f32 0.0, %v919
        %v921 = vpop.f32.mrb[0].mxu0
        %v922 = vpop.f32.mrb[0].mxu0
        %v923 = vpop.f32.mrb[0].mxu0
        %924 = vdwg.mxu0
        %925 = vrot.lane.b32.xlu0 %v592, 64
        %v926 = vpop.permute.xlu0 %925
        %v928 = vsel %vm597, %v826, 0
        %v931 = vsel %vm833, %v926, 0
        %933 = vmatprep.subr.bf16.mxu0 0
        %934 = vmatpush1.bf16.msra.mxu0 %v931
        %935 = vmatprep.subr.bf16.mxu0 0
        %936 = vmatpush1.bf16.msra.mxu0 0
        %937 = vmatprep.subr.bf16.mxu0 0
        %938 = vmatpush1.bf16.msra.mxu0 0
        %939 = vmatprep.subr.bf16.mxu0 0
        %940 = vmatpush1.bf16.msra.mxu0 0
        %941 = vmatprep.subr.bf16.mxu0 0
        %942 = vmatpush1.bf16.msra.mxu0 0
        %943 = vmatprep.subr.bf16.mxu0 0
        %944 = vmatpush1.bf16.msra.mxu0 0
        %945 = vmatprep.subr.bf16.mxu0 0
        %946 = vmatpush1.bf16.msra.mxu0 0
        %947 = vmatprep.subr.bf16.mxu0 0
        %948 = vmatpush1.bf16.msra.mxu0 0
        %949 = vmatprep.subr.bf16.mxu0 0
        %950 = vmatpush1.bf16.msra.mxu0 0
        %951 = vmatprep.subr.bf16.mxu0 0
        %952 = vmatpush1.bf16.msra.mxu0 0
        %953 = vmatprep.subr.bf16.mxu0 0
        %954 = vmatpush1.bf16.msra.mxu0 0
        %955 = vmatprep.subr.bf16.mxu0 0
        %956 = vmatpush1.bf16.msra.mxu0 0
        %957 = vmatprep.subr.bf16.mxu0 0
        %958 = vmatpush1.bf16.msra.mxu0 0
        %959 = vmatprep.subr.bf16.mxu0 0
        %960 = vmatpush1.bf16.msra.mxu0 0
        %961 = vmatprep.subr.bf16.mxu0 0
        %962 = vmatpush1.bf16.msra.mxu0 0
        %963 = vmatprep.subr.bf16.mxu0 0
        %964 = vmatpush1.bf16.msra.mxu0 0
        %965 = vmatprep.mubr.bf16.mxu0 0
        %966 = vmatmul.mubr.bf16.gmra.mrb[0].mxu0 %v928
        %v967 = vpop.f32.mrb[0].mxu0
        %v968 = vadd.f32 0.0, %v967
        %v969 = vpop.f32.mrb[0].mxu0
        %v970 = vpop.f32.mrb[0].mxu0
        %v971 = vpop.f32.mrb[0].mxu0
        %972 = vdwg.mxu0
        %973 = vrot.lane.b32.xlu0 %v594, 64
        %v974 = vpop.permute.xlu0 %973
        %v976 = vsel %vm597, %v827, 0
        %v979 = vsel %vm833, %v974, 0
        %981 = vmatprep.subr.bf16.mxu0 0
        %982 = vmatpush1.bf16.msra.mxu0 %v979
        %983 = vmatprep.subr.bf16.mxu0 0
        %984 = vmatpush1.bf16.msra.mxu0 0
        %985 = vmatprep.subr.bf16.mxu0 0
        %986 = vmatpush1.bf16.msra.mxu0 0
        %987 = vmatprep.subr.bf16.mxu0 0
        %988 = vmatpush1.bf16.msra.mxu0 0
        %989 = vmatprep.subr.bf16.mxu0 0
        %990 = vmatpush1.bf16.msra.mxu0 0
        %991 = vmatprep.subr.bf16.mxu0 0
        %992 = vmatpush1.bf16.msra.mxu0 0
        %993 = vmatprep.subr.bf16.mxu0 0
        %994 = vmatpush1.bf16.msra.mxu0 0
        %995 = vmatprep.subr.bf16.mxu0 0
        %996 = vmatpush1.bf16.msra.mxu0 0
        %997 = vmatprep.subr.bf16.mxu0 0
        %998 = vmatpush1.bf16.msra.mxu0 0
        %999 = vmatprep.subr.bf16.mxu0 0
        %1000 = vmatpush1.bf16.msra.mxu0 0
        %1001 = vmatprep.subr.bf16.mxu0 0
        %1002 = vmatpush1.bf16.msra.mxu0 0
        %1003 = vmatprep.subr.bf16.mxu0 0
        %1004 = vmatpush1.bf16.msra.mxu0 0
        %1005 = vmatprep.subr.bf16.mxu0 0
        %1006 = vmatpush1.bf16.msra.mxu0 0
        %1007 = vmatprep.subr.bf16.mxu0 0
        %1008 = vmatpush1.bf16.msra.mxu0 0
        %1009 = vmatprep.subr.bf16.mxu0 0
        %1010 = vmatpush1.bf16.msra.mxu0 0
        %1011 = vmatprep.subr.bf16.mxu0 0
        %1012 = vmatpush1.bf16.msra.mxu0 0
        %1013 = vmatprep.mubr.bf16.mxu0 0
        %1014 = vmatmul.mubr.bf16.gmra.mrb[0].mxu0 %v976
        %v1015 = vpop.f32.mrb[0].mxu0
        %v1016 = vadd.f32 0.0, %v1015
        %v1017 = vpop.f32.mrb[0].mxu0
        %v1018 = vpop.f32.mrb[0].mxu0
        %v1019 = vpop.f32.mrb[0].mxu0
        %1020 = vdwg.mxu0
        %v1021 = vrcp.pop %v814
        %v1022 = vrcp.pop %v817
        %v1023 = vrcp.pop %v820
        %v1024 = vrcp.pop %v823
        %v1025 = vmul.f32 %v872, %v1021
        %v1026 = vmul.f32 %v920, %v1022
        %v1027 = vmul.f32 %v968, %v1023
        %v1028 = vmul.f32 %v1016, %v1024
        %1030 = vrot.lane.b32.xlu0 %v1026, 8
        %v1031 = vpop.permute.xlu0 %1030
        %1034 = vrot.lane.b32.xlu0 %v1027, 16
        %v1035 = vpop.permute.xlu0 %1034
        %1038 = vrot.lane.b32.xlu0 %v1028, 24
        %v1039 = vpop.permute.xlu0 %1038
        %v1041 = vsel %vm597, %v1025, %v1031
        %vm1042 = vcmask 130048
        %v1043 = vsel %vm1042, %v1041, %v1035
        %vm1044 = vcmask 195584
        %v1045 = vsel %vm1044, %v1043, %v1039
        %v1046 = vpack.c.bf16 %v1045, %v1045
        %v1047 = vld [vmem:[%s5] sm:$0xf]
        %v1048 = vld [vmem:[%s5 + $0x4] sm:$0xf]
        %v1049 = vld [vmem:[%s5 + $0x8] sm:$0xf]
        %v1050 = vld [vmem:[%s5 + $0xc] sm:$0xf]
        %v1051 = vld [vmem:[#allocation5] sm:$0x1]
        %v1053 = vlaneseq
        %v1054 = vshrl.u32 %v1053, 7
        %v1055 = vsub.s32 0, %v1054
        %v1056 = vrot.slane %v1051, %v1055
        %v1062 = vunpack.c.l.b16 %v1047
        %v1063 = vunpack.c.l.b16 %v1048
        %v1064 = vunpack.c.l.b16 %v1049
        %v1065 = vunpack.c.l.b16 %v1050
        %v1066 = vpack.c.b16 %v1063, %v1062
        %v1067 = vpack.c.b16 %v1065, %v1064
        %v1071 = vsel %vm491, %v1046, 0
        %1073 = vmatprep.subr.bf16.mxu0 0
        %1074 = vmatpush1.bf16.msra.mxu0 %v1066
        %1075 = vmatprep.subr.bf16.mxu0 0
        %1076 = vmatpush1.bf16.msra.mxu0 %v1067
        %1077 = vmatprep.subr.bf16.mxu0 0
        %1078 = vmatpush1.bf16.msra.mxu0 0
        %1079 = vmatprep.subr.bf16.mxu0 0
        %1080 = vmatpush1.bf16.msra.mxu0 0
        %1081 = vmatprep.subr.bf16.mxu0 0
        %1082 = vmatpush1.bf16.msra.mxu0 0
        %1083 = vmatprep.subr.bf16.mxu0 0
        %1084 = vmatpush1.bf16.msra.mxu0 0
        %1085 = vmatprep.subr.bf16.mxu0 0
        %1086 = vmatpush1.bf16.msra.mxu0 0
        %1087 = vmatprep.subr.bf16.mxu0 0
        %1088 = vmatpush1.bf16.msra.mxu0 0
        %1089 = vmatprep.subr.bf16.mxu0 0
        %1090 = vmatpush1.bf16.msra.mxu0 0
        %1091 = vmatprep.subr.bf16.mxu0 0
        %1092 = vmatpush1.bf16.msra.mxu0 0
        %1093 = vmatprep.subr.bf16.mxu0 0
        %1094 = vmatpush1.bf16.msra.mxu0 0
        %1095 = vmatprep.subr.bf16.mxu0 0
        %1096 = vmatpush1.bf16.msra.mxu0 0
        %1097 = vmatprep.subr.bf16.mxu0 0
        %1098 = vmatpush1.bf16.msra.mxu0 0
        %1099 = vmatprep.subr.bf16.mxu0 0
        %1100 = vmatpush1.bf16.msra.mxu0 0
        %1101 = vmatprep.subr.bf16.mxu0 0
        %1102 = vmatpush1.bf16.msra.mxu0 0
        %1103 = vmatprep.subr.bf16.mxu0 0
        %1104 = vmatpush1.bf16.msra.mxu0 0
        %1105 = vmatprep.mubr.bf16.mxu0 0
        %1106 = vmatmul.mubr.bf16.gmra.mrb[0].mxu0 %v1071
        %v1107 = vpop.f32.mrb[0].mxu0
        %v1108 = vadd.f32 %v1056, %v1107
        %v1109 = vpop.f32.mrb[0].mxu0
        %v1110 = vpop.f32.mrb[0].mxu0
        %v1111 = vpop.f32.mrb[0].mxu0
        %1112 = vdwg.mxu0
        %v1113 = vadd.f32 %v519, %v1108
        %v1114 = vld [vmem:[#allocation7] sm:$0x1]
        %v1115 = vld [vmem:[#allocation8] sm:$0x1]
        %v1116 = vsel %vm491, %v1113, 0.0
        %1117 = vadd.xlane.f32.xlu0 %v1116
        %v1118 = vpop.xlane.xlu0 %1117
        %v1119 = vmul.f32 %v1118, %v495
        %v1120 = vsub.f32 %v1113, %v1119
        %v1121 = vmul.f32 %v1120, %v1120
        %v1122 = vsel %vm491, %v1121, 0.0
        %1123 = vadd.xlane.f32.xlu0 %v1122
        %v1124 = vpop.xlane.xlu0 %1123
        %v1125 = vmul.f32 %v1124, %v495
        %v1126 = vadd.f32 %v1125, 1e-05
        %v1127 = vrsqrt.pop %v1126
        %v1128 = vmul.f32 %v1120, %v1127
        %v1130 = vlaneseq
        %v1131 = vshrl.u32 %v1130, 7
        %v1132 = vsub.s32 0, %v1131
        %v1133 = vrot.slane %v1114, %v1132
        %v1135 = vmul.f32 %v1128, %v1133
        %v1137 = vlaneseq
        %v1138 = vshrl.u32 %v1137, 7
        %v1139 = vsub.s32 0, %v1138
        %v1140 = vrot.slane %v1115, %v1139
        %v1142 = vadd.f32 %v1135, %v1140
        %v1143 = vpack.c.bf16 %v1142, %v1142
        %v1144 = vld [vmem:[%s9] sm:$0xf]
        %v1145 = vld [vmem:[%s9 + $0x4] sm:$0xf]
        %v1146 = vld [vmem:[%s9 + $0x8] sm:$0xf]
        %v1147 = vld [vmem:[%s9 + $0xc] sm:$0xf]
        %v1148 = vld [vmem:[%s10] sm:$0x1]
        %v1150 = vlaneseq
        %v1151 = vshrl.u32 %v1150, 7
        %v1152 = vsub.s32 0, %v1151
        %v1153 = vrot.slane %v1148, %v1152
        %v1159 = vunpack.c.l.b16 %v1144
        %v1160 = vunpack.c.l.b16 %v1145
        %v1161 = vunpack.c.l.b16 %v1146
        %v1162 = vunpack.c.l.b16 %v1147
        %v1163 = vpack.c.b16 %v1160, %v1159
        %v1164 = vpack.c.b16 %v1162, %v1161
        %v1168 = vsel %vm491, %v1143, 0
        %1170 = vmatprep.subr.bf16.mxu0 0
        %1171 = vmatpush1.bf16.msra.mxu0 %v1163
        %1172 = vmatprep.subr.bf16.mxu0 0
        %1173 = vmatpush1.bf16.msra.mxu0 %v1164
        %1174 = vmatprep.subr.bf16.mxu0 0
        %1175 = vmatpush1.bf16.msra.mxu0 0
        %1176 = vmatprep.subr.bf16.mxu0 0
        %1177 = vmatpush1.bf16.msra.mxu0 0
        %1178 = vmatprep.subr.bf16.mxu0 0
        %1179 = vmatpush1.bf16.msra.mxu0 0
        %1180 = vmatprep.subr.bf16.mxu0 0
        %1181 = vmatpush1.bf16.msra.mxu0 0
        %1182 = vmatprep.subr.bf16.mxu0 0
        %1183 = vmatpush1.bf16.msra.mxu0 0
        %1184 = vmatprep.subr.bf16.mxu0 0
        %1185 = vmatpush1.bf16.msra.mxu0 0
        %1186 = vmatprep.subr.bf16.mxu0 0
        %1187 = vmatpush1.bf16.msra.mxu0 0
        %1188 = vmatprep.subr.bf16.mxu0 0
        %1189 = vmatpush1.bf16.msra.mxu0 0
        %1190 = vmatprep.subr.bf16.mxu0 0
        %1191 = vmatpush1.bf16.msra.mxu0 0
        %1192 = vmatprep.subr.bf16.mxu0 0
        %1193 = vmatpush1.bf16.msra.mxu0 0
        %1194 = vmatprep.subr.bf16.mxu0 0
        %1195 = vmatpush1.bf16.msra.mxu0 0
        %1196 = vmatprep.subr.bf16.mxu0 0
        %1197 = vmatpush1.bf16.msra.mxu0 0
        %1198 = vmatprep.subr.bf16.mxu0 0
        %1199 = vmatpush1.bf16.msra.mxu0 0
        %1200 = vmatprep.subr.bf16.mxu0 0
        %1201 = vmatpush1.bf16.msra.mxu0 0
        %1202 = vmatprep.mubr.bf16.mxu0 0
        %1203 = vmatmul.mubr.bf16.gmra.mrb[0].mxu0 %v1168
        %v1204 = vpop.f32.mrb[0].mxu0
        %v1205 = vadd.f32 %v1153, %v1204
        %v1206 = vpop.f32.mrb[0].mxu0
        %v1207 = vpop.f32.mrb[0].mxu0
        %v1208 = vpop.f32.mrb[0].mxu0
        %1209 = vdwg.mxu0
        %v1210 = vxor.u32 %v1205, 2147483648
        %v1211 = vmul.f32 %v1210, 1.442695
        %v1212 = vpow.pop %v1211
        %v1213 = vadd.f32 %v1212, 1.0
        %v1214 = vrcp.pop %v1213
        %v1215 = vmul.f32 1.0, %v1214
        %v1216 = vmul.f32 %v1205, %v1215
        %1218 = vrot.lane.b32.xlu0 %v1205, 64
        %v1219 = vpop.permute.xlu0 %1218
        %v1221 = vmul.f32 %v1216, %v1219
        %v1222 = vpack.c.bf16 %v1221, %v1221
        %v1223 = vld [vmem:[%s11] sm:$0xf]
        %v1224 = vld [vmem:[%s11 + $0x4] sm:$0xf]
        %v1225 = vld [vmem:[%s11 + $0x8] sm:$0xf]
        %v1226 = vld [vmem:[%s11 + $0xc] sm:$0xf]
        %v1227 = vld [vmem:[%s11 + $0x10] sm:$0xf]
        %v1228 = vld [vmem:[%s11 + $0x14] sm:$0xf]
        %v1229 = vld [vmem:[%s11 + $0x18] sm:$0xf]
        %v1230 = vld [vmem:[%s11 + $0x1c] sm:$0xf]
        %v1231 = vld [vmem:[%s12] sm:$0x1]
        %v1233 = vlaneseq
        %v1234 = vshrl.u32 %v1233, 7
        %v1235 = vsub.s32 0, %v1234
        %v1236 = vrot.slane %v1231, %v1235
        %v1246 = vunpack.c.l.b16 %v1223
        %v1247 = vunpack.c.l.b16 %v1224
        %v1248 = vunpack.c.l.b16 %v1225
        %v1249 = vunpack.c.l.b16 %v1226
        %v1250 = vunpack.c.l.b16 %v1227
        %v1251 = vunpack.c.l.b16 %v1228
        %v1252 = vunpack.c.l.b16 %v1229
        %v1253 = vunpack.c.l.b16 %v1230
        %v1254 = vpack.c.b16 %v1247, %v1246
        %v1255 = vpack.c.b16 %v1249, %v1248
        %v1256 = vpack.c.b16 %v1251, %v1250
        %v1257 = vpack.c.b16 %v1253, %v1252
        %vm1262 = vcmask 523264
        %v1264 = vsel %vm1262, %v1222, 0
        %1266 = vmatprep.subr.bf16.mxu0 0
        %1267 = vmatpush1.bf16.msra.mxu0 %v1254
        %1268 = vmatprep.subr.bf16.mxu0 0
        %1269 = vmatpush1.bf16.msra.mxu0 %v1255
        %1270 = vmatprep.subr.bf16.mxu0 0
        %1271 = vmatpush1.bf16.msra.mxu0 %v1256
        %1272 = vmatprep.subr.bf16.mxu0 0
        %1273 = vmatpush1.bf16.msra.mxu0 %v1257
        %1274 = vmatprep.subr.bf16.mxu0 0
        %1275 = vmatpush1.bf16.msra.mxu0 0
        %1276 = vmatprep.subr.bf16.mxu0 0
        %1277 = vmatpush1.bf16.msra.mxu0 0
        %1278 = vmatprep.subr.bf16.mxu0 0
        %1279 = vmatpush1.bf16.msra.mxu0 0
        %1280 = vmatprep.subr.bf16.mxu0 0
        %1281 = vmatpush1.bf16.msra.mxu0 0
        %1282 = vmatprep.subr.bf16.mxu0 0
        %1283 = vmatpush1.bf16.msra.mxu0 0
        %1284 = vmatprep.subr.bf16.mxu0 0
        %1285 = vmatpush1.bf16.msra.mxu0 0
        %1286 = vmatprep.subr.bf16.mxu0 0
        %1287 = vmatpush1.bf16.msra.mxu0 0
        %1288 = vmatprep.subr.bf16.mxu0 0
        %1289 = vmatpush1.bf16.msra.mxu0 0
        %1290 = vmatprep.subr.bf16.mxu0 0
        %1291 = vmatpush1.bf16.msra.mxu0 0
        %1292 = vmatprep.subr.bf16.mxu0 0
        %1293 = vmatpush1.bf16.msra.mxu0 0
        %1294 = vmatprep.subr.bf16.mxu0 0
        %1295 = vmatpush1.bf16.msra.mxu0 0
        %1296 = vmatprep.subr.bf16.mxu0 0
        %1297 = vmatpush1.bf16.msra.mxu0 0
        %1298 = vmatprep.mubr.bf16.mxu0 0
        %1299 = vmatmul.mubr.bf16.gmra.mrb[0].mxu0 %v1264
        %v1300 = vpop.f32.mrb[0].mxu0
        %v1301 = vadd.f32 %v1236, %v1300
        %v1302 = vpop.f32.mrb[0].mxu0
        %v1303 = vpop.f32.mrb[0].mxu0
        %v1304 = vpop.f32.mrb[0].mxu0
        %1305 = vdwg.mxu0
        %v1306 = vadd.f32 %v1142, %v1301
        %1307 = vst.msk [vmem:[%s482] sm:$0xff] %vm491, %v1306
        %s1308 = sand.u32 %s316, 1
        %s1309 = scalar_lea.sflag [#allocation4], %s1308
        %s1310 = sand.u32 %s316, 1
        %s1311 = smul.addr %s1310, 8
        %s1312 = scalar_lea.vmem [#allocation10], %s1311
        // Predicated region
        $region89: #{tpu_custom_call.1} parent=71 // pred_check
          %p1313 = pneg %p326
        $region90: #{tpu_custom_call.1} parent=71 // pred_check_branch
          %1315 = sbr.rel (%p1313) target = $region92
        $region91: #{tpu_custom_call.1} parent=71 // pred_region
          %s1317 = ssub.s32 128, 128
          %1318 = vsyncadd %s1309, %s1317
          %s1319 = smul.addr %s30, 128
          %s1320 = scalar_lea.hbm %s13, %s1319
          %s1322 = sshll.u32 %s1312, 4
          %s1323 = int_to_ptr.vmem [resolvable:$true] %s1322
          %1325 = dma.vmem_to_hbm [thread:$0]  %s1323, 128, %s1320, %s1309
        $region92: #{tpu_custom_call.1} parent=71 // pred_fallthru
          _
      $region72: #{tpu_custom_call.1} parent=5 // pred_fallthru
        _
      %p1326 = scmp.le.s32.totalorder 2, %s25
      // Predicated region
      $region93: #{tpu_custom_call.1} parent=5 // pred_check
        %p1327 = pneg %p1326
      $region94: #{tpu_custom_call.1} parent=5 // pred_check_branch
        %1329 = sbr.rel (%p1327) target = $region96
      $region95: #{tpu_custom_call.1} parent=5 // pred_region
        %s1330 = ssub.s32 %s25, 2
        // Predicated region
        $region97: #{tpu_custom_call.1} parent=95 // pred_check
          %p1331 = pneg %p332
        $region98: #{tpu_custom_call.1} parent=95 // pred_check_branch
          %1333 = sbr.rel (%p1331) target = $region100
        $region99: #{tpu_custom_call.1} parent=95 // pred_region
          %s1334 = sand.u32 %s317, 1
          %s1335 = scalar_lea.sflag [#allocation4], %s1334
          %s1336 = sand.u32 %s317, 1
          %s1337 = smul.addr %s1336, 8
          %s1338 = scalar_lea.vmem [#allocation10], %s1337
          %1339 = dma.done %s1335, 128
        $region100: #{tpu_custom_call.1} parent=95 // pred_fallthru
          _
      $region96: #{tpu_custom_call.1} parent=5 // pred_fallthru
        _
    $region6: #{tpu_custom_call.1} parent=1 // loop_footer
      %s29 = sadd.s32 1, %s25
    $region7: #{tpu_custom_call.1} parent=1 // loop_footer_branch
      %24 = sbr.rel target = $region3
    $region8: #{tpu_custom_call.1} parent=1 // loop_exit
      _
    %1340 = vsyncpa [#allocation3], 1
    %s1341 = scalar_lea.sflag [#allocation3], 1
    %1342 = vsyncpa %s1341, 1
    %1343 = vsyncpa [#allocation6], 1
    %1344 = vsyncpa [#allocation9], 1
    %1345 = vsyncpa [#allocation4], 1
    %s1346 = scalar_lea.sflag [#allocation4], 1
    %1347 = vsyncpa %s1346, 1

// kernel: tpu_custom_call.1
$region0: #{tpu_custom_call.1}
  #allocation0 [shape = 'u32[]', space=smem, size = 0x4, offset = 0x4, fixed_abs, tag = 'smem constant byte address 0x4 - core index']
  #allocation1 [shape = 'u32[144,128]{1,0:T(1,128)}', space=vmem, size = 0x12000, scoped, tag = 'internal scratch']
  %s0 = inlined_call_operand.vmem [shape: f32[2,8,32], index: 0, kind: input, shape index: {}]
  %s1 = inlined_call_operand.vmem [shape: f32[1,32], index: 1, kind: input, shape index: {}]
  %s2 = inlined_call_operand.vmem [shape: f32[1,32], index: 2, kind: input, shape index: {}]
  %s3 = inlined_call_operand.vmem [shape: bf16[32,96], index: 3, kind: input, shape index: {}]
  %s4 = inlined_call_operand.hbm [shape: f32[1,96], index: 4, kind: input, shape index: {}]
  %s5 = inlined_call_operand.vmem [shape: bf16[32,32], index: 5, kind: input, shape index: {}]
  %s6 = inlined_call_operand.hbm [shape: f32[1,32], index: 6, kind: input, shape index: {}]
  %s7 = inlined_call_operand.hbm [shape: f32[1,32], index: 7, kind: input, shape index: {}]
  %s8 = inlined_call_operand.hbm [shape: f32[1,32], index: 8, kind: input, shape index: {}]
  %s9 = inlined_call_operand.vmem [shape: bf16[32,128], index: 9, kind: input, shape index: {}]
  %s10 = inlined_call_operand.vmem [shape: f32[1,128], index: 10, kind: input, shape index: {}]
  %s11 = inlined_call_operand.vmem [shape: bf16[64,32], index: 11, kind: input, shape index: {}]
  %s12 = inlined_call_operand.vmem [shape: f32[1,32], index: 12, kind: input, shape index: {}]
  %s13 = inlined_call_operand.hbm [shape: f32[2,8,32], index: 13, kind: output, shape index: {}]
  %s14 = sld [smem:[#allocation0]]
  $region101: #{tpu_custom_call.1} parent=0
    _
  %s16 = ssub.s32 1, %s14
  %s17 = scalar_select 0, %s16, %s14
  $region1: #{tpu_custom_call.1} parent=0
    #allocation2 [shape = 'u8[512]{0}', space=vmem, size = 0x400, scoped, tag = 'input window, operand 4, single buffered']
    #allocation3 [shape = 's32[2]{0}', space=sflag, size = 0x8, scoped, tag = 'scoped memory for tpu_custom_call.1']
    #allocation4 [shape = 's32[2]{0}', space=sflag, size = 0x8, scoped, tag = 'scoped memory for tpu_custom_call.1']
    #allocation5 [shape = 'u8[512]{0}', space=vmem, size = 0x400, scoped, tag = 'input window, operand 6, single buffered']
    #allocation6 [shape = 's32[1]{0}', space=sflag, size = 0x4, scoped, tag = 'scoped memory for tpu_custom_call.1']
    #allocation7 [shape = 'u8[512]{0}', space=vmem, size = 0x400, scoped, tag = 'input window, operand 7, single buffered']
    #allocation8 [shape = 'u8[512]{0}', space=vmem, size = 0x400, scoped, tag = 'input window, operand 8, single buffered']
    #allocation9 [shape = 's32[1]{0}', space=sflag, size = 0x4, scoped, tag = 'scoped memory for tpu_custom_call.1']
    #allocation10 [shape = 'u8[8192]{0}', space=vmem, size = 0x2000, scoped, tag = 'output window, operand 0']
    %18 = vsyncpa [#allocation3], 0
    %19 = vsyncpa [#allocation6], 0
    %20 = vsyncpa [#allocation9], 0
    %21 = vsyncpa [#allocation4], 0
    %s22 = scalar_lea.sflag [#allocation4], 1
    %23 = vsyncpa %s22, 0
    loop: start=0, step=1, limit=4
    $region2: #{tpu_custom_call.1} parent=1 // loop_pre_header
      _
    $region3: #{tpu_custom_call.1} parent=1 // loop_header
      %s25 = sphi 0, %s29
      %p26 = scmp.ge.s32.totalorder %s25, 4
      %s35 = sphi 0, %s37
      %s38 = sphi 0, %s35
      %s39 = sphi 0, %s38
      %s55 = sphi 0, %s39
      %s59 = sphi 0, %s59
      %s61 = sphi 0, %s59
      %s62 = sphi 0, %s61
      %s76 = sphi 0, %s62
      %s80 = sphi 0, %s80
      %s82 = sphi 0, %s80
      %s83 = sphi 0, %s82
      %s97 = sphi 0, %s83
      %s101 = sphi 0, %s101
      %s103 = sphi 0, %s101
      %s104 = sphi 0, %s103
      %s118 = sphi 0, %s104
      %s122 = sphi 0, %s122
      %s124 = sphi 0, %s122
      %s125 = sphi 0, %s124
      %s139 = sphi 0, %s125
      %s143 = sphi 0, %s143
      %s145 = sphi 0, %s143
      %s146 = sphi 0, %s145
      %s160 = sphi 0, %s146
      %s164 = sphi 0, %s164
      %s166 = sphi 0, %s164
      %s167 = sphi 0, %s166
      %s181 = sphi 0, %s167
      %s185 = sphi 0, %s185
      %s187 = sphi 0, %s185
      %s188 = sphi 0, %s187
      %s202 = sphi 0, %s188
      %s206 = sphi 0, %s206
      %s208 = sphi 0, %s206
      %s209 = sphi 0, %s208
      %s223 = sphi 0, %s209
      %s227 = sphi 0, %s227
      %s229 = sphi 0, %s227
      %s230 = sphi 0, %s229
      %s244 = sphi 0, %s230
      %s248 = sphi 0, %s248
      %s250 = sphi 0, %s248
      %s251 = sphi 0, %s250
      %s265 = sphi 0, %s251
      %s269 = sphi 0, %s269
      %s271 = sphi 0, %s269
      %s272 = sphi 0, %s271
      %s286 = sphi 0, %s272
      %s290 = sphi 0, %s290
      %s292 = sphi 0, %s290
      %s293 = sphi 0, %s292
      %s307 = sphi 0, %s293
      %s313 = sphi 0, %s315
      %s316 = sphi 0, %s313
      %s317 = sphi 0, %s316
      %s333 = sphi 0, %s317
    $region4: #{tpu_custom_call.1} parent=1 // loop_header_branch
      %28 = sbr.rel (%p26) target = $region8
    $region5: #{tpu_custom_call.1} parent=1 // loop_body
      %s30 = ssub.s32 %s25, 1
      %s31 = ssub.s32 %s25, 2
      %s32 = sadd.s32 %s25, 1
      %s33 = ssub.s32 %s25, %s32
      %p34 = scmp.eq.s32.totalorder %s33, 0
      %s36 = sadd.s32 %s35, 1
      %s37 = scalar_select %p34, %s35, %s36
      %p40 = pneg %p34
      %p41 = scmp.eq.s32.totalorder %s25, 1
      %p42 = por %p40, %p41
      %p43 = scmp.ne.s32.totalorder %s35, %s38
      %p44 = scmp.eq.s32.totalorder %s25, 0
      %p45 = por %p43, %p44
      %p46 = scmp.ne.s32.totalorder %s35, %s38
      %p47 = scmp.eq.s32.totalorder %s30, 1
      %p48 = por %p46, %p47
      %p49 = scmp.ne.s32.totalorder %s38, %s39
      %p50 = scmp.eq.s32.totalorder %s30, 0
      %p51 = por %p49, %p50
      %p52 = scmp.ne.s32.totalorder %s38, %s39
      %p53 = scmp.eq.s32.totalorder %s31, 1
      %p54 = por %p52, %p53
      %p56 = scmp.ne.s32.totalorder %s39, %s55
      %p57 = scmp.eq.s32.totalorder %s31, 0
      %p58 = por %p56, %p57
      %s60 = sadd.s32 %s59, 1
      %p63 = scmp.eq.s32.totalorder %s25, 1
      %p64 = scmp.ne.s32.totalorder %s59, %s61
      %p65 = scmp.eq.s32.totalorder %s25, 0
      %p66 = por %p64, %p65
      %p67 = scmp.ne.s32.totalorder %s59, %s61
      %p68 = scmp.eq.s32.totalorder %s30, 1
      %p69 = por %p67, %p68
      %p70 = scmp.ne.s32.totalorder %s61, %s62
      %p71 = scmp.eq.s32.totalorder %s30, 0
      %p72 = por %p70, %p71
      %p73 = scmp.ne.s32.totalorder %s61, %s62
      %p74 = scmp.eq.s32.totalorder %s31, 1
      %p75 = por %p73, %p74
      %p77 = scmp.ne.s32.totalorder %s62, %s76
      %p78 = scmp.eq.s32.totalorder %s31, 0
      %p79 = por %p77, %p78
      %s81 = sadd.s32 %s80, 1
      %p84 = scmp.eq.s32.totalorder %s25, 1
      %p85 = scmp.ne.s32.totalorder %s80, %s82
      %p86 = scmp.eq.s32.totalorder %s25, 0
      %p87 = por %p85, %p86
      %p88 = scmp.ne.s32.totalorder %s80, %s82
      %p89 = scmp.eq.s32.totalorder %s30, 1
      %p90 = por %p88, %p89
      %p91 = scmp.ne.s32.totalorder %s82, %s83
      %p92 = scmp.eq.s32.totalorder %s30, 0
      %p93 = por %p91, %p92
      %p94 = scmp.ne.s32.totalorder %s82, %s83
      %p95 = scmp.eq.s32.totalorder %s31, 1
      %p96 = por %p94, %p95
      %p98 = scmp.ne.s32.totalorder %s83, %s97
      %p99 = scmp.eq.s32.totalorder %s31, 0
      %p100 = por %p98, %p99
      %s102 = sadd.s32 %s101, 1
      %p105 = scmp.eq.s32.totalorder %s25, 1
      %p106 = scmp.ne.s32.totalorder %s101, %s103
      %p107 = scmp.eq.s32.totalorder %s25, 0
      %p108 = por %p106, %p107
      %p109 = scmp.ne.s32.totalorder %s101, %s103
      %p110 = scmp.eq.s32.totalorder %s30, 1
      %p111 = por %p109, %p110
      %p112 = scmp.ne.s32.totalorder %s103, %s104
      %p113 = scmp.eq.s32.totalorder %s30, 0
      %p114 = por %p112, %p113
      %p115 = scmp.ne.s32.totalorder %s103, %s104
      %p116 = scmp.eq.s32.totalorder %s31, 1
      %p117 = por %p115, %p116
      %p119 = scmp.ne.s32.totalorder %s104, %s118
      %p120 = scmp.eq.s32.totalorder %s31, 0
      %p121 = por %p119, %p120
      %s123 = sadd.s32 %s122, 1
      %p126 = scmp.eq.s32.totalorder %s25, 1
      %p127 = scmp.ne.s32.totalorder %s122, %s124
      %p128 = scmp.eq.s32.totalorder %s25, 0
      %p129 = por %p127, %p128
      %p130 = scmp.ne.s32.totalorder %s122, %s124
      %p131 = scmp.eq.s32.totalorder %s30, 1
      %p132 = por %p130, %p131
      %p133 = scmp.ne.s32.totalorder %s124, %s125
      %p134 = scmp.eq.s32.totalorder %s30, 0
      %p135 = por %p133, %p134
      %p136 = scmp.ne.s32.totalorder %s124, %s125
      %p137 = scmp.eq.s32.totalorder %s31, 1
      %p138 = por %p136, %p137
      %p140 = scmp.ne.s32.totalorder %s125, %s139
      %p141 = scmp.eq.s32.totalorder %s31, 0
      %p142 = por %p140, %p141
      %s144 = sadd.s32 %s143, 1
      %p147 = scmp.eq.s32.totalorder %s25, 1
      %p148 = scmp.ne.s32.totalorder %s143, %s145
      %p149 = scmp.eq.s32.totalorder %s25, 0
      %p150 = por %p148, %p149
      %p151 = scmp.ne.s32.totalorder %s143, %s145
      %p152 = scmp.eq.s32.totalorder %s30, 1
      %p153 = por %p151, %p152
      %p154 = scmp.ne.s32.totalorder %s145, %s146
      %p155 = scmp.eq.s32.totalorder %s30, 0
      %p156 = por %p154, %p155
      %p157 = scmp.ne.s32.totalorder %s145, %s146
      %p158 = scmp.eq.s32.totalorder %s31, 1
      %p159 = por %p157, %p158
      %p161 = scmp.ne.s32.totalorder %s146, %s160
      %p162 = scmp.eq.s32.totalorder %s31, 0
      %p163 = por %p161, %p162
      %s165 = sadd.s32 %s164, 1
      %p168 = scmp.eq.s32.totalorder %s25, 1
      %p169 = scmp.ne.s32.totalorder %s164, %s166
      %p170 = scmp.eq.s32.totalorder %s25, 0
      %p171 = por %p169, %p170
      %p172 = scmp.ne.s32.totalorder %s164, %s166
      %p173 = scmp.eq.s32.totalorder %s30, 1
      %p174 = por %p172, %p173
      %p175 = scmp.ne.s32.totalorder %s166, %s167
      %p176 = scmp.eq.s32.totalorder %s30, 0
      %p177 = por %p175, %p176
      %p178 = scmp.ne.s32.totalorder %s166, %s167
      %p179 = scmp.eq.s32.totalorder %s31, 1
      %p180 = por %p178, %p179
      %p182 = scmp.ne.s32.totalorder %s167, %s181
      %p183 = scmp.eq.s32.totalorder %s31, 0
      %p184 = por %p182, %p183
      %s186 = sadd.s32 %s185, 1
      %p189 = scmp.eq.s32.totalorder %s25, 1
      %p190 = scmp.ne.s32.totalorder %s185, %s187
      %p191 = scmp.eq.s32.totalorder %s25, 0
      %p192 = por %p190, %p191
      %p193 = scmp.ne.s32.totalorder %s185, %s187
      %p194 = scmp.eq.s32.totalorder %s30, 1
      %p195 = por %p193, %p194
      %p196 = scmp.ne.s32.totalorder %s187, %s188
      %p197 = scmp.eq.s32.totalorder %s30, 0
      %p198 = por %p196, %p197
      %p199 = scmp.ne.s32.totalorder %s187, %s188
      %p200 = scmp.eq.s32.totalorder %s31, 1
      %p201 = por %p199, %p200
      %p203 = scmp.ne.s32.totalorder %s188, %s202
      %p204 = scmp.eq.s32.totalorder %s31, 0
      %p205 = por %p203, %p204
      %s207 = sadd.s32 %s206, 1
      %p210 = scmp.eq.s32.totalorder %s25, 1
      %p211 = scmp.ne.s32.totalorder %s206, %s208
      %p212 = scmp.eq.s32.totalorder %s25, 0
      %p213 = por %p211, %p212
      %p214 = scmp.ne.s32.totalorder %s206, %s208
      %p215 = scmp.eq.s32.totalorder %s30, 1
      %p216 = por %p214, %p215
      %p217 = scmp.ne.s32.totalorder %s208, %s209
      %p218 = scmp.eq.s32.totalorder %s30, 0
      %p219 = por %p217, %p218
      %p220 = scmp.ne.s32.totalorder %s208, %s209
      %p221 = scmp.eq.s32.totalorder %s31, 1
      %p222 = por %p220, %p221
      %p224 = scmp.ne.s32.totalorder %s209, %s223
      %p225 = scmp.eq.s32.totalorder %s31, 0
      %p226 = por %p224, %p225
      %s228 = sadd.s32 %s227, 1
      %p231 = scmp.eq.s32.totalorder %s25, 1
      %p232 = scmp.ne.s32.totalorder %s227, %s229
      %p233 = scmp.eq.s32.totalorder %s25, 0
      %p234 = por %p232, %p233
      %p235 = scmp.ne.s32.totalorder %s227, %s229
      %p236 = scmp.eq.s32.totalorder %s30, 1
      %p237 = por %p235, %p236
      %p238 = scmp.ne.s32.totalorder %s229, %s230
      %p239 = scmp.eq.s32.totalorder %s30, 0
      %p240 = por %p238, %p239
      %p241 = scmp.ne.s32.totalorder %s229, %s230
      %p242 = scmp.eq.s32.totalorder %s31, 1
      %p243 = por %p241, %p242
      %p245 = scmp.ne.s32.totalorder %s230, %s244
      %p246 = scmp.eq.s32.totalorder %s31, 0
      %p247 = por %p245, %p246
      %s249 = sadd.s32 %s248, 1
      %p252 = scmp.eq.s32.totalorder %s25, 1
      %p253 = scmp.ne.s32.totalorder %s248, %s250
      %p254 = scmp.eq.s32.totalorder %s25, 0
      %p255 = por %p253, %p254
      %p256 = scmp.ne.s32.totalorder %s248, %s250
      %p257 = scmp.eq.s32.totalorder %s30, 1
      %p258 = por %p256, %p257
      %p259 = scmp.ne.s32.totalorder %s250, %s251
      %p260 = scmp.eq.s32.totalorder %s30, 0
      %p261 = por %p259, %p260
      %p262 = scmp.ne.s32.totalorder %s250, %s251
      %p263 = scmp.eq.s32.totalorder %s31, 1
      %p264 = por %p262, %p263
      %p266 = scmp.ne.s32.totalorder %s251, %s265
      %p267 = scmp.eq.s32.totalorder %s31, 0
      %p268 = por %p266, %p267
      %s270 = sadd.s32 %s269, 1
      %p273 = scmp.eq.s32.totalorder %s25, 1
      %p274 = scmp.ne.s32.totalorder %s269, %s271
      %p275 = scmp.eq.s32.totalorder %s25, 0
      %p276 = por %p274, %p275
      %p277 = scmp.ne.s32.totalorder %s269, %s271
      %p278 = scmp.eq.s32.totalorder %s30, 1
      %p279 = por %p277, %p278
      %p280 = scmp.ne.s32.totalorder %s271, %s272
      %p281 = scmp.eq.s32.totalorder %s30, 0
      %p282 = por %p280, %p281
      %p283 = scmp.ne.s32.totalorder %s271, %s272
      %p284 = scmp.eq.s32.totalorder %s31, 1
      %p285 = por %p283, %p284
      %p287 = scmp.ne.s32.totalorder %s272, %s286
      %p288 = scmp.eq.s32.totalorder %s31, 0
      %p289 = por %p287, %p288
      %s291 = sadd.s32 %s290, 1
      %p294 = scmp.eq.s32.totalorder %s25, 1
      %p295 = scmp.ne.s32.totalorder %s290, %s292
      %p296 = scmp.eq.s32.totalorder %s25, 0
      %p297 = por %p295, %p296
      %p298 = scmp.ne.s32.totalorder %s290, %s292
      %p299 = scmp.eq.s32.totalorder %s30, 1
      %p300 = por %p298, %p299
      %p301 = scmp.ne.s32.totalorder %s292, %s293
      %p302 = scmp.eq.s32.totalorder %s30, 0
      %p303 = por %p301, %p302
      %p304 = scmp.ne.s32.totalorder %s292, %s293
      %p305 = scmp.eq.s32.totalorder %s31, 1
      %p306 = por %p304, %p305
      %p308 = scmp.ne.s32.totalorder %s293, %s307
      %p309 = scmp.eq.s32.totalorder %s31, 0
      %p310 = por %p308, %p309
      %s311 = ssub.s32 %s25, %s32
      %p312 = scmp.eq.s32.totalorder %s311, 0
      %s314 = sadd.s32 %s313, 1
      %s315 = scalar_select %p312, %s313, %s314
      %p318 = pneg %p312
      %p319 = scmp.eq.s32.totalorder %s25, 1
      %p320 = por %p318, %p319
      %p321 = scmp.ne.s32.totalorder %s313, %s316
      %p322 = scmp.eq.s32.totalorder %s25, 0
      %p323 = por %p321, %p322
      %p324 = scmp.ne.s32.totalorder %s313, %s316
      %p325 = scmp.eq.s32.totalorder %s30, 1
      %p326 = por %p324, %p325
      %p327 = scmp.ne.s32.totalorder %s316, %s317
      %p328 = scmp.eq.s32.totalorder %s30, 0
      %p329 = por %p327, %p328
      %p330 = scmp.ne.s32.totalorder %s316, %s317
      %p331 = scmp.eq.s32.totalorder %s31, 1
      %p332 = por %p330, %p331
      %p334 = scmp.ne.s32.totalorder %s317, %s333
      %p335 = scmp.eq.s32.totalorder %s31, 0
      %p336 = por %p334, %p335
      %p337 = scmp.le.s32.totalorder 1, %s25
      %p338 = scmp.lt.s32.totalorder %s25, 3
      %p339 = pnand %p337, %p338
      %p340 = pneg %p339
      // Predicated region
      $region9: #{tpu_custom_call.1} parent=5 // pred_check
        _
      $region10: #{tpu_custom_call.1} parent=5 // pred_check_branch
        %342 = sbr.rel (%p339) target = $region12
      $region11: #{tpu_custom_call.1} parent=5 // pred_region
        %s343 = ssub.s32 %s25, 1
        // Predicated region
        $region13: #{tpu_custom_call.1} parent=11 // pred_check
          %p344 = pneg %p72
        $region14: #{tpu_custom_call.1} parent=11 // pred_check_branch
          %346 = sbr.rel (%p344) target = $region16
        $region15: #{tpu_custom_call.1} parent=11 // pred_region
          _
        $region16: #{tpu_custom_call.1} parent=11 // pred_fallthru
          _
        // Predicated region
        $region17: #{tpu_custom_call.1} parent=11 // pred_check
          %p347 = pneg %p93
        $region18: #{tpu_custom_call.1} parent=11 // pred_check_branch
          %349 = sbr.rel (%p347) target = $region20
        $region19: #{tpu_custom_call.1} parent=11 // pred_region
          _
        $region20: #{tpu_custom_call.1} parent=11 // pred_fallthru
          _
        // Predicated region
        $region21: #{tpu_custom_call.1} parent=11 // pred_check
          %p350 = pneg %p114
        $region22: #{tpu_custom_call.1} parent=11 // pred_check_branch
          %352 = sbr.rel (%p350) target = $region24
        $region23: #{tpu_custom_call.1} parent=11 // pred_region
          _
        $region24: #{tpu_custom_call.1} parent=11 // pred_fallthru
          _
        // Predicated region
        $region25: #{tpu_custom_call.1} parent=11 // pred_check
          %p353 = pneg %p135
        $region26: #{tpu_custom_call.1} parent=11 // pred_check_branch
          %355 = sbr.rel (%p353) target = $region28
        $region27: #{tpu_custom_call.1} parent=11 // pred_region
          %s357 = ssub.s32 16, 16
          %358 = vsyncadd [#allocation3], %s357
          %s360 = sshll.u32 [#allocation2], 4
          %s361 = int_to_ptr.vmem [resolvable:$true] %s360
          %363 = dma.hbm_to_vmem [thread:$0]  %s4, 16, %s361, [#allocation3]
        $region28: #{tpu_custom_call.1} parent=11 // pred_fallthru
          _
        // Predicated region
        $region29: #{tpu_custom_call.1} parent=11 // pred_check
          %p364 = pneg %p156
        $region30: #{tpu_custom_call.1} parent=11 // pred_check_branch
          %366 = sbr.rel (%p364) target = $region32
        $region31: #{tpu_custom_call.1} parent=11 // pred_region
          _
        $region32: #{tpu_custom_call.1} parent=11 // pred_fallthru
          _
        // Predicated region
        $region33: #{tpu_custom_call.1} parent=11 // pred_check
          %p367 = pneg %p177
        $region34: #{tpu_custom_call.1} parent=11 // pred_check_branch
          %369 = sbr.rel (%p367) target = $region36
        $region35: #{tpu_custom_call.1} parent=11 // pred_region
          %s371 = ssub.s32 16, 16
          %372 = vsyncadd [#allocation6], %s371
          %s374 = sshll.u32 [#allocation5], 4
          %s375 = int_to_ptr.vmem [resolvable:$true] %s374
          %377 = dma.hbm_to_vmem [thread:$0]  %s6, 16, %s375, [#allocation6]
        $region36: #{tpu_custom_call.1} parent=11 // pred_fallthru
          _
        // Predicated region
        $region37: #{tpu_custom_call.1} parent=11 // pred_check
          %p378 = pneg %p198
        $region38: #{tpu_custom_call.1} parent=11 // pred_check_branch
          %380 = sbr.rel (%p378) target = $region40
        $region39: #{tpu_custom_call.1} parent=11 // pred_region
          %s382 = ssub.s32 16, 16
          %383 = vsyncadd [#allocation6], %s382
          %s385 = sshll.u32 [#allocation7], 4
          %s386 = int_to_ptr.vmem [resolvable:$true] %s385
          %388 = dma.hbm_to_vmem [thread:$0]  %s7, 16, %s386, [#allocation6]
        $region40: #{tpu_custom_call.1} parent=11 // pred_fallthru
          _
        // Predicated region
        $region41: #{tpu_custom_call.1} parent=11 // pred_check
          %p389 = pneg %p219
        $region42: #{tpu_custom_call.1} parent=11 // pred_check_branch
          %391 = sbr.rel (%p389) target = $region44
        $region43: #{tpu_custom_call.1} parent=11 // pred_region
          %s393 = ssub.s32 16, 16
          %394 = vsyncadd [#allocation9], %s393
          %s396 = sshll.u32 [#allocation8], 4
          %s397 = int_to_ptr.vmem [resolvable:$true] %s396
          %399 = dma.hbm_to_vmem [thread:$0]  %s8, 16, %s397, [#allocation9]
        $region44: #{tpu_custom_call.1} parent=11 // pred_fallthru
          _
        // Predicated region
        $region45: #{tpu_custom_call.1} parent=11 // pred_check
          %p400 = pneg %p240
        $region46: #{tpu_custom_call.1} parent=11 // pred_check_branch
          %402 = sbr.rel (%p400) target = $region48
        $region47: #{tpu_custom_call.1} parent=11 // pred_region
          _
        $region48: #{tpu_custom_call.1} parent=11 // pred_fallthru
          _
        // Predicated region
        $region49: #{tpu_custom_call.1} parent=11 // pred_check
          %p403 = pneg %p261
        $region50: #{tpu_custom_call.1} parent=11 // pred_check_branch
          %405 = sbr.rel (%p403) target = $region52
        $region51: #{tpu_custom_call.1} parent=11 // pred_region
          _
        $region52: #{tpu_custom_call.1} parent=11 // pred_fallthru
          _
        // Predicated region
        $region53: #{tpu_custom_call.1} parent=11 // pred_check
          %p406 = pneg %p282
        $region54: #{tpu_custom_call.1} parent=11 // pred_check_branch
          %408 = sbr.rel (%p406) target = $region56
        $region55: #{tpu_custom_call.1} parent=11 // pred_region
          _
        $region56: #{tpu_custom_call.1} parent=11 // pred_fallthru
          _
        // Predicated region
        $region57: #{tpu_custom_call.1} parent=11 // pred_check
          %p409 = pneg %p303
        $region58: #{tpu_custom_call.1} parent=11 // pred_check_branch
          %411 = sbr.rel (%p409) target = $region60
        $region59: #{tpu_custom_call.1} parent=11 // pred_region
          _
        $region60: #{tpu_custom_call.1} parent=11 // pred_fallthru
          _
      $region12: #{tpu_custom_call.1} parent=5 // pred_fallthru
        _
      %p412 = scmp.lt.s32.totalorder %s25, 2
      // Predicated region
      $region61: #{tpu_custom_call.1} parent=5 // pred_check
        %p413 = pneg %p412
      $region62: #{tpu_custom_call.1} parent=5 // pred_check_branch
        %415 = sbr.rel (%p413) target = $region64
      $region63: #{tpu_custom_call.1} parent=5 // pred_region
        // Predicated region
        $region65: #{tpu_custom_call.1} parent=63 // pred_check
          %p416 = pneg %p45
        $region66: #{tpu_custom_call.1} parent=63 // pred_check_branch
          %418 = sbr.rel (%p416) target = $region68
        $region67: #{tpu_custom_call.1} parent=63 // pred_region
          %p419 = scmp.lt.s32.totalorder %s25, 1
          %s420 = scalar_select %p419, %s25, 1
          %s421 = smul.addr %s420, 8
          %s422 = scalar_lea.vmem %s0, %s421
        $region68: #{tpu_custom_call.1} parent=63 // pred_fallthru
          _
      $region64: #{tpu_custom_call.1} parent=5 // pred_fallthru
        _
      %p423 = scmp.le.s32.totalorder 1, %s25
      %p424 = scmp.lt.s32.totalorder %s25, 3
      %p425 = pnand %p423, %p424
      %p426 = pneg %p425
      // Predicated region
      $region69: #{tpu_custom_call.1} parent=5 // pred_check
        _
      $region70: #{tpu_custom_call.1} parent=5 // pred_check_branch
        %428 = sbr.rel (%p425) target = $region72
      $region71: #{tpu_custom_call.1} parent=5 // pred_region
        %s429 = ssub.s32 %s25, 1
        // Predicated region
        $region73: #{tpu_custom_call.1} parent=71 // pred_check
          %p430 = pneg %p135
        $region74: #{tpu_custom_call.1} parent=71 // pred_check_branch
          %432 = sbr.rel (%p430) target = $region76
        $region75: #{tpu_custom_call.1} parent=71 // pred_region
          %433 = dma.done [#allocation3], 16
        $region76: #{tpu_custom_call.1} parent=71 // pred_fallthru
          _
        // Predicated region
        $region77: #{tpu_custom_call.1} parent=71 // pred_check
          %p434 = pneg %p177
        $region78: #{tpu_custom_call.1} parent=71 // pred_check_branch
          %436 = sbr.rel (%p434) target = $region80
        $region79: #{tpu_custom_call.1} parent=71 // pred_region
          %437 = dma.done [#allocation6], 16
        $region80: #{tpu_custom_call.1} parent=71 // pred_fallthru
          _
        // Predicated region
        $region81: #{tpu_custom_call.1} parent=71 // pred_check
          %p438 = pneg %p198
        $region82: #{tpu_custom_call.1} parent=71 // pred_check_branch
          %440 = sbr.rel (%p438) target = $region84
        $region83: #{tpu_custom_call.1} parent=71 // pred_region
          %441 = dma.done [#allocation6], 16
        $region84: #{tpu_custom_call.1} parent=71 // pred_fallthru
          _
        // Predicated region
        $region85: #{tpu_custom_call.1} parent=71 // pred_check
          %p442 = pneg %p219
        $region86: #{tpu_custom_call.1} parent=71 // pred_check_branch
          %444 = sbr.rel (%p442) target = $region88
        $region87: #{tpu_custom_call.1} parent=71 // pred_region
          %445 = dma.done [#allocation9], 16
        $region88: #{tpu_custom_call.1} parent=71 // pred_fallthru
          _
        %p446 = scmp.lt.s32.totalorder %s30, 1
        %s447 = scalar_select %p446, %s30, 1
        %s448 = smul.addr %s447, 8
        %s449 = scalar_lea.vmem %s0, %s448
        %p450 = pneg %p51
        %p451 = pneg %p48
        %p452 = pneg %p72
        %p453 = pneg %p69
        %p454 = pneg %p93
        %p455 = pneg %p90
        %p456 = pneg %p114
        %p457 = pneg %p111
        %p458 = pneg %p135
        %p459 = pneg %p132
        %p460 = pneg %p156
        %p461 = pneg %p153
        %p462 = pneg %p177
        %p463 = pneg %p174
        %p464 = pneg %p198
        %p465 = pneg %p195
        %p466 = pneg %p219
        %p467 = pneg %p216
        %p468 = pneg %p240
        %p469 = pneg %p237
        %p470 = pneg %p261
        %p471 = pneg %p258
        %p472 = pneg %p282
        %p473 = pneg %p279
        %p474 = pneg %p303
        %p475 = pneg %p300
        %p476 = pneg %p329
        %p477 = pneg %p326
        %s478 = sand.u32 %s316, 1
        %s479 = scalar_lea.sflag [#allocation4], %s478
        %s480 = sand.u32 %s316, 1
        %s481 = smul.addr %s480, 8
        %s482 = scalar_lea.vmem [#allocation10], %s481
        %p483 = scmp.lt.s32.totalorder %s30, 1
        %s484 = scalar_select %p483, %s30, 1
        %s485 = smul.addr %s484, 8
        %s486 = scalar_lea.vmem %s0, %s485
        %v488 = vld [vmem:[%s486] sm:$0xff]
        %v489 = vld [vmem:[%s1] sm:$0x1]
        %v490 = vld [vmem:[%s2] sm:$0x1]
        %vm491 = vcmask 261120
        %v492 = vsel %vm491, %v488, 0.0
        %493 = vadd.xlane.f32.xlu0 %v492
        %v494 = vpop.xlane.xlu0 %493
        %v495 = vrcp.pop 32.0
        %v496 = vmul.f32 %v494, %v495
        %v497 = vsub.f32 %v488, %v496
        %v498 = vmul.f32 %v497, %v497
        %v499 = vsel %vm491, %v498, 0.0
        %500 = vadd.xlane.f32.xlu0 %v499
        %v501 = vpop.xlane.xlu0 %500
        %v502 = vmul.f32 %v501, %v495
        %v503 = vadd.f32 %v502, 1e-05
        %v504 = vrsqrt.pop %v503
        %v505 = vmul.f32 %v497, %v504
        %v507 = vlaneseq
        %v508 = vshrl.u32 %v507, 7
        %v509 = vsub.s32 0, %v508
        %v510 = vrot.slane %v489, %v509
        %v512 = vmul.f32 %v505, %v510
        %v514 = vlaneseq
        %v515 = vshrl.u32 %v514, 7
        %v516 = vsub.s32 0, %v515
        %v517 = vrot.slane %v490, %v516
        %v519 = vadd.f32 %v512, %v517
        %v520 = vpack.c.bf16 %v519, %v519
        %v521 = vld [vmem:[%s3] sm:$0xf]
        %v522 = vld [vmem:[%s3 + $0x4] sm:$0xf]
        %v523 = vld [vmem:[%s3 + $0x8] sm:$0xf]
        %v524 = vld [vmem:[%s3 + $0xc] sm:$0xf]
        %v525 = vld [vmem:[#allocation2] sm:$0x1]
        %v527 = vlaneseq
        %v528 = vshrl.u32 %v527, 7
        %v529 = vsub.s32 0, %v528
        %v530 = vrot.slane %v525, %v529
        %v536 = vunpack.c.l.b16 %v521
        %v537 = vunpack.c.l.b16 %v522
        %v538 = vunpack.c.l.b16 %v523
        %v539 = vunpack.c.l.b16 %v524
        %v540 = vpack.c.b16 %v537, %v536
        %v541 = vpack.c.b16 %v539, %v538
        %v545 = vsel %vm491, %v520, 0
        %547 = vmatprep.subr.bf16.mxu0 0
        %548 = vmatpush1.bf16.msra.mxu0 %v540
        %549 = vmatprep.subr.bf16.mxu0 0
        %550 = vmatpush1.bf16.msra.mxu0 %v541
        %551 = vmatprep.subr.bf16.mxu0 0
        %552 = vmatpush1.bf16.msra.mxu0 0
        %553 = vmatprep.subr.bf16.mxu0 0
        %554 = vmatpush1.bf16.msra.mxu0 0
        %555 = vmatprep.subr.bf16.mxu0 0
        %556 = vmatpush1.bf16.msra.mxu0 0
        %557 = vmatprep.subr.bf16.mxu0 0
        %558 = vmatpush1.bf16.msra.mxu0 0
        %559 = vmatprep.subr.bf16.mxu0 0
        %560 = vmatpush1.bf16.msra.mxu0 0
        %561 = vmatprep.subr.bf16.mxu0 0
        %562 = vmatpush1.bf16.msra.mxu0 0
        %563 = vmatprep.subr.bf16.mxu0 0
        %564 = vmatpush1.bf16.msra.mxu0 0
        %565 = vmatprep.subr.bf16.mxu0 0
        %566 = vmatpush1.bf16.msra.mxu0 0
        %567 = vmatprep.subr.bf16.mxu0 0
        %568 = vmatpush1.bf16.msra.mxu0 0
        %569 = vmatprep.subr.bf16.mxu0 0
        %570 = vmatpush1.bf16.msra.mxu0 0
        %571 = vmatprep.subr.bf16.mxu0 0
        %572 = vmatpush1.bf16.msra.mxu0 0
        %573 = vmatprep.subr.bf16.mxu0 0
        %574 = vmatpush1.bf16.msra.mxu0 0
        %575 = vmatprep.subr.bf16.mxu0 0
        %576 = vmatpush1.bf16.msra.mxu0 0
        %577 = vmatprep.subr.bf16.mxu0 0
        %578 = vmatpush1.bf16.msra.mxu0 0
        %579 = vmatprep.mubr.bf16.mxu0 0
        %580 = vmatmul.mubr.bf16.gmra.mrb[0].mxu0 %v545
        %v581 = vpop.f32.mrb[0].mxu0
        %v582 = vadd.f32 %v530, %v581
        %v583 = vpop.f32.mrb[0].mxu0
        %v584 = vpop.f32.mrb[0].mxu0
        %v585 = vpop.f32.mrb[0].mxu0
        %586 = vdwg.mxu0
        %v587 = vpack.c.bf16 %v582, %v582
        %589 = vrot.lane.b32.xlu0 %v587, 120
        %v590 = vpop.permute.xlu0 %589
        %591 = vrot.lane.b32.xlu0 %v587, 112
        %v592 = vpop.permute.xlu0 %591
        %593 = vrot.lane.b32.xlu0 %v587, 104
        %v594 = vpop.permute.xlu0 %593
        %595 = vrot.lane.b32.xlu0 %v587, 96
        %v596 = vpop.permute.xlu0 %595
        %vm597 = vcmask 64512
        %v599 = vsel %vm597, %v587, 0
        %v602 = vsel %vm597, %v596, 0
        %604 = vmatprep.subr.bf16.mxu0 0
        %605 = vmatpush1.bf16.xpose.msra.mxu0 %v602
        %606 = vmatprep.subr.bf16.mxu0 0
        %607 = vmatpush1.bf16.xpose.msra.mxu0 0
        %608 = vmatprep.subr.bf16.mxu0 0
        %609 = vmatpush1.bf16.xpose.msra.mxu0 0
        %610 = vmatprep.subr.bf16.mxu0 0
        %611 = vmatpush1.bf16.xpose.msra.mxu0 0
        %612 = vmatprep.subr.bf16.mxu0 0
        %613 = vmatpush1.bf16.xpose.msra.mxu0 0
        %614 = vmatprep.subr.bf16.mxu0 0
        %615 = vmatpush1.bf16.xpose.msra.mxu0 0
        %616 = vmatprep.subr.bf16.mxu0 0
        %617 = vmatpush1.bf16.xpose.msra.mxu0 0
        %618 = vmatprep.subr.bf16.mxu0 0
        %619 = vmatpush1.bf16.xpose.msra.mxu0 0
        %620 = vmatprep.subr.bf16.mxu0 0
        %621 = vmatpush1.bf16.xpose.msra.mxu0 0
        %622 = vmatprep.subr.bf16.mxu0 0
        %623 = vmatpush1.bf16.xpose.msra.mxu0 0
        %624 = vmatprep.subr.bf16.mxu0 0
        %625 = vmatpush1.bf16.xpose.msra.mxu0 0
        %626 = vmatprep.subr.bf16.mxu0 0
        %627 = vmatpush1.bf16.xpose.msra.mxu0 0
        %628 = vmatprep.subr.bf16.mxu0 0
        %629 = vmatpush1.bf16.xpose.msra.mxu0 0
        %630 = vmatprep.subr.bf16.mxu0 0
        %631 = vmatpush1.bf16.xpose.msra.mxu0 0
        %632 = vmatprep.subr.bf16.mxu0 0
        %633 = vmatpush1.bf16.xpose.msra.mxu0 0
        %634 = vmatprep.subr.bf16.mxu0 0
        %635 = vmatpush1.bf16.xpose.msra.mxu0 0
        %636 = vmatprep.mubr.bf16.mxu0 0
        %637 = vmatmul.mubr.bf16.gmra.mrb[0].mxu0 %v599
        %v638 = vpop.f32.mrb[0].mxu0
        %v639 = vadd.f32 0.0, %v638
        %v640 = vpop.f32.mrb[0].mxu0
        %v641 = vpop.f32.mrb[0].mxu0
        %v642 = vpop.f32.mrb[0].mxu0
        %643 = vdwg.mxu0
        %644 = vrot.lane.b32.xlu0 %v590, 96
        %v645 = vpop.permute.xlu0 %644
        %v647 = vsel %vm597, %v590, 0
        %v650 = vsel %vm597, %v645, 0
        %652 = vmatprep.subr.bf16.mxu0 0
        %653 = vmatpush1.bf16.xpose.msra.mxu0 %v650
        %654 = vmatprep.subr.bf16.mxu0 0
        %655 = vmatpush1.bf16.xpose.msra.mxu0 0
        %656 = vmatprep.subr.bf16.mxu0 0
        %657 = vmatpush1.bf16.xpose.msra.mxu0 0
        %658 = vmatprep.subr.bf16.mxu0 0
        %659 = vmatpush1.bf16.xpose.msra.mxu0 0
        %660 = vmatprep.subr.bf16.mxu0 0
        %661 = vmatpush1.bf16.xpose.msra.mxu0 0
        %662 = vmatprep.subr.bf16.mxu0 0
        %663 = vmatpush1.bf16.xpose.msra.mxu0 0
        %664 = vmatprep.subr.bf16.mxu0 0
        %665 = vmatpush1.bf16.xpose.msra.mxu0 0
        %666 = vmatprep.subr.bf16.mxu0 0
        %667 = vmatpush1.bf16.xpose.msra.mxu0 0
        %668 = vmatprep.subr.bf16.mxu0 0
        %669 = vmatpush1.bf16.xpose.msra.mxu0 0
        %670 = vmatprep.subr.bf16.mxu0 0
        %671 = vmatpush1.bf16.xpose.msra.mxu0 0
        %672 = vmatprep.subr.bf16.mxu0 0
        %673 = vmatpush1.bf16.xpose.msra.mxu0 0
        %674 = vmatprep.subr.bf16.mxu0 0
        %675 = vmatpush1.bf16.xpose.msra.mxu0 0
        %676 = vmatprep.subr.bf16.mxu0 0
        %677 = vmatpush1.bf16.xpose.msra.mxu0 0
        %678 = vmatprep.subr.bf16.mxu0 0
        %679 = vmatpush1.bf16.xpose.msra.mxu0 0
        %680 = vmatprep.subr.bf16.mxu0 0
        %681 = vmatpush1.bf16.xpose.msra.mxu0 0
        %682 = vmatprep.subr.bf16.mxu0 0
        %683 = vmatpush1.bf16.xpose.msra.mxu0 0
        %684 = vmatprep.mubr.bf16.mxu0 0
        %685 = vmatmul.mubr.bf16.gmra.mrb[0].mxu0 %v647
        %v686 = vpop.f32.mrb[0].mxu0
        %v687 = vadd.f32 0.0, %v686
        %v688 = vpop.f32.mrb[0].mxu0
        %v689 = vpop.f32.mrb[0].mxu0
        %v690 = vpop.f32.mrb[0].mxu0
        %691 = vdwg.mxu0
        %692 = vrot.lane.b32.xlu0 %v592, 96
        %v693 = vpop.permute.xlu0 %692
        %v695 = vsel %vm597, %v592, 0
        %v698 = vsel %vm597, %v693, 0
        %700 = vmatprep.subr.bf16.mxu0 0
        %701 = vmatpush1.bf16.xpose.msra.mxu0 %v698
        %702 = vmatprep.subr.bf16.mxu0 0
        %703 = vmatpush1.bf16.xpose.msra.mxu0 0
        %704 = vmatprep.subr.bf16.mxu0 0
        %705 = vmatpush1.bf16.xpose.msra.mxu0 0
        %706 = vmatprep.subr.bf16.mxu0 0
        %707 = vmatpush1.bf16.xpose.msra.mxu0 0
        %708 = vmatprep.subr.bf16.mxu0 0
        %709 = vmatpush1.bf16.xpose.msra.mxu0 0
        %710 = vmatprep.subr.bf16.mxu0 0
        %711 = vmatpush1.bf16.xpose.msra.mxu0 0
        %712 = vmatprep.subr.bf16.mxu0 0
        %713 = vmatpush1.bf16.xpose.msra.mxu0 0
        %714 = vmatprep.subr.bf16.mxu0 0
        %715 = vmatpush1.bf16.xpose.msra.mxu0 0
        %716 = vmatprep.subr.bf16.mxu0 0
        %717 = vmatpush1.bf16.xpose.msra.mxu0 0
        %718 = vmatprep.subr.bf16.mxu0 0
        %719 = vmatpush1.bf16.xpose.msra.mxu0 0
        %720 = vmatprep.subr.bf16.mxu0 0
        %721 = vmatpush1.bf16.xpose.msra.mxu0 0
        %722 = vmatprep.subr.bf16.mxu0 0
        %723 = vmatpush1.bf16.xpose.msra.mxu0 0
        %724 = vmatprep.subr.bf16.mxu0 0
        %725 = vmatpush1.bf16.xpose.msra.mxu0 0
        %726 = vmatprep.subr.bf16.mxu0 0
        %727 = vmatpush1.bf16.xpose.msra.mxu0 0
        %728 = vmatprep.subr.bf16.mxu0 0
        %729 = vmatpush1.bf16.xpose.msra.mxu0 0
        %730 = vmatprep.subr.bf16.mxu0 0
        %731 = vmatpush1.bf16.xpose.msra.mxu0 0
        %732 = vmatprep.mubr.bf16.mxu0 0
        %733 = vmatmul.mubr.bf16.gmra.mrb[0].mxu0 %v695
        %v734 = vpop.f32.mrb[0].mxu0
        %v735 = vadd.f32 0.0, %v734
        %v736 = vpop.f32.mrb[0].mxu0
        %v737 = vpop.f32.mrb[0].mxu0
        %v738 = vpop.f32.mrb[0].mxu0
        %739 = vdwg.mxu0
        %740 = vrot.lane.b32.xlu0 %v594, 96
        %v741 = vpop.permute.xlu0 %740
        %v743 = vsel %vm597, %v594, 0
        %v746 = vsel %vm597, %v741, 0
        %748 = vmatprep.subr.bf16.mxu0 0
        %749 = vmatpush1.bf16.xpose.msra.mxu0 %v746
        %750 = vmatprep.subr.bf16.mxu0 0
        %751 = vmatpush1.bf16.xpose.msra.mxu0 0
        %752 = vmatprep.subr.bf16.mxu0 0
        %753 = vmatpush1.bf16.xpose.msra.mxu0 0
        %754 = vmatprep.subr.bf16.mxu0 0
        %755 = vmatpush1.bf16.xpose.msra.mxu0 0
        %756 = vmatprep.subr.bf16.mxu0 0
        %757 = vmatpush1.bf16.xpose.msra.mxu0 0
        %758 = vmatprep.subr.bf16.mxu0 0
        %759 = vmatpush1.bf16.xpose.msra.mxu0 0
        %760 = vmatprep.subr.bf16.mxu0 0
        %761 = vmatpush1.bf16.xpose.msra.mxu0 0
        %762 = vmatprep.subr.bf16.mxu0 0
        %763 = vmatpush1.bf16.xpose.msra.mxu0 0
        %764 = vmatprep.subr.bf16.mxu0 0
        %765 = vmatpush1.bf16.xpose.msra.mxu0 0
        %766 = vmatprep.subr.bf16.mxu0 0
        %767 = vmatpush1.bf16.xpose.msra.mxu0 0
        %768 = vmatprep.subr.bf16.mxu0 0
        %769 = vmatpush1.bf16.xpose.msra.mxu0 0
        %770 = vmatprep.subr.bf16.mxu0 0
        %771 = vmatpush1.bf16.xpose.msra.mxu0 0
        %772 = vmatprep.subr.bf16.mxu0 0
        %773 = vmatpush1.bf16.xpose.msra.mxu0 0
        %774 = vmatprep.subr.bf16.mxu0 0
        %775 = vmatpush1.bf16.xpose.msra.mxu0 0
        %776 = vmatprep.subr.bf16.mxu0 0
        %777 = vmatpush1.bf16.xpose.msra.mxu0 0
        %778 = vmatprep.subr.bf16.mxu0 0
        %779 = vmatpush1.bf16.xpose.msra.mxu0 0
        %780 = vmatprep.mubr.bf16.mxu0 0
        %781 = vmatmul.mubr.bf16.gmra.mrb[0].mxu0 %v743
        %v782 = vpop.f32.mrb[0].mxu0
        %v783 = vadd.f32 0.0, %v782
        %v784 = vpop.f32.mrb[0].mxu0
        %v785 = vpop.f32.mrb[0].mxu0
        %v786 = vpop.f32.mrb[0].mxu0
        %787 = vdwg.mxu0
        %v788 = vsel %vm597, %v639, -inf
        %789 = vmax.xlane.f32.xlu0 %v788
        %v790 = vpop.xlane.xlu0 %789
        %v791 = vsel %vm597, %v687, -inf
        %792 = vmax.xlane.f32.xlu0 %v791
        %v793 = vpop.xlane.xlu0 %792
        %v794 = vsel %vm597, %v735, -inf
        %795 = vmax.xlane.f32.xlu0 %v794
        %v796 = vpop.xlane.xlu0 %795
        %v797 = vsel %vm597, %v783, -inf
        %798 = vmax.xlane.f32.xlu0 %v797
        %v799 = vpop.xlane.xlu0 %798
        %v800 = vsub.f32 %v639, %v790
        %v801 = vsub.f32 %v687, %v793
        %v802 = vsub.f32 %v735, %v796
        %v803 = vsub.f32 %v783, %v799
        %v804 = vmul.f32 %v800, 1.442695
        %v805 = vpow.pop %v804
        %v806 = vmul.f32 %v801, 1.442695
        %v807 = vpow.pop %v806
        %v808 = vmul.f32 %v802, 1.442695
        %v809 = vpow.pop %v808
        %v810 = vmul.f32 %v803, 1.442695
        %v811 = vpow.pop %v810
        %v812 = vsel %vm597, %v805, 0.0
        %813 = vadd.xlane.f32.xlu0 %v812
        %v814 = vpop.xlane.xlu0 %813
        %v815 = vsel %vm597, %v807, 0.0
        %816 = vadd.xlane.f32.xlu0 %v815
        %v817 = vpop.xlane.xlu0 %816
        %v818 = vsel %vm597, %v809, 0.0
        %819 = vadd.xlane.f32.xlu0 %v818
        %v820 = vpop.xlane.xlu0 %819
        %v821 = vsel %vm597, %v811, 0.0
        %822 = vadd.xlane.f32.xlu0 %v821
        %v823 = vpop.xlane.xlu0 %822
        %v824 = vpack.c.bf16 %v805, %v805
        %v825 = vpack.c.bf16 %v807, %v807
        %v826 = vpack.c.bf16 %v809, %v809
        %v827 = vpack.c.bf16 %v811, %v811
        %828 = vrot.lane.b32.xlu0 %v587, 64
        %v829 = vpop.permute.xlu0 %828
        %v831 = vsel %vm597, %v824, 0
        %vm833 = vcmask 1043456
        %v835 = vsel %vm833, %v829, 0
        %837 = vmatprep.subr.bf16.mxu0 0
        %838 = vmatpush1.bf16.msra.mxu0 %v835
        %839 = vmatprep.subr.bf16.mxu0 0
        %840 = vmatpush1.bf16.msra.mxu0 0
        %841 = vmatprep.subr.bf16.mxu0 0
        %842 = vmatpush1.bf16.msra.mxu0 0
        %843 = vmatprep.subr.bf16.mxu0 0
        %844 = vmatpush1.bf16.msra.mxu0 0
        %845 = vmatprep.subr.bf16.mxu0 0
        %846 = vmatpush1.bf16.msra.mxu0 0
        %847 = vmatprep.subr.bf16.mxu0 0
        %848 = vmatpush1.bf16.msra.mxu0 0
        %849 = vmatprep.subr.bf16.mxu0 0
        %850 = vmatpush1.bf16.msra.mxu0 0
        %851 = vmatprep.subr.bf16.mxu0 0
        %852 = vmatpush1.bf16.msra.mxu0 0
        %853 = vmatprep.subr.bf16.mxu0 0
        %854 = vmatpush1.bf16.msra.mxu0 0
        %855 = vmatprep.subr.bf16.mxu0 0
        %856 = vmatpush1.bf16.msra.mxu0 0
        %857 = vmatprep.subr.bf16.mxu0 0
        %858 = vmatpush1.bf16.msra.mxu0 0
        %859 = vmatprep.subr.bf16.mxu0 0
        %860 = vmatpush1.bf16.msra.mxu0 0
        %861 = vmatprep.subr.bf16.mxu0 0
        %862 = vmatpush1.bf16.msra.mxu0 0
        %863 = vmatprep.subr.bf16.mxu0 0
        %864 = vmatpush1.bf16.msra.mxu0 0
        %865 = vmatprep.subr.bf16.mxu0 0
        %866 = vmatpush1.bf16.msra.mxu0 0
        %867 = vmatprep.subr.bf16.mxu0 0
        %868 = vmatpush1.bf16.msra.mxu0 0
        %869 = vmatprep.mubr.bf16.mxu0 0
        %870 = vmatmul.mubr.bf16.gmra.mrb[0].mxu0 %v831
        %v871 = vpop.f32.mrb[0].mxu0
        %v872 = vadd.f32 0.0, %v871
        %v873 = vpop.f32.mrb[0].mxu0
        %v874 = vpop.f32.mrb[0].mxu0
        %v875 = vpop.f32.mrb[0].mxu0
        %876 = vdwg.mxu0
        %877 = vrot.lane.b32.xlu0 %v590, 64
        %v878 = vpop.permute.xlu0 %877
        %v880 = vsel %vm597, %v825, 0
        %v883 = vsel %vm833, %v878, 0
        %885 = vmatprep.subr.bf16.mxu0 0
        %886 = vmatpush1.bf16.msra.mxu0 %v883
        %887 = vmatprep.subr.bf16.mxu0 0
        %888 = vmatpush1.bf16.msra.mxu0 0
        %889 = vmatprep.subr.bf16.mxu0 0
        %890 = vmatpush1.bf16.msra.mxu0 0
        %891 = vmatprep.subr.bf16.mxu0 0
        %892 = vmatpush1.bf16.msra.mxu0 0
        %893 = vmatprep.subr.bf16.mxu0 0
        %894 = vmatpush1.bf16.msra.mxu0 0
        %895 = vmatprep.subr.bf16.mxu0 0
        %896 = vmatpush1.bf16.msra.mxu0 0
        %897 = vmatprep.subr.bf16.mxu0 0
        %898 = vmatpush1.bf16.msra.mxu0 0
        %899 = vmatprep.subr.bf16.mxu0 0
        %900 = vmatpush1.bf16.msra.mxu0 0
        %901 = vmatprep.subr.bf16.mxu0 0
        %902 = vmatpush1.bf16.msra.mxu0 0
        %903 = vmatprep.subr.bf16.mxu0 0
        %904 = vmatpush1.bf16.msra.mxu0 0
        %905 = vmatprep.subr.bf16.mxu0 0
        %906 = vmatpush1.bf16.msra.mxu0 0
        %907 = vmatprep.subr.bf16.mxu0 0
        %908 = vmatpush1.bf16.msra.mxu0 0
        %909 = vmatprep.subr.bf16.mxu0 0
        %910 = vmatpush1.bf16.msra.mxu0 0
        %911 = vmatprep.subr.bf16.mxu0 0
        %912 = vmatpush1.bf16.msra.mxu0 0
        %913 = vmatprep.subr.bf16.mxu0 0
        %914 = vmatpush1.bf16.msra.mxu0 0
        %915 = vmatprep.subr.bf16.mxu0 0
        %916 = vmatpush1.bf16.msra.mxu0 0
        %917 = vmatprep.mubr.bf16.mxu0 0
        %918 = vmatmul.mubr.bf16.gmra.mrb[0].mxu0 %v880
        %v919 = vpop.f32.mrb[0].mxu0
        %v920 = vadd.f32 0.0, %v919
        %v921 = vpop.f32.mrb[0].mxu0
        %v922 = vpop.f32.mrb[0].mxu0
        %v923 = vpop.f32.mrb[0].mxu0
        %924 = vdwg.mxu0
        %925 = vrot.lane.b32.xlu0 %v592, 64
        %v926 = vpop.permute.xlu0 %925
        %v928 = vsel %vm597, %v826, 0
        %v931 = vsel %vm833, %v926, 0
        %933 = vmatprep.subr.bf16.mxu0 0
        %934 = vmatpush1.bf16.msra.mxu0 %v931
        %935 = vmatprep.subr.bf16.mxu0 0
        %936 = vmatpush1.bf16.msra.mxu0 0
        %937 = vmatprep.subr.bf16.mxu0 0
        %938 = vmatpush1.bf16.msra.mxu0 0
        %939 = vmatprep.subr.bf16.mxu0 0
        %940 = vmatpush1.bf16.msra.mxu0 0
        %941 = vmatprep.subr.bf16.mxu0 0
        %942 = vmatpush1.bf16.msra.mxu0 0
        %943 = vmatprep.subr.bf16.mxu0 0
        %944 = vmatpush1.bf16.msra.mxu0 0
        %945 = vmatprep.subr.bf16.mxu0 0
        %946 = vmatpush1.bf16.msra.mxu0 0
        %947 = vmatprep.subr.bf16.mxu0 0
        %948 = vmatpush1.bf16.msra.mxu0 0
        %949 = vmatprep.subr.bf16.mxu0 0
        %950 = vmatpush1.bf16.msra.mxu0 0
        %951 = vmatprep.subr.bf16.mxu0 0
        %952 = vmatpush1.bf16.msra.mxu0 0
        %953 = vmatprep.subr.bf16.mxu0 0
        %954 = vmatpush1.bf16.msra.mxu0 0
        %955 = vmatprep.subr.bf16.mxu0 0
        %956 = vmatpush1.bf16.msra.mxu0 0
        %957 = vmatprep.subr.bf16.mxu0 0
        %958 = vmatpush1.bf16.msra.mxu0 0
        %959 = vmatprep.subr.bf16.mxu0 0
        %960 = vmatpush1.bf16.msra.mxu0 0
        %961 = vmatprep.subr.bf16.mxu0 0
        %962 = vmatpush1.bf16.msra.mxu0 0
        %963 = vmatprep.subr.bf16.mxu0 0
        %964 = vmatpush1.bf16.msra.mxu0 0
        %965 = vmatprep.mubr.bf16.mxu0 0
        %966 = vmatmul.mubr.bf16.gmra.mrb[0].mxu0 %v928
        %v967 = vpop.f32.mrb[0].mxu0
        %v968 = vadd.f32 0.0, %v967
        %v969 = vpop.f32.mrb[0].mxu0
        %v970 = vpop.f32.mrb[0].mxu0
        %v971 = vpop.f32.mrb[0].mxu0
        %972 = vdwg.mxu0
        %973 = vrot.lane.b32.xlu0 %v594, 64
        %v974 = vpop.permute.xlu0 %973
        %v976 = vsel %vm597, %v827, 0
        %v979 = vsel %vm833, %v974, 0
        %981 = vmatprep.subr.bf16.mxu0 0
        %982 = vmatpush1.bf16.msra.mxu0 %v979
        %983 = vmatprep.subr.bf16.mxu0 0
        %984 = vmatpush1.bf16.msra.mxu0 0
        %985 = vmatprep.subr.bf16.mxu0 0
        %986 = vmatpush1.bf16.msra.mxu0 0
        %987 = vmatprep.subr.bf16.mxu0 0
        %988 = vmatpush1.bf16.msra.mxu0 0
        %989 = vmatprep.subr.bf16.mxu0 0
        %990 = vmatpush1.bf16.msra.mxu0 0
        %991 = vmatprep.subr.bf16.mxu0 0
        %992 = vmatpush1.bf16.msra.mxu0 0
        %993 = vmatprep.subr.bf16.mxu0 0
        %994 = vmatpush1.bf16.msra.mxu0 0
        %995 = vmatprep.subr.bf16.mxu0 0
        %996 = vmatpush1.bf16.msra.mxu0 0
        %997 = vmatprep.subr.bf16.mxu0 0
        %998 = vmatpush1.bf16.msra.mxu0 0
        %999 = vmatprep.subr.bf16.mxu0 0
        %1000 = vmatpush1.bf16.msra.mxu0 0
        %1001 = vmatprep.subr.bf16.mxu0 0
        %1002 = vmatpush1.bf16.msra.mxu0 0
        %1003 = vmatprep.subr.bf16.mxu0 0
        %1004 = vmatpush1.bf16.msra.mxu0 0
        %1005 = vmatprep.subr.bf16.mxu0 0
        %1006 = vmatpush1.bf16.msra.mxu0 0
        %1007 = vmatprep.subr.bf16.mxu0 0
        %1008 = vmatpush1.bf16.msra.mxu0 0
        %1009 = vmatprep.subr.bf16.mxu0 0
        %1010 = vmatpush1.bf16.msra.mxu0 0
        %1011 = vmatprep.subr.bf16.mxu0 0
        %1012 = vmatpush1.bf16.msra.mxu0 0
        %1013 = vmatprep.mubr.bf16.mxu0 0
        %1014 = vmatmul.mubr.bf16.gmra.mrb[0].mxu0 %v976
        %v1015 = vpop.f32.mrb[0].mxu0
        %v1016 = vadd.f32 0.0, %v1015
        %v1017 = vpop.f32.mrb[0].mxu0
        %v1018 = vpop.f32.mrb[0].mxu0
        %v1019 = vpop.f32.mrb[0].mxu0
        %1020 = vdwg.mxu0
        %v1021 = vrcp.pop %v814
        %v1022 = vrcp.pop %v817
        %v1023 = vrcp.pop %v820
        %v1024 = vrcp.pop %v823
        %v1025 = vmul.f32 %v872, %v1021
        %v1026 = vmul.f32 %v920, %v1022
        %v1027 = vmul.f32 %v968, %v1023
        %v1028 = vmul.f32 %v1016, %v1024
        %1030 = vrot.lane.b32.xlu0 %v1026, 8
        %v1031 = vpop.permute.xlu0 %1030
        %1034 = vrot.lane.b32.xlu0 %v1027, 16
        %v1035 = vpop.permute.xlu0 %1034
        %1038 = vrot.lane.b32.xlu0 %v1028, 24
        %v1039 = vpop.permute.xlu0 %1038
        %v1041 = vsel %vm597, %v1025, %v1031
        %vm1042 = vcmask 130048
        %v1043 = vsel %vm1042, %v1041, %v1035
        %vm1044 = vcmask 195584
        %v1045 = vsel %vm1044, %v1043, %v1039
        %v1046 = vpack.c.bf16 %v1045, %v1045
        %v1047 = vld [vmem:[%s5] sm:$0xf]
        %v1048 = vld [vmem:[%s5 + $0x4] sm:$0xf]
        %v1049 = vld [vmem:[%s5 + $0x8] sm:$0xf]
        %v1050 = vld [vmem:[%s5 + $0xc] sm:$0xf]
        %v1051 = vld [vmem:[#allocation5] sm:$0x1]
        %v1053 = vlaneseq
        %v1054 = vshrl.u32 %v1053, 7
        %v1055 = vsub.s32 0, %v1054
        %v1056 = vrot.slane %v1051, %v1055
        %v1062 = vunpack.c.l.b16 %v1047
        %v1063 = vunpack.c.l.b16 %v1048
        %v1064 = vunpack.c.l.b16 %v1049
        %v1065 = vunpack.c.l.b16 %v1050
        %v1066 = vpack.c.b16 %v1063, %v1062
        %v1067 = vpack.c.b16 %v1065, %v1064
        %v1071 = vsel %vm491, %v1046, 0
        %1073 = vmatprep.subr.bf16.mxu0 0
        %1074 = vmatpush1.bf16.msra.mxu0 %v1066
        %1075 = vmatprep.subr.bf16.mxu0 0
        %1076 = vmatpush1.bf16.msra.mxu0 %v1067
        %1077 = vmatprep.subr.bf16.mxu0 0
        %1078 = vmatpush1.bf16.msra.mxu0 0
        %1079 = vmatprep.subr.bf16.mxu0 0
        %1080 = vmatpush1.bf16.msra.mxu0 0
        %1081 = vmatprep.subr.bf16.mxu0 0
        %1082 = vmatpush1.bf16.msra.mxu0 0
        %1083 = vmatprep.subr.bf16.mxu0 0
        %1084 = vmatpush1.bf16.msra.mxu0 0
        %1085 = vmatprep.subr.bf16.mxu0 0
        %1086 = vmatpush1.bf16.msra.mxu0 0
        %1087 = vmatprep.subr.bf16.mxu0 0
        %1088 = vmatpush1.bf16.msra.mxu0 0
        %1089 = vmatprep.subr.bf16.mxu0 0
        %1090 = vmatpush1.bf16.msra.mxu0 0
        %1091 = vmatprep.subr.bf16.mxu0 0
        %1092 = vmatpush1.bf16.msra.mxu0 0
        %1093 = vmatprep.subr.bf16.mxu0 0
        %1094 = vmatpush1.bf16.msra.mxu0 0
        %1095 = vmatprep.subr.bf16.mxu0 0
        %1096 = vmatpush1.bf16.msra.mxu0 0
        %1097 = vmatprep.subr.bf16.mxu0 0
        %1098 = vmatpush1.bf16.msra.mxu0 0
        %1099 = vmatprep.subr.bf16.mxu0 0
        %1100 = vmatpush1.bf16.msra.mxu0 0
        %1101 = vmatprep.subr.bf16.mxu0 0
        %1102 = vmatpush1.bf16.msra.mxu0 0
        %1103 = vmatprep.subr.bf16.mxu0 0
        %1104 = vmatpush1.bf16.msra.mxu0 0
        %1105 = vmatprep.mubr.bf16.mxu0 0
        %1106 = vmatmul.mubr.bf16.gmra.mrb[0].mxu0 %v1071
        %v1107 = vpop.f32.mrb[0].mxu0
        %v1108 = vadd.f32 %v1056, %v1107
        %v1109 = vpop.f32.mrb[0].mxu0
        %v1110 = vpop.f32.mrb[0].mxu0
        %v1111 = vpop.f32.mrb[0].mxu0
        %1112 = vdwg.mxu0
        %v1113 = vadd.f32 %v519, %v1108
        %v1114 = vld [vmem:[#allocation7] sm:$0x1]
        %v1115 = vld [vmem:[#allocation8] sm:$0x1]
        %v1116 = vsel %vm491, %v1113, 0.0
        %1117 = vadd.xlane.f32.xlu0 %v1116
        %v1118 = vpop.xlane.xlu0 %1117
        %v1119 = vmul.f32 %v1118, %v495
        %v1120 = vsub.f32 %v1113, %v1119
        %v1121 = vmul.f32 %v1120, %v1120
        %v1122 = vsel %vm491, %v1121, 0.0
        %1123 = vadd.xlane.f32.xlu0 %v1122
        %v1124 = vpop.xlane.xlu0 %1123
        %v1125 = vmul.f32 %v1124, %v495
        %v1126 = vadd.f32 %v1125, 1e-05
        %v1127 = vrsqrt.pop %v1126
        %v1128 = vmul.f32 %v1120, %v1127
        %v1130 = vlaneseq
        %v1131 = vshrl.u32 %v1130, 7
        %v1132 = vsub.s32 0, %v1131
        %v1133 = vrot.slane %v1114, %v1132
        %v1135 = vmul.f32 %v1128, %v1133
        %v1137 = vlaneseq
        %v1138 = vshrl.u32 %v1137, 7
        %v1139 = vsub.s32 0, %v1138
        %v1140 = vrot.slane %v1115, %v1139
        %v1142 = vadd.f32 %v1135, %v1140
        %v1143 = vpack.c.bf16 %v1142, %v1142
        %v1144 = vld [vmem:[%s9] sm:$0xf]
        %v1145 = vld [vmem:[%s9 + $0x4] sm:$0xf]
        %v1146 = vld [vmem:[%s9 + $0x8] sm:$0xf]
        %v1147 = vld [vmem:[%s9 + $0xc] sm:$0xf]
        %v1148 = vld [vmem:[%s10] sm:$0x1]
        %v1150 = vlaneseq
        %v1151 = vshrl.u32 %v1150, 7
        %v1152 = vsub.s32 0, %v1151
        %v1153 = vrot.slane %v1148, %v1152
        %v1159 = vunpack.c.l.b16 %v1144
        %v1160 = vunpack.c.l.b16 %v1145
        %v1161 = vunpack.c.l.b16 %v1146
        %v1162 = vunpack.c.l.b16 %v1147
        %v1163 = vpack.c.b16 %v1160, %v1159
        %v1164 = vpack.c.b16 %v1162, %v1161
        %v1168 = vsel %vm491, %v1143, 0
        %1170 = vmatprep.subr.bf16.mxu0 0
        %1171 = vmatpush1.bf16.msra.mxu0 %v1163
        %1172 = vmatprep.subr.bf16.mxu0 0
        %1173 = vmatpush1.bf16.msra.mxu0 %v1164
        %1174 = vmatprep.subr.bf16.mxu0 0
        %1175 = vmatpush1.bf16.msra.mxu0 0
        %1176 = vmatprep.subr.bf16.mxu0 0
        %1177 = vmatpush1.bf16.msra.mxu0 0
        %1178 = vmatprep.subr.bf16.mxu0 0
        %1179 = vmatpush1.bf16.msra.mxu0 0
        %1180 = vmatprep.subr.bf16.mxu0 0
        %1181 = vmatpush1.bf16.msra.mxu0 0
        %1182 = vmatprep.subr.bf16.mxu0 0
        %1183 = vmatpush1.bf16.msra.mxu0 0
        %1184 = vmatprep.subr.bf16.mxu0 0
        %1185 = vmatpush1.bf16.msra.mxu0 0
        %1186 = vmatprep.subr.bf16.mxu0 0
        %1187 = vmatpush1.bf16.msra.mxu0 0
        %1188 = vmatprep.subr.bf16.mxu0 0
        %1189 = vmatpush1.bf16.msra.mxu0 0
        %1190 = vmatprep.subr.bf16.mxu0 0
        %1191 = vmatpush1.bf16.msra.mxu0 0
        %1192 = vmatprep.subr.bf16.mxu0 0
        %1193 = vmatpush1.bf16.msra.mxu0 0
        %1194 = vmatprep.subr.bf16.mxu0 0
        %1195 = vmatpush1.bf16.msra.mxu0 0
        %1196 = vmatprep.subr.bf16.mxu0 0
        %1197 = vmatpush1.bf16.msra.mxu0 0
        %1198 = vmatprep.subr.bf16.mxu0 0
        %1199 = vmatpush1.bf16.msra.mxu0 0
        %1200 = vmatprep.subr.bf16.mxu0 0
        %1201 = vmatpush1.bf16.msra.mxu0 0
        %1202 = vmatprep.mubr.bf16.mxu0 0
        %1203 = vmatmul.mubr.bf16.gmra.mrb[0].mxu0 %v1168
        %v1204 = vpop.f32.mrb[0].mxu0
        %v1205 = vadd.f32 %v1153, %v1204
        %v1206 = vpop.f32.mrb[0].mxu0
        %v1207 = vpop.f32.mrb[0].mxu0
        %v1208 = vpop.f32.mrb[0].mxu0
        %1209 = vdwg.mxu0
        %v1210 = vxor.u32 %v1205, 2147483648
        %v1211 = vmul.f32 %v1210, 1.442695
        %v1212 = vpow.pop %v1211
        %v1213 = vadd.f32 %v1212, 1.0
        %v1214 = vrcp.pop %v1213
        %v1215 = vmul.f32 1.0, %v1214
        %v1216 = vmul.f32 %v1205, %v1215
        %1218 = vrot.lane.b32.xlu0 %v1205, 64
        %v1219 = vpop.permute.xlu0 %1218
        %v1221 = vmul.f32 %v1216, %v1219
        %v1222 = vpack.c.bf16 %v1221, %v1221
        %v1223 = vld [vmem:[%s11] sm:$0xf]
        %v1224 = vld [vmem:[%s11 + $0x4] sm:$0xf]
        %v1225 = vld [vmem:[%s11 + $0x8] sm:$0xf]
        %v1226 = vld [vmem:[%s11 + $0xc] sm:$0xf]
        %v1227 = vld [vmem:[%s11 + $0x10] sm:$0xf]
        %v1228 = vld [vmem:[%s11 + $0x14] sm:$0xf]
        %v1229 = vld [vmem:[%s11 + $0x18] sm:$0xf]
        %v1230 = vld [vmem:[%s11 + $0x1c] sm:$0xf]
        %v1231 = vld [vmem:[%s12] sm:$0x1]
        %v1233 = vlaneseq
        %v1234 = vshrl.u32 %v1233, 7
        %v1235 = vsub.s32 0, %v1234
        %v1236 = vrot.slane %v1231, %v1235
        %v1246 = vunpack.c.l.b16 %v1223
        %v1247 = vunpack.c.l.b16 %v1224
        %v1248 = vunpack.c.l.b16 %v1225
        %v1249 = vunpack.c.l.b16 %v1226
        %v1250 = vunpack.c.l.b16 %v1227
        %v1251 = vunpack.c.l.b16 %v1228
        %v1252 = vunpack.c.l.b16 %v1229
        %v1253 = vunpack.c.l.b16 %v1230
        %v1254 = vpack.c.b16 %v1247, %v1246
        %v1255 = vpack.c.b16 %v1249, %v1248
        %v1256 = vpack.c.b16 %v1251, %v1250
        %v1257 = vpack.c.b16 %v1253, %v1252
        %vm1262 = vcmask 523264
        %v1264 = vsel %vm1262, %v1222, 0
        %1266 = vmatprep.subr.bf16.mxu0 0
        %1267 = vmatpush1.bf16.msra.mxu0 %v1254
        %1268 = vmatprep.subr.bf16.mxu0 0
        %1269 = vmatpush1.bf16.msra.mxu0 %v1255
        %1270 = vmatprep.subr.bf16.mxu0 0
        %1271 = vmatpush1.bf16.msra.mxu0 %v1256
        %1272 = vmatprep.subr.bf16.mxu0 0
        %1273 = vmatpush1.bf16.msra.mxu0 %v1257
        %1274 = vmatprep.subr.bf16.mxu0 0
        %1275 = vmatpush1.bf16.msra.mxu0 0
        %1276 = vmatprep.subr.bf16.mxu0 0
        %1277 = vmatpush1.bf16.msra.mxu0 0
        %1278 = vmatprep.subr.bf16.mxu0 0
        %1279 = vmatpush1.bf16.msra.mxu0 0
        %1280 = vmatprep.subr.bf16.mxu0 0
        %1281 = vmatpush1.bf16.msra.mxu0 0
        %1282 = vmatprep.subr.bf16.mxu0 0
        %1283 = vmatpush1.bf16.msra.mxu0 0
        %1284 = vmatprep.subr.bf16.mxu0 0
        %1285 = vmatpush1.bf16.msra.mxu0 0
        %1286 = vmatprep.subr.bf16.mxu0 0
        %1287 = vmatpush1.bf16.msra.mxu0 0
        %1288 = vmatprep.subr.bf16.mxu0 0
        %1289 = vmatpush1.bf16.msra.mxu0 0
        %1290 = vmatprep.subr.bf16.mxu0 0
        %1291 = vmatpush1.bf16.msra.mxu0 0
        %1292 = vmatprep.subr.bf16.mxu0 0
        %1293 = vmatpush1.bf16.msra.mxu0 0
        %1294 = vmatprep.subr.bf16.mxu0 0
        %1295 = vmatpush1.bf16.msra.mxu0 0
        %1296 = vmatprep.subr.bf16.mxu0 0
        %1297 = vmatpush1.bf16.msra.mxu0 0
        %1298 = vmatprep.mubr.bf16.mxu0 0
        %1299 = vmatmul.mubr.bf16.gmra.mrb[0].mxu0 %v1264
        %v1300 = vpop.f32.mrb[0].mxu0
        %v1301 = vadd.f32 %v1236, %v1300
        %v1302 = vpop.f32.mrb[0].mxu0
        %v1303 = vpop.f32.mrb[0].mxu0
        %v1304 = vpop.f32.mrb[0].mxu0
        %1305 = vdwg.mxu0
        %v1306 = vadd.f32 %v1142, %v1301
        %1307 = vst.msk [vmem:[%s482] sm:$0xff] %vm491, %v1306
        %s1308 = sand.u32 %s316, 1
        %s1309 = scalar_lea.sflag [#allocation4], %s1308
        %s1310 = sand.u32 %s316, 1
        %s1311 = smul.addr %s1310, 8
        %s1312 = scalar_lea.vmem [#allocation10], %s1311
        // Predicated region
        $region89: #{tpu_custom_call.1} parent=71 // pred_check
          %p1313 = pneg %p326
        $region90: #{tpu_custom_call.1} parent=71 // pred_check_branch
          %1315 = sbr.rel (%p1313) target = $region92
        $region91: #{tpu_custom_call.1} parent=71 // pred_region
          %s1317 = ssub.s32 128, 128
          %1318 = vsyncadd %s1309, %s1317
          %s1319 = smul.addr %s30, 128
          %s1320 = scalar_lea.hbm %s13, %s1319
          %s1322 = sshll.u32 %s1312, 4
          %s1323 = int_to_ptr.vmem [resolvable:$true] %s1322
          %1325 = dma.vmem_to_hbm [thread:$0]  %s1323, 128, %s1320, %s1309
        $region92: #{tpu_custom_call.1} parent=71 // pred_fallthru
          _
      $region72: #{tpu_custom_call.1} parent=5 // pred_fallthru
        _
      %p1326 = scmp.le.s32.totalorder 2, %s25
      // Predicated region
      $region93: #{tpu_custom_call.1} parent=5 // pred_check
        %p1327 = pneg %p1326
      $region94: #{tpu_custom_call.1} parent=5 // pred_check_branch
        %1329 = sbr.rel (%p1327) target = $region96
      $region95: #{tpu_custom_call.1} parent=5 // pred_region
        %s1330 = ssub.s32 %s25, 2
        // Predicated region
        $region97: #{tpu_custom_call.1} parent=95 // pred_check
          %p1331 = pneg %p332
        $region98: #{tpu_custom_call.1} parent=95 // pred_check_branch
          %1333 = sbr.rel (%p1331) target = $region100
        $region99: #{tpu_custom_call.1} parent=95 // pred_region
          %s1334 = sand.u32 %s317, 1
          %s1335 = scalar_lea.sflag [#allocation4], %s1334
          %s1336 = sand.u32 %s317, 1
          %s1337 = smul.addr %s1336, 8
          %s1338 = scalar_lea.vmem [#allocation10], %s1337
          %1339 = dma.done %s1335, 128
        $region100: #{tpu_custom_call.1} parent=95 // pred_fallthru
          _
      $region96: #{tpu_custom_call.1} parent=5 // pred_fallthru
        _
    $region6: #{tpu_custom_call.1} parent=1 // loop_footer
      %s29 = sadd.s32 1, %s25
    $region7: #{tpu_custom_call.1} parent=1 // loop_footer_branch
      %24 = sbr.rel target = $region3
    $region8: #{tpu_custom_call.1} parent=1 // loop_exit
      _
    %1340 = vsyncpa [#allocation3], 1
    %s1341 = scalar_lea.sflag [#allocation3], 1
    %1342 = vsyncpa %s1341, 1
    %1343 = vsyncpa [#allocation6], 1
    %1344 = vsyncpa [#allocation9], 1
    %1345 = vsyncpa [#allocation4], 1
    %s1346 = scalar_lea.sflag [#allocation4], 1
    %1347 = vsyncpa %s1346, 1

</llo_original>
